<compile_context>
chip_gen: v6e
topology: v6e:2x2x1
jax: 0.10.0
libtpu: 0.0.40
codegen_flags: <defaults>
</compile_context>

<pallas_src>
import math

import jax
import jax.numpy as jnp
from jax.experimental import pallas as pl
from jax.experimental.pallas import tpu as pltpu


def _vmem_limit_bytes():
    """Per-generation VMEM budget: ~3/4 of physical, capped at 96 MiB."""
    try:
        info = pltpu.get_tpu_info()
        cap = getattr(info, "vmem_capacity_bytes", None)
        if cap:
            return int(min(cap * 3 // 4, 96 * 1024 * 1024))
    except Exception:
        pass
    return 32 * 1024 * 1024


_VMEM_LIMIT = _vmem_limit_bytes()


def _row_tile(m):
    """Largest row tile (multiple of 8, up to 1024) dividing m, preferring >=2 steps."""
    cands = (1024, 512, 256, 128, 64, 32, 16, 8)
    for t in cands:
        if m % t == 0 and m // t >= 2:
            return t
    for t in cands:
        if m % t == 0:
            return t
    return m


def _seq_tile(s):
    """Query tile for attention: bounded score VMEM, >=2 grid steps when possible."""
    for t in (256, 128, 64, 32, 16, 8):
        if s % t == 0 and s // t >= 2:
            return t
    return s


def _norm(x, alpha, bias):
    # Matches the reference blog-style Norm: unbiased std (d-1), eps added to std
    # (NOT nn.LayerNorm semantics) -- intentionally kept.
    d = x.shape[-1]
    mean = jnp.mean(x, axis=-1, keepdims=True)
    var = jnp.sum((x - mean) ** 2, axis=-1, keepdims=True) / (d - 1)
    return alpha * (x - mean) / (jnp.sqrt(var) + 1e-6) + bias


# ----------------------- PositionalEncoder kernel (the spec module) ---------

def positional_encode(x, pe_s, d_model):
    """x: [B, S, D]; pe_s: [S, D].  y = x * sqrt(d_model) + pe  (dropout = id)."""
    B, S, D = x.shape
    scale = math.sqrt(d_model)

    def kernel(x_ref, pe_ref, o_ref):
        o_ref[0] = x_ref[0] * scale + pe_ref[...]

    return pl.pallas_call(
        kernel,
        out_shape=jax.ShapeDtypeStruct((B, S, D), jnp.float32),
        grid=(B,),
        in_specs=[pl.BlockSpec((1, S, D), lambda b: (b, 0, 0)),
                  pl.BlockSpec((S, D), lambda b: (0, 0))],
        out_specs=pl.BlockSpec((1, S, D), lambda b: (b, 0, 0)),
        compiler_params=pltpu.CompilerParams(
            dimension_semantics=("parallel",),
            vmem_limit_bytes=_VMEM_LIMIT),
    )(x, pe_s)


# ----------------------- pre-norm + fused QKV projection --------------------

def qkv_block(x, a, b, wqkv, bqkv):
    """x: [M, D] -> (q, k, v) each [M, D].  norm -> x2 @ [D,3D] -> split."""
    M, D = x.shape

    tm = _row_tile(M)

    def kernel(x_ref, a_ref, b_ref, w_ref, bias_ref, q_ref, k_ref, v_ref):
        x2 = _norm(x_ref[...], a_ref[...], b_ref[...])
        qkv = jnp.dot(x2.astype(jnp.bfloat16), w_ref[...],
                      preferred_element_type=jnp.float32) + bias_ref[...]
        q_ref[...] = qkv[:, :D]
        k_ref[...] = qkv[:, D:2 * D]
        v_ref[...] = qkv[:, 2 * D:]

    out = jax.ShapeDtypeStruct((M, D), jnp.float32)
    return pl.pallas_call(
        kernel,
        out_shape=(out, out, out),
        grid=(M // tm,),
        in_specs=[pl.BlockSpec((tm, D), lambda i: (i, 0)),
                  pl.BlockSpec((1, D), lambda i: (0, 0)),
                  pl.BlockSpec((1, D), lambda i: (0, 0)),
                  pl.BlockSpec((D, 3 * D), lambda i: (0, 0)),
                  pl.BlockSpec((1, 3 * D), lambda i: (0, 0))],
        out_specs=[pl.BlockSpec((tm, D), lambda i: (i, 0)),
                   pl.BlockSpec((tm, D), lambda i: (i, 0)),
                   pl.BlockSpec((tm, D), lambda i: (i, 0))],
        compiler_params=pltpu.CompilerParams(
            dimension_semantics=("parallel",),
            vmem_limit_bytes=_VMEM_LIMIT),
    )(x, a.reshape(1, D), b.reshape(1, D), wqkv, bqkv.reshape(1, 3 * D))


# ----------------------- query-tiled euclidean-distance attention -----------
# grid = (B, S // tq); all heads batched inside; Wo + residual fused.

def attn_core(x, q, k, v, wo_h, bo, mask, *, heads):
    B, S, D = x.shape
    dk = D // heads
    tq = _seq_tile(S)

    def kernel(x_ref, q_ref, k_ref, v_ref, wo_ref, bo_ref, m_ref, o_ref):
        xq = x_ref[0]                               # [tq, D] f32 (for residual)
        qf = q_ref[0]                               # [tq, D] f32
        kf = k_ref[0]                               # [S, D]  f32
        vf = v_ref[0]                               # [S, D]  f32
        keep = m_ref[...] >= 0.5                    # [tq, S] bool

        # Head-major stacks via cheap static lane slices + major-axis stack;
        # everything below is batched over the head axis (no per-head matmuls,
        # no lane-dim concat).
        qh_f = jnp.stack([qf[:, h * dk:(h + 1) * dk] for h in range(heads)], 0)
        kh_f = jnp.stack([kf[:, h * dk:(h + 1) * dk] for h in range(heads)], 0)
        vh = jnp.stack([vf[:, h * dk:(h + 1) * dk] for h in range(heads)],
                       0).astype(jnp.bfloat16)      # [H, S, dk]

        qn = jnp.sum(qh_f * qh_f, axis=-1, keepdims=True)          # [H, tq, 1]
        # Row-layout key norms via a tiny batched ones-matmul (MXU emits the
        # [H, 1, S] layout directly; avoids a sublane->lane relayout).
        ones_h = jnp.ones((heads, 1, dk), jnp.float32)
        kn_row = jnp.einsum('hod,hkd->hok', ones_h, kh_f * kh_f,
                            preferred_element_type=jnp.float32)    # [H, 1, S]

        qk = jnp.einsum('hqd,hkd->hqk',
                        qh_f.astype(jnp.bfloat16), kh_f.astype(jnp.bfloat16),
                        preferred_element_type=jnp.float32)        # [H, tq, S]
        d2 = qn + kn_row - 2.0 * qk
        dist = jnp.sqrt(jnp.maximum(d2, 0.0))

        # scores <= 0 (kept = -dist, masked = -1e9) so exp cannot overflow and the
        # usual row-max subtraction is dropped (saves an XLU reduce + VPU sub).
        scores = jnp.where(keep[None], -dist, -1e9)
        p = jnp.exp(scores)
        denom = jnp.maximum(jnp.sum(p, axis=-1, keepdims=True), 1e-30)
        p = p * pl.reciprocal(denom, approx=True)

        ctx = jnp.einsum('hqk,hkd->hqd', p.astype(jnp.bfloat16), vh,
                         preferred_element_type=jnp.float32)       # [H, tq, dk]
        # Per-head output projection with Wo pre-reshaped to [H, dk, D]; the sum
        # over heads is mathematically concat(heads) @ Wo, without a lane concat.
        attn = jnp.sum(
            jnp.einsum('hqd,hde->hqe', ctx.astype(jnp.bfloat16), wo_ref[...],
                       preferred_element_type=jnp.float32), axis=0)  # [tq, D]
        o_ref[0] = xq + attn + bo_ref[...]

    return pl.pallas_call(
        kernel,
        out_shape=jax.ShapeDtypeStruct((B, S, D), jnp.float32),
        grid=(B, S // tq),
        in_specs=[pl.BlockSpec((1, tq, D), lambda b, i: (b, i, 0)),   # x (residual)
                  pl.BlockSpec((1, tq, D), lambda b, i: (b, i, 0)),   # q tile
                  pl.BlockSpec((1, S, D), lambda b, i: (b, 0, 0)),    # k (full)
                  pl.BlockSpec((1, S, D), lambda b, i: (b, 0, 0)),    # v (full)
                  pl.BlockSpec((heads, dk, D), lambda b, i: (0, 0, 0)),
                  pl.BlockSpec((1, D), lambda b, i: (0, 0)),
                  pl.BlockSpec((tq, S), lambda b, i: (i, 0))],        # [S,S] mask
        out_specs=pl.BlockSpec((1, tq, D), lambda b, i: (b, i, 0)),
        compiler_params=pltpu.CompilerParams(
            dimension_semantics=("parallel", "parallel"),
            vmem_limit_bytes=_VMEM_LIMIT),
    )(x, q, k, v, wo_h, bo.reshape(1, D), mask)


# ----------------------- fused feed-forward block ---------------------------

def ffn_block(x, a, b, w1, b1, w2, b2):
    M, D = x.shape
    Dff = w1.shape[1]
    tm = _row_tile(M)

    def kernel(x_ref, a_ref, b_ref, w1_ref, b1_ref, w2_ref, b2_ref, o_ref):
        xb = x_ref[...]                                          # [tm, D]
        x2 = _norm(xb, a_ref[...], b_ref[...])
        h = jnp.dot(x2.astype(jnp.bfloat16), w1_ref[...],
                    preferred_element_type=jnp.float32) + b1_ref[...]
        h = jnp.maximum(h, 0.0)                                  # ReLU
        y = jnp.dot(h.astype(jnp.bfloat16), w2_ref[...],
                    preferred_element_type=jnp.float32) + b2_ref[...]
        o_ref[...] = xb + y                                      # fused residual

    return pl.pallas_call(
        kernel,
        out_shape=jax.ShapeDtypeStruct((M, D), jnp.float32),
        grid=(M // tm,),
        in_specs=[pl.BlockSpec((tm, D), lambda i: (i, 0)),
                  pl.BlockSpec((1, D), lambda i: (0, 0)),
                  pl.BlockSpec((1, D), lambda i: (0, 0)),
                  pl.BlockSpec((D, Dff), lambda i: (0, 0)),
                  pl.BlockSpec((1, Dff), lambda i: (0, 0)),
                  pl.BlockSpec((Dff, D), lambda i: (0, 0)),
                  pl.BlockSpec((1, D), lambda i: (0, 0))],
        out_specs=pl.BlockSpec((tm, D), lambda i: (i, 0)),
        compiler_params=pltpu.CompilerParams(
            dimension_semantics=("parallel",),
            vmem_limit_bytes=_VMEM_LIMIT),
    )(x, a.reshape(1, D), b.reshape(1, D), w1, b1.reshape(1, Dff),
      w2, b2.reshape(1, D))


# ----------------------- final norm + vocab projection ----------------------
# Vocab padded to a multiple of 128 (lane-dense stores); normalized row tile is
# cached in VMEM scratch at j==0 and reused across vocab tiles.

def final_block(x, a, b, w_pad, b_pad):
    M, D = x.shape
    Vpad = w_pad.shape[1]
    tm = _row_tile(M)
    tn = 512 if Vpad % 512 == 0 else (256 if Vpad % 256 == 0 else 128)

    def kernel(x_ref, a_ref, b_ref, w_ref, bias_ref, o_ref, xn_ref):
        @pl.when(pl.program_id(1) == 0)
        def _():
            xn_ref[...] = _norm(x_ref[...], a_ref[...],
                                b_ref[...]).astype(jnp.bfloat16)
        o_ref[...] = jnp.dot(xn_ref[...], w_ref[...],
                             preferred_element_type=jnp.float32) + bias_ref[...]

    return pl.pallas_call(
        kernel,
        out_shape=jax.ShapeDtypeStruct((M, Vpad), jnp.float32),
        grid=(M // tm, Vpad // tn),
        in_specs=[pl.BlockSpec((tm, D), lambda i, j: (i, 0)),
                  pl.BlockSpec((1, D), lambda i, j: (0, 0)),
                  pl.BlockSpec((1, D), lambda i, j: (0, 0)),
                  pl.BlockSpec((D, tn), lambda i, j: (0, j)),
                  pl.BlockSpec((1, tn), lambda i, j: (0, j))],
        out_specs=pl.BlockSpec((tm, tn), lambda i, j: (i, j)),
        scratch_shapes=[pltpu.VMEM((tm, D), jnp.bfloat16)],
        compiler_params=pltpu.CompilerParams(
            dimension_semantics=("parallel", "arbitrary"),
            vmem_limit_bytes=_VMEM_LIMIT),
    )(x, a.reshape(1, D), b.reshape(1, D), w_pad, b_pad.reshape(1, Vpad))


# ----------------------------- parameter init -------------------------------

def _init_linear(key, din, dout):
    k1, k2 = jax.random.split(key)
    bound = 1.0 / math.sqrt(din)
    w = jax.random.uniform(k1, (din, dout), jnp.float32, -bound, bound)
    b = jax.random.uniform(k2, (dout,), jnp.float32, -bound, bound)
    return w, b


def _positional_encoding(max_seq, d_model):
    pos = jnp.arange(max_seq, dtype=jnp.float32)[:, None]
    i2 = jnp.arange(0, d_model, 2, dtype=jnp.float32)
    pe = jnp.zeros((max_seq, d_model), jnp.float32)
    pe = pe.at[:, 0::2].set(jnp.sin(pos / 10000.0 ** (2.0 * i2 / d_model)))
    pe = pe.at[:, 1::2].set(jnp.cos(pos / 10000.0 ** (2.0 * (i2 + 1.0) / d_model)))
    return pe


def init_params(key, trg_vocab, max_seq, d_model, N, heads, d_ff=2048):
    keys = jax.random.split(key, 4 + 6 * N)
    it = iter(keys)
    dk = d_model // heads
    params = {}
    emb = jax.random.normal(next(it), (trg_vocab, d_model), jnp.float32)
    emb = emb.at[0].set(0.0)                       # padding_idx=0 row zeroed
    params["embed"] = emb
    params["pe"] = _positional_encoding(max_seq, d_model)

    layers = []
    for _ in range(N):
        lp = {}
        lp["a1"] = jnp.ones((d_model,), jnp.float32)
        lp["b1"] = jnp.zeros((d_model,), jnp.float32)
        lp["a3"] = jnp.ones((d_model,), jnp.float32)
        lp["b3"] = jnp.zeros((d_model,), jnp.float32)
        wq, bq = _init_linear(next(it), d_model, d_model)
        wk, bk = _init_linear(next(it), d_model, d_model)
        wv, bv = _init_linear(next(it), d_model, d_model)
        lp["wqkv"] = jnp.concatenate([wq, wk, wv], axis=1).astype(jnp.bfloat16)
        lp["bqkv"] = jnp.concatenate([bq, bk, bv], axis=0)
        wo, lp["bo"] = _init_linear(next(it), d_model, d_model)
        lp["wo_h"] = wo.reshape(heads, dk, d_model).astype(jnp.bfloat16)
        w1, lp["b1f"] = _init_linear(next(it), d_model, d_ff)
        lp["w1"] = w1.astype(jnp.bfloat16)
        w2, lp["b2f"] = _init_linear(next(it), d_ff, d_model)
        lp["w2"] = w2.astype(jnp.bfloat16)
        layers.append(lp)
    params["layers"] = layers

    params["an"] = jnp.ones((d_model,), jnp.float32)
    params["bn"] = jnp.zeros((d_model,), jnp.float32)
    wout, bout = _init_linear(next(it), d_model, trg_vocab)
    vpad = ((trg_vocab + 127) // 128) * 128        # lane-dense vocab padding
    params["wout"] = jnp.pad(wout, ((0, 0), (0, vpad - trg_vocab))).astype(jnp.bfloat16)
    params["bout"] = jnp.pad(bout, (0, vpad - trg_vocab))
    return params


# ----------------------------- forward pass ---------------------------------

def transformer_forward(params, trg, trg_mask, *, d_model, N, heads, trg_vocab):
    B, S = trg.shape

    # TODO(synk): token-embedding gather stays in plain JAX (a per-row DMA gather
    # kernel is not worthwhile at this scale).
    x = jnp.take(params["embed"], trg, axis=0)                  # [B, S, D]
    # PositionalEncoder (the spec module) as a Pallas kernel; dropout = identity.
    x = positional_encode(x, params["pe"][:S], d_model)

    for lp in params["layers"]:
        # pre-norm + fused [D, 3D] QKV projection, row-tiled over B*S
        q, k, v = qkv_block(x.reshape(B * S, d_model), lp["a1"], lp["b1"],
                            lp["wqkv"], lp["bqkv"])
        # query-tiled euclidean-distance attention (heads batched) + Wo + residual
        x = attn_core(x,
                      q.reshape(B, S, d_model),
                      k.reshape(B, S, d_model),
                      v.reshape(B, S, d_model),
                      lp["wo_h"], lp["bo"], trg_mask, heads=heads)
        # pre-norm + FFN + residual, row-tiled
        x = ffn_block(x.reshape(B * S, d_model), lp["a3"], lp["b3"],
                      lp["w1"], lp["b1f"], lp["w2"],
                      lp["b2f"]).reshape(B, S, d_model)

    logits = final_block(x.reshape(B * S, d_model),
                         params["an"], params["bn"],
                         params["wout"], params["bout"])        # [B*S, Vpad]
    return logits[:, :trg_vocab].reshape(B, S, trg_vocab)


# ----------------------------- main ------------------------------------------

if __name__ == "__main__":
    B, S = 2, 8
    trg_vocab = 16
    d_model = 128        # multiple of 128 -> lane-dense activations everywhere
    N = 2
    heads = 4            # dk = 32
    max_seq = 64
    d_ff = 256

    key = jax.random.PRNGKey(0)
    kp, kt = jax.random.split(key)
    params = init_params(kp, trg_vocab, max_seq, d_model, N, heads, d_ff=d_ff)

    trg = jax.random.randint(kt, (B, S), 0, trg_vocab).astype(jnp.int32)
    # single [S, S] causal (no-peek) mask: 1 = attend, 0 = masked
    trg_mask = jnp.tril(jnp.ones((S, S), jnp.float32))

    fwd = jax.jit(lambda p, t, m: transformer_forward(
        p, t, m, d_model=d_model, N=N, heads=heads, trg_vocab=trg_vocab))
    out = fwd(params, trg, trg_mask)
    jax.block_until_ready(out)
    assert out.shape == (B, S, trg_vocab)
    assert bool(jnp.all(jnp.isfinite(out)))
    print("KERNEL_OK")
</pallas_src>

<mosaic_0001>
module attributes {stable_mosaic.version = 11 : i64} {
  func.func @kernel(%arg0: i32, %arg1: memref<8x128xf32, #tpu.memory_space<vmem>>, %arg2: memref<1x128xf32, #tpu.memory_space<vmem>>, %arg3: memref<1x128xf32, #tpu.memory_space<vmem>>, %arg4: memref<128x384xbf16, #tpu.memory_space<vmem>>, %arg5: memref<1x384xf32, #tpu.memory_space<vmem>>, %arg6: memref<8x128xf32, #tpu.memory_space<vmem>>, %arg7: memref<8x128xf32, #tpu.memory_space<vmem>>, %arg8: memref<8x128xf32, #tpu.memory_space<vmem>>) attributes {dimension_semantics = [#tpu.dimension_semantics<parallel>], iteration_bounds = array<i64: 2>, scalar_prefetch = 0 : i64, scratch_operands = 0 : i64, tpu.core_type = #tpu.core_type<tc>, window_params = [{transform_indices = @transform_0, window_bounds = array<i64: 8, 128>}, {pipeline_mode = #tpu.pipeline_mode<synchronous>, transform_indices = @transform_1, window_bounds = array<i64: 1, 128>}, {pipeline_mode = #tpu.pipeline_mode<synchronous>, transform_indices = @transform_2, window_bounds = array<i64: 1, 128>}, {pipeline_mode = #tpu.pipeline_mode<synchronous>, transform_indices = @transform_3, window_bounds = array<i64: 128, 384>}, {pipeline_mode = #tpu.pipeline_mode<synchronous>, transform_indices = @transform_4, window_bounds = array<i64: 1, 384>}, {transform_indices = @transform_5, window_bounds = array<i64: 8, 128>}, {transform_indices = @transform_6, window_bounds = array<i64: 8, 128>}, {transform_indices = @transform_7, window_bounds = array<i64: 8, 128>}]} {
    %c0 = arith.constant 0 : index
    %c0_0 = arith.constant 0 : index
    %0 = vector.load %arg1[%c0, %c0_0] : memref<8x128xf32, #tpu.memory_space<vmem>>, vector<8x128xf32>
    %c0_1 = arith.constant 0 : index
    %c0_2 = arith.constant 0 : index
    %1 = vector.load %arg2[%c0_1, %c0_2] : memref<1x128xf32, #tpu.memory_space<vmem>>, vector<1x128xf32>
    %c0_3 = arith.constant 0 : index
    %c0_4 = arith.constant 0 : index
    %2 = vector.load %arg3[%c0_3, %c0_4] : memref<1x128xf32, #tpu.memory_space<vmem>>, vector<1x128xf32>
    %cst = arith.constant dense<0.000000e+00> : vector<8xf32>
    %3 = vector.multi_reduction <add>, %0, %cst [1] : vector<8x128xf32> to vector<8xf32>
    %4 = vector.shape_cast %3 : vector<8xf32> to vector<8x1xf32>
    %cst_5 = arith.constant 1.280000e+02 : f32
    %5 = vector.broadcast %cst_5 : f32 to vector<8x1xf32>
    %6 = arith.divf %4, %5 : vector<8x1xf32>
    %7 = vector.broadcast %6 : vector<8x1xf32> to vector<8x128xf32>
    %8 = arith.subf %0, %7 : vector<8x128xf32>
    %9 = arith.mulf %8, %8 : vector<8x128xf32>
    %cst_6 = arith.constant dense<0.000000e+00> : vector<8xf32>
    %10 = vector.multi_reduction <add>, %9, %cst_6 [1] : vector<8x128xf32> to vector<8xf32>
    %11 = vector.shape_cast %10 : vector<8xf32> to vector<8x1xf32>
    %cst_7 = arith.constant 1.270000e+02 : f32
    %12 = vector.broadcast %cst_7 : f32 to vector<8x1xf32>
    %13 = arith.divf %11, %12 : vector<8x1xf32>
    %14 = vector.broadcast %6 : vector<8x1xf32> to vector<8x128xf32>
    %15 = arith.subf %0, %14 : vector<8x128xf32>
    %16 = vector.broadcast %1 : vector<1x128xf32> to vector<8x128xf32>
    %17 = arith.mulf %16, %15 : vector<8x128xf32>
    %18 = math.sqrt %13 : vector<8x1xf32>
    %cst_8 = arith.constant 9.99999997E-7 : f32
    %19 = vector.broadcast %cst_8 : f32 to vector<8x1xf32>
    %20 = arith.addf %18, %19 : vector<8x1xf32>
    %21 = vector.broadcast %20 : vector<8x1xf32> to vector<8x128xf32>
    %22 = arith.divf %17, %21 : vector<8x128xf32>
    %23 = vector.broadcast %2 : vector<1x128xf32> to vector<8x128xf32>
    %24 = arith.addf %22, %23 : vector<8x128xf32>
    %25 = arith.truncf %24 : vector<8x128xf32> to vector<8x128xbf16>
    %c0_9 = arith.constant 0 : index
    %c0_10 = arith.constant 0 : index
    %26 = vector.load %arg4[%c0_9, %c0_10] : memref<128x384xbf16, #tpu.memory_space<vmem>>, vector<128x384xbf16>
    %cst_11 = arith.constant dense<0.000000e+00> : vector<8x384xf32>
    %27 = tpu.matmul %25, %26, %cst_11 {dimension_numbers = #tpu.dot_dimension_numbers<[1], [0], [0], [1], [0, 0, 1, 1], [], []>} : vector<8x128xbf16>, vector<128x384xbf16>, vector<8x384xf32> -> vector<8x384xf32>
    %c0_12 = arith.constant 0 : index
    %c0_13 = arith.constant 0 : index
    %28 = vector.load %arg5[%c0_12, %c0_13] : memref<1x384xf32, #tpu.memory_space<vmem>>, vector<1x384xf32>
    %29 = vector.broadcast %28 : vector<1x384xf32> to vector<8x384xf32>
    %30 = arith.addf %27, %29 : vector<8x384xf32>
    %31 = vector.extract_strided_slice %30 {offsets = [0, 0], sizes = [8, 128], strides = [1, 1]} : vector<8x384xf32> to vector<8x128xf32>
    %c0_14 = arith.constant 0 : index
    %c0_15 = arith.constant 0 : index
    %32 = vector.load %arg6[%c0_14, %c0_15] : memref<8x128xf32, #tpu.memory_space<vmem>>, vector<8x128xf32>
    tpu.vector_store %arg6[%c0_14, %c0_15], %31 {strides = array<i32>} : memref<8x128xf32, #tpu.memory_space<vmem>>, vector<8x128xf32>,
    %33 = vector.extract_strided_slice %30 {offsets = [0, 128], sizes = [8, 128], strides = [1, 1]} : vector<8x384xf32> to vector<8x128xf32>
    %c0_16 = arith.constant 0 : index
    %c0_17 = arith.constant 0 : index
    %34 = vector.load %arg7[%c0_16, %c0_17] : memref<8x128xf32, #tpu.memory_space<vmem>>, vector<8x128xf32>
    tpu.vector_store %arg7[%c0_16, %c0_17], %33 {strides = array<i32>} : memref<8x128xf32, #tpu.memory_space<vmem>>, vector<8x128xf32>,
    %35 = vector.extract_strided_slice %30 {offsets = [0, 256], sizes = [8, 128], strides = [1, 1]} : vector<8x384xf32> to vector<8x128xf32>
    %c0_18 = arith.constant 0 : index
    %c0_19 = arith.constant 0 : index
    %36 = vector.load %arg8[%c0_18, %c0_19] : memref<8x128xf32, #tpu.memory_space<vmem>>, vector<8x128xf32>
    tpu.vector_store %arg8[%c0_18, %c0_19], %35 {strides = array<i32>} : memref<8x128xf32, #tpu.memory_space<vmem>>, vector<8x128xf32>,
    return
  }
  func.func @transform_0(%arg0: i32) -> (i32, i32) {
    %c0_i32 = arith.constant 0 : i32
    %c0_i32_0 = arith.constant 0 : i32
    return %arg0, %c0_i32 : i32, i32
  }
  func.func @transform_1(%arg0: i32) -> (i32, i32) {
    %c0_i32 = arith.constant 0 : i32
    %c0_i32_0 = arith.constant 0 : i32
    %c0_i32_1 = arith.constant 0 : i32
    return %c0_i32, %c0_i32_0 : i32, i32
  }
  func.func @transform_2(%arg0: i32) -> (i32, i32) {
    %c0_i32 = arith.constant 0 : i32
    %c0_i32_0 = arith.constant 0 : i32
    %c0_i32_1 = arith.constant 0 : i32
    return %c0_i32, %c0_i32_0 : i32, i32
  }
  func.func @transform_3(%arg0: i32) -> (i32, i32) {
    %c0_i32 = arith.constant 0 : i32
    %c0_i32_0 = arith.constant 0 : i32
    %c0_i32_1 = arith.constant 0 : i32
    return %c0_i32, %c0_i32_0 : i32, i32
  }
  func.func @transform_4(%arg0: i32) -> (i32, i32) {
    %c0_i32 = arith.constant 0 : i32
    %c0_i32_0 = arith.constant 0 : i32
    %c0_i32_1 = arith.constant 0 : i32
    return %c0_i32, %c0_i32_0 : i32, i32
  }
  func.func @transform_5(%arg0: i32) -> (i32, i32) {
    %c0_i32 = arith.constant 0 : i32
    %c0_i32_0 = arith.constant 0 : i32
    return %arg0, %c0_i32 : i32, i32
  }
  func.func @transform_6(%arg0: i32) -> (i32, i32) {
    %c0_i32 = arith.constant 0 : i32
    %c0_i32_0 = arith.constant 0 : i32
    return %arg0, %c0_i32 : i32, i32
  }
  func.func @transform_7(%arg0: i32) -> (i32, i32) {
    %c0_i32 = arith.constant 0 : i32
    %c0_i32_0 = arith.constant 0 : i32
    return %arg0, %c0_i32 : i32, i32
  }
}

module attributes {stable_mosaic.version = 11 : i64} {
  func.func @kernel(%arg0: i32, %arg1: memref<8x128xf32, #tpu.memory_space<vmem>>, %arg2: memref<1x128xf32, #tpu.memory_space<vmem>>, %arg3: memref<1x128xf32, #tpu.memory_space<vmem>>, %arg4: memref<128x256xbf16, #tpu.memory_space<vmem>>, %arg5: memref<1x256xf32, #tpu.memory_space<vmem>>, %arg6: memref<256x128xbf16, #tpu.memory_space<vmem>>, %arg7: memref<1x128xf32, #tpu.memory_space<vmem>>, %arg8: memref<8x128xf32, #tpu.memory_space<vmem>>) attributes {dimension_semantics = [#tpu.dimension_semantics<parallel>], iteration_bounds = array<i64: 2>, scalar_prefetch = 0 : i64, scratch_operands = 0 : i64, tpu.core_type = #tpu.core_type<tc>, window_params = [{transform_indices = @transform_0, window_bounds = array<i64: 8, 128>}, {pipeline_mode = #tpu.pipeline_mode<synchronous>, transform_indices = @transform_1, window_bounds = array<i64: 1, 128>}, {pipeline_mode = #tpu.pipeline_mode<synchronous>, transform_indices = @transform_2, window_bounds = array<i64: 1, 128>}, {pipeline_mode = #tpu.pipeline_mode<synchronous>, transform_indices = @transform_3, window_bounds = array<i64: 128, 256>}, {pipeline_mode = #tpu.pipeline_mode<synchronous>, transform_indices = @transform_4, window_bounds = array<i64: 1, 256>}, {pipeline_mode = #tpu.pipeline_mode<synchronous>, transform_indices = @transform_5, window_bounds = array<i64: 256, 128>}, {pipeline_mode = #tpu.pipeline_mode<synchronous>, transform_indices = @transform_6, window_bounds = array<i64: 1, 128>}, {transform_indices = @transform_7, window_bounds = array<i64: 8, 128>}]} {
    %c0 = arith.constant 0 : index
    %c0_0 = arith.constant 0 : index
    %0 = vector.load %arg1[%c0, %c0_0] : memref<8x128xf32, #tpu.memory_space<vmem>>, vector<8x128xf32>
    %c0_1 = arith.constant 0 : index
    %c0_2 = arith.constant 0 : index
    %1 = vector.load %arg2[%c0_1, %c0_2] : memref<1x128xf32, #tpu.memory_space<vmem>>, vector<1x128xf32>
    %c0_3 = arith.constant 0 : index
    %c0_4 = arith.constant 0 : index
    %2 = vector.load %arg3[%c0_3, %c0_4] : memref<1x128xf32, #tpu.memory_space<vmem>>, vector<1x128xf32>
    %cst = arith.constant dense<0.000000e+00> : vector<8xf32>
    %3 = vector.multi_reduction <add>, %0, %cst [1] : vector<8x128xf32> to vector<8xf32>
    %4 = vector.shape_cast %3 : vector<8xf32> to vector<8x1xf32>
    %cst_5 = arith.constant 1.280000e+02 : f32
    %5 = vector.broadcast %cst_5 : f32 to vector<8x1xf32>
    %6 = arith.divf %4, %5 : vector<8x1xf32>
    %7 = vector.broadcast %6 : vector<8x1xf32> to vector<8x128xf32>
    %8 = arith.subf %0, %7 : vector<8x128xf32>
    %9 = arith.mulf %8, %8 : vector<8x128xf32>
    %cst_6 = arith.constant dense<0.000000e+00> : vector<8xf32>
    %10 = vector.multi_reduction <add>, %9, %cst_6 [1] : vector<8x128xf32> to vector<8xf32>
    %11 = vector.shape_cast %10 : vector<8xf32> to vector<8x1xf32>
    %cst_7 = arith.constant 1.270000e+02 : f32
    %12 = vector.broadcast %cst_7 : f32 to vector<8x1xf32>
    %13 = arith.divf %11, %12 : vector<8x1xf32>
    %14 = vector.broadcast %6 : vector<8x1xf32> to vector<8x128xf32>
    %15 = arith.subf %0, %14 : vector<8x128xf32>
    %16 = vector.broadcast %1 : vector<1x128xf32> to vector<8x128xf32>
    %17 = arith.mulf %16, %15 : vector<8x128xf32>
    %18 = math.sqrt %13 : vector<8x1xf32>
    %cst_8 = arith.constant 9.99999997E-7 : f32
    %19 = vector.broadcast %cst_8 : f32 to vector<8x1xf32>
    %20 = arith.addf %18, %19 : vector<8x1xf32>
    %21 = vector.broadcast %20 : vector<8x1xf32> to vector<8x128xf32>
    %22 = arith.divf %17, %21 : vector<8x128xf32>
    %23 = vector.broadcast %2 : vector<1x128xf32> to vector<8x128xf32>
    %24 = arith.addf %22, %23 : vector<8x128xf32>
    %25 = arith.truncf %24 : vector<8x128xf32> to vector<8x128xbf16>
    %c0_9 = arith.constant 0 : index
    %c0_10 = arith.constant 0 : index
    %26 = vector.load %arg4[%c0_9, %c0_10] : memref<128x256xbf16, #tpu.memory_space<vmem>>, vector<128x256xbf16>
    %cst_11 = arith.constant dense<0.000000e+00> : vector<8x256xf32>
    %27 = tpu.matmul %25, %26, %cst_11 {dimension_numbers = #tpu.dot_dimension_numbers<[1], [0], [0], [1], [0, 0, 1, 1], [], []>} : vector<8x128xbf16>, vector<128x256xbf16>, vector<8x256xf32> -> vector<8x256xf32>
    %c0_12 = arith.constant 0 : index
    %c0_13 = arith.constant 0 : index
    %28 = vector.load %arg5[%c0_12, %c0_13] : memref<1x256xf32, #tpu.memory_space<vmem>>, vector<1x256xf32>
    %29 = vector.broadcast %28 : vector<1x256xf32> to vector<8x256xf32>
    %30 = arith.addf %27, %29 : vector<8x256xf32>
    %cst_14 = arith.constant 0.000000e+00 : f32
    %31 = vector.broadcast %cst_14 : f32 to vector<8x256xf32>
    %32 = arith.maximumf %30, %31 : vector<8x256xf32>
    %33 = arith.truncf %32 : vector<8x256xf32> to vector<8x256xbf16>
    %c0_15 = arith.constant 0 : index
    %c0_16 = arith.constant 0 : index
    %34 = vector.load %arg6[%c0_15, %c0_16] : memref<256x128xbf16, #tpu.memory_space<vmem>>, vector<256x128xbf16>
    %cst_17 = arith.constant dense<0.000000e+00> : vector<8x128xf32>
    %35 = tpu.matmul %33, %34, %cst_17 {dimension_numbers = #tpu.dot_dimension_numbers<[1], [0], [0], [1], [0, 0, 1, 1], [], []>} : vector<8x256xbf16>, vector<256x128xbf16>, vector<8x128xf32> -> vector<8x128xf32>
    %c0_18 = arith.constant 0 : index
    %c0_19 = arith.constant 0 : index
    %36 = vector.load %arg7[%c0_18, %c0_19] : memref<1x128xf32, #tpu.memory_space<vmem>>, vector<1x128xf32>
    %37 = vector.broadcast %36 : vector<1x128xf32> to vector<8x128xf32>
    %38 = arith.addf %35, %37 : vector<8x128xf32>
    %39 = arith.addf %0, %38 : vector<8x128xf32>
    %c0_20 = arith.constant 0 : index
    %c0_21 = arith.constant 0 : index
    %40 = vector.load %arg8[%c0_20, %c0_21] : memref<8x128xf32, #tpu.memory_space<vmem>>, vector<8x128xf32>
    tpu.vector_store %arg8[%c0_20, %c0_21], %39 {strides = array<i32>} : memref<8x128xf32, #tpu.memory_space<vmem>>, vector<8x128xf32>,
    return
  }
  func.func @transform_0(%arg0: i32) -> (i32, i32) {
    %c0_i32 = arith.constant 0 : i32
    %c0_i32_0 = arith.constant 0 : i32
    return %arg0, %c0_i32 : i32, i32
  }
  func.func @transform_1(%arg0: i32) -> (i32, i32) {
    %c0_i32 = arith.constant 0 : i32
    %c0_i32_0 = arith.constant 0 : i32
    %c0_i32_1 = arith.constant 0 : i32
    return %c0_i32, %c0_i32_0 : i32, i32
  }
  func.func @transform_2(%arg0: i32) -> (i32, i32) {
    %c0_i32 = arith.constant 0 : i32
    %c0_i32_0 = arith.constant 0 : i32
    %c0_i32_1 = arith.constant 0 : i32
    return %c0_i32, %c0_i32_0 : i32, i32
  }
  func.func @transform_3(%arg0: i32) -> (i32, i32) {
    %c0_i32 = arith.constant 0 : i32
    %c0_i32_0 = arith.constant 0 : i32
    %c0_i32_1 = arith.constant 0 : i32
    return %c0_i32, %c0_i32_0 : i32, i32
  }
  func.func @transform_4(%arg0: i32) -> (i32, i32) {
    %c0_i32 = arith.constant 0 : i32
    %c0_i32_0 = arith.constant 0 : i32
    %c0_i32_1 = arith.constant 0 : i32
    return %c0_i32, %c0_i32_0 : i32, i32
  }
  func.func @transform_5(%arg0: i32) -> (i32, i32) {
    %c0_i32 = arith.constant 0 : i32
    %c0_i32_0 = arith.constant 0 : i32
    %c0_i32_1 = arith.constant 0 : i32
    return %c0_i32, %c0_i32_0 : i32, i32
  }
  func.func @transform_6(%arg0: i32) -> (i32, i32) {
    %c0_i32 = arith.constant 0 : i32
    %c0_i32_0 = arith.constant 0 : i32
    %c0_i32_1 = arith.constant 0 : i32
    return %c0_i32, %c0_i32_0 : i32, i32
  }
  func.func @transform_7(%arg0: i32) -> (i32, i32) {
    %c0_i32 = arith.constant 0 : i32
    %c0_i32_0 = arith.constant 0 : i32
    return %arg0, %c0_i32 : i32, i32
  }
}

module attributes {stable_mosaic.version = 11 : i64} {
  func.func @kernel(%arg0: i32, %arg1: memref<1x8x128xf32, #tpu.memory_space<vmem>>, %arg2: memref<8x128xf32, #tpu.memory_space<vmem>>, %arg3: memref<1x8x128xf32, #tpu.memory_space<vmem>>) attributes {dimension_semantics = [#tpu.dimension_semantics<parallel>], iteration_bounds = array<i64: 2>, scalar_prefetch = 0 : i64, scratch_operands = 0 : i64, tpu.core_type = #tpu.core_type<tc>, window_params = [{transform_indices = @transform_0, window_bounds = array<i64: 1, 8, 128>}, {pipeline_mode = #tpu.pipeline_mode<synchronous>, transform_indices = @transform_1, window_bounds = array<i64: 8, 128>}, {transform_indices = @transform_2, window_bounds = array<i64: 1, 8, 128>}]} {
    %c0 = arith.constant 0 : index
    %c0_0 = arith.constant 0 : index
    %c0_1 = arith.constant 0 : index
    %0 = vector.load %arg1[%c0, %c0_0, %c0_1] : memref<1x8x128xf32, #tpu.memory_space<vmem>>, vector<1x8x128xf32>
    %1 = vector.shape_cast %0 : vector<1x8x128xf32> to vector<8x128xf32>
    %cst = arith.constant 11.3137083 : f32
    %2 = vector.broadcast %cst : f32 to vector<8x128xf32>
    %3 = arith.mulf %1, %2 : vector<8x128xf32>
    %c0_2 = arith.constant 0 : index
    %c0_3 = arith.constant 0 : index
    %4 = vector.load %arg2[%c0_2, %c0_3] : memref<8x128xf32, #tpu.memory_space<vmem>>, vector<8x128xf32>
    %5 = arith.addf %3, %4 : vector<8x128xf32>
    %c0_4 = arith.constant 0 : index
    %c0_5 = arith.constant 0 : index
    %c0_6 = arith.constant 0 : index
    %6 = vector.load %arg3[%c0_4, %c0_5, %c0_6] : memref<1x8x128xf32, #tpu.memory_space<vmem>>, vector<1x8x128xf32>
    %7 = vector.shape_cast %6 : vector<1x8x128xf32> to vector<8x128xf32>
    %8 = vector.shape_cast %5 : vector<8x128xf32> to vector<1x8x128xf32>
    tpu.vector_store %arg3[%c0_4, %c0_5, %c0_6], %8 {strides = array<i32>} : memref<1x8x128xf32, #tpu.memory_space<vmem>>, vector<1x8x128xf32>,
    return
  }
  func.func @transform_0(%arg0: i32) -> (i32, i32, i32) {
    %c0_i32 = arith.constant 0 : i32
    %c0_i32_0 = arith.constant 0 : i32
    %c0_i32_1 = arith.constant 0 : i32
    return %arg0, %c0_i32, %c0_i32_0 : i32, i32, i32
  }
  func.func @transform_1(%arg0: i32) -> (i32, i32) {
    %c0_i32 = arith.constant 0 : i32
    %c0_i32_0 = arith.constant 0 : i32
    %c0_i32_1 = arith.constant 0 : i32
    return %c0_i32, %c0_i32_0 : i32, i32
  }
  func.func @transform_2(%arg0: i32) -> (i32, i32, i32) {
    %c0_i32 = arith.constant 0 : i32
    %c0_i32_0 = arith.constant 0 : i32
    %c0_i32_1 = arith.constant 0 : i32
    return %arg0, %c0_i32, %c0_i32_0 : i32, i32, i32
  }
}

module attributes {stable_mosaic.version = 11 : i64} {
  func.func @kernel(%arg0: i32, %arg1: i32, %arg2: memref<1x8x128xf32, #tpu.memory_space<vmem>>, %arg3: memref<1x8x128xf32, #tpu.memory_space<vmem>>, %arg4: memref<1x8x128xf32, #tpu.memory_space<vmem>>, %arg5: memref<1x8x128xf32, #tpu.memory_space<vmem>>, %arg6: memref<4x32x128xbf16, #tpu.memory_space<vmem>>, %arg7: memref<1x128xf32, #tpu.memory_space<vmem>>, %arg8: memref<8x8xf32, #tpu.memory_space<vmem>>, %arg9: memref<1x8x128xf32, #tpu.memory_space<vmem>>) attributes {dimension_semantics = [#tpu.dimension_semantics<parallel>, #tpu.dimension_semantics<parallel>], iteration_bounds = array<i64: 2, 1>, scalar_prefetch = 0 : i64, scratch_operands = 0 : i64, tpu.core_type = #tpu.core_type<tc>, window_params = [{transform_indices = @transform_0, window_bounds = array<i64: 1, 8, 128>}, {transform_indices = @transform_1, window_bounds = array<i64: 1, 8, 128>}, {transform_indices = @transform_2, window_bounds = array<i64: 1, 8, 128>}, {transform_indices = @transform_3, window_bounds = array<i64: 1, 8, 128>}, {pipeline_mode = #tpu.pipeline_mode<synchronous>, transform_indices = @transform_4, window_bounds = array<i64: 4, 32, 128>}, {pipeline_mode = #tpu.pipeline_mode<synchronous>, transform_indices = @transform_5, window_bounds = array<i64: 1, 128>}, {transform_indices = @transform_6, window_bounds = array<i64: 8, 8>}, {transform_indices = @transform_7, window_bounds = array<i64: 1, 8, 128>}]} {
    %c0 = arith.constant 0 : index
    %c0_0 = arith.constant 0 : index
    %c0_1 = arith.constant 0 : index
    %0 = vector.load %arg2[%c0, %c0_0, %c0_1] : memref<1x8x128xf32, #tpu.memory_space<vmem>>, vector<1x8x128xf32>
    %1 = vector.shape_cast %0 : vector<1x8x128xf32> to vector<8x128xf32>
    %c0_2 = arith.constant 0 : index
    %c0_3 = arith.constant 0 : index
    %c0_4 = arith.constant 0 : index
    %2 = vector.load %arg3[%c0_2, %c0_3, %c0_4] : memref<1x8x128xf32, #tpu.memory_space<vmem>>, vector<1x8x128xf32>
    %3 = vector.shape_cast %2 : vector<1x8x128xf32> to vector<8x128xf32>
    %c0_5 = arith.constant 0 : index
    %c0_6 = arith.constant 0 : index
    %c0_7 = arith.constant 0 : index
    %4 = vector.load %arg4[%c0_5, %c0_6, %c0_7] : memref<1x8x128xf32, #tpu.memory_space<vmem>>, vector<1x8x128xf32>
    %5 = vector.shape_cast %4 : vector<1x8x128xf32> to vector<8x128xf32>
    %c0_8 = arith.constant 0 : index
    %c0_9 = arith.constant 0 : index
    %c0_10 = arith.constant 0 : index
    %6 = vector.load %arg5[%c0_8, %c0_9, %c0_10] : memref<1x8x128xf32, #tpu.memory_space<vmem>>, vector<1x8x128xf32>
    %7 = vector.shape_cast %6 : vector<1x8x128xf32> to vector<8x128xf32>
    %c0_11 = arith.constant 0 : index
    %c0_12 = arith.constant 0 : index
    %8 = vector.load %arg8[%c0_11, %c0_12] : memref<8x8xf32, #tpu.memory_space<vmem>>, vector<8x8xf32>
    %cst = arith.constant 5.000000e-01 : f32
    %9 = vector.broadcast %cst : f32 to vector<8x8xf32>
    %10 = arith.cmpf oge, %8, %9 : vector<8x8xf32>
    %11 = vector.extract_strided_slice %3 {offsets = [0, 0], sizes = [8, 32], strides = [1, 1]} : vector<8x128xf32> to vector<8x32xf32>
    %12 = vector.extract_strided_slice %3 {offsets = [0, 32], sizes = [8, 32], strides = [1, 1]} : vector<8x128xf32> to vector<8x32xf32>
    %13 = vector.extract_strided_slice %3 {offsets = [0, 64], sizes = [8, 32], strides = [1, 1]} : vector<8x128xf32> to vector<8x32xf32>
    %14 = vector.extract_strided_slice %3 {offsets = [0, 96], sizes = [8, 32], strides = [1, 1]} : vector<8x128xf32> to vector<8x32xf32>
    %15 = vector.shape_cast %11 : vector<8x32xf32> to vector<1x8x32xf32>
    %16 = vector.shape_cast %12 : vector<8x32xf32> to vector<1x8x32xf32>
    %17 = vector.shape_cast %13 : vector<8x32xf32> to vector<1x8x32xf32>
    %18 = vector.shape_cast %14 : vector<8x32xf32> to vector<1x8x32xf32>
    %19 = tpu.concatenate %15, %16, %17, %18 in 0 : vector<1x8x32xf32>, vector<1x8x32xf32>, vector<1x8x32xf32>, vector<1x8x32xf32> -> vector<4x8x32xf32>
    %20 = vector.extract_strided_slice %5 {offsets = [0, 0], sizes = [8, 32], strides = [1, 1]} : vector<8x128xf32> to vector<8x32xf32>
    %21 = vector.extract_strided_slice %5 {offsets = [0, 32], sizes = [8, 32], strides = [1, 1]} : vector<8x128xf32> to vector<8x32xf32>
    %22 = vector.extract_strided_slice %5 {offsets = [0, 64], sizes = [8, 32], strides = [1, 1]} : vector<8x128xf32> to vector<8x32xf32>
    %23 = vector.extract_strided_slice %5 {offsets = [0, 96], sizes = [8, 32], strides = [1, 1]} : vector<8x128xf32> to vector<8x32xf32>
    %24 = vector.shape_cast %20 : vector<8x32xf32> to vector<1x8x32xf32>
    %25 = vector.shape_cast %21 : vector<8x32xf32> to vector<1x8x32xf32>
    %26 = vector.shape_cast %22 : vector<8x32xf32> to vector<1x8x32xf32>
    %27 = vector.shape_cast %23 : vector<8x32xf32> to vector<1x8x32xf32>
    %28 = tpu.concatenate %24, %25, %26, %27 in 0 : vector<1x8x32xf32>, vector<1x8x32xf32>, vector<1x8x32xf32>, vector<1x8x32xf32> -> vector<4x8x32xf32>
    %29 = vector.extract_strided_slice %7 {offsets = [0, 0], sizes = [8, 32], strides = [1, 1]} : vector<8x128xf32> to vector<8x32xf32>
    %30 = vector.extract_strided_slice %7 {offsets = [0, 32], sizes = [8, 32], strides = [1, 1]} : vector<8x128xf32> to vector<8x32xf32>
    %31 = vector.extract_strided_slice %7 {offsets = [0, 64], sizes = [8, 32], strides = [1, 1]} : vector<8x128xf32> to vector<8x32xf32>
    %32 = vector.extract_strided_slice %7 {offsets = [0, 96], sizes = [8, 32], strides = [1, 1]} : vector<8x128xf32> to vector<8x32xf32>
    %33 = vector.shape_cast %29 : vector<8x32xf32> to vector<1x8x32xf32>
    %34 = vector.shape_cast %30 : vector<8x32xf32> to vector<1x8x32xf32>
    %35 = vector.shape_cast %31 : vector<8x32xf32> to vector<1x8x32xf32>
    %36 = vector.shape_cast %32 : vector<8x32xf32> to vector<1x8x32xf32>
    %37 = tpu.concatenate %33, %34, %35, %36 in 0 : vector<1x8x32xf32>, vector<1x8x32xf32>, vector<1x8x32xf32>, vector<1x8x32xf32> -> vector<4x8x32xf32>
    %38 = arith.truncf %37 : vector<4x8x32xf32> to vector<4x8x32xbf16>
    %39 = arith.mulf %19, %19 : vector<4x8x32xf32>
    %cst_13 = arith.constant dense<0.000000e+00> : vector<4x8xf32>
    %40 = vector.multi_reduction <add>, %39, %cst_13 [2] : vector<4x8x32xf32> to vector<4x8xf32>
    %41 = vector.shape_cast %40 : vector<4x8xf32> to vector<4x8x1xf32>
    %cst_14 = arith.constant 1.000000e+00 : f32
    %42 = vector.broadcast %cst_14 : f32 to vector<4x1x32xf32>
    %43 = arith.mulf %28, %28 : vector<4x8x32xf32>
    "tpu.trace_start"() <{level = 10 : i32, message = "hod,hkd->hok"}> : () -> ()
    %cst_15 = arith.constant dense<0.000000e+00> : vector<4x1x8xf32>
    %44 = tpu.matmul %42, %43, %cst_15 {dimension_numbers = #tpu.dot_dimension_numbers<[2], [2], [1], [1], [0, 0, 0, 1, 1, 1], [0], [0]>} : vector<4x1x32xf32>, vector<4x8x32xf32>, vector<4x1x8xf32> -> vector<4x1x8xf32>
    "tpu.trace_stop"() : () -> ()
    %45 = arith.truncf %19 : vector<4x8x32xf32> to vector<4x8x32xbf16>
    %46 = arith.truncf %28 : vector<4x8x32xf32> to vector<4x8x32xbf16>
    "tpu.trace_start"() <{level = 10 : i32, message = "hqd,hkd->hqk"}> : () -> ()
    %cst_16 = arith.constant dense<0.000000e+00> : vector<4x8x8xf32>
    %47 = tpu.matmul %45, %46, %cst_16 {dimension_numbers = #tpu.dot_dimension_numbers<[2], [2], [1], [1], [0, 0, 0, 1, 1, 1], [0], [0]>} : vector<4x8x32xbf16>, vector<4x8x32xbf16>, vector<4x8x8xf32> -> vector<4x8x8xf32>
    "tpu.trace_stop"() : () -> ()
    %48 = vector.broadcast %41 : vector<4x8x1xf32> to vector<4x8x8xf32>
    %49 = vector.broadcast %44 : vector<4x1x8xf32> to vector<4x8x8xf32>
    %50 = arith.addf %48, %49 : vector<4x8x8xf32>
    %cst_17 = arith.constant 2.000000e+00 : f32
    %51 = vector.broadcast %cst_17 : f32 to vector<4x8x8xf32>
    %52 = arith.mulf %51, %47 : vector<4x8x8xf32>
    %53 = arith.subf %50, %52 : vector<4x8x8xf32>
    %cst_18 = arith.constant 0.000000e+00 : f32
    %54 = vector.broadcast %cst_18 : f32 to vector<4x8x8xf32>
    %55 = arith.maximumf %53, %54 : vector<4x8x8xf32>
    %56 = math.sqrt %55 : vector<4x8x8xf32>
    %57 = vector.shape_cast %10 : vector<8x8xi1> to vector<1x8x8xi1>
    %cst_19 = arith.constant 0.000000e+00 : f32
    %58 = vector.broadcast %cst_19 : f32 to vector<4x8x8xf32>
    %59 = arith.subf %58, %56 : vector<4x8x8xf32>
    %cst_20 = arith.constant -1.000000e+09 : f32
    %60 = vector.shape_cast %57 : vector<1x8x8xi1> to vector<1x8x8xi1>
    %61 = vector.broadcast %60 : vector<1x8x8xi1> to vector<4x8x8xi1>
    %62 = vector.broadcast %cst_20 : f32 to vector<4x8x8xf32>
    %63 = arith.select %61, %59, %62 : vector<4x8x8xi1>, vector<4x8x8xf32>
    %64 = math.exp %63 : vector<4x8x8xf32>
    %cst_21 = arith.constant dense<0.000000e+00> : vector<4x8xf32>
    %65 = vector.multi_reduction <add>, %64, %cst_21 [2] : vector<4x8x8xf32> to vector<4x8xf32>
    %66 = vector.shape_cast %65 : vector<4x8xf32> to vector<4x8x1xf32>
    %cst_22 = arith.constant 1.000000e-30 : f32
    %67 = vector.broadcast %cst_22 : f32 to vector<4x8x1xf32>
    %68 = arith.maximumf %66, %67 : vector<4x8x1xf32>
    %69 = tpu.reciprocal %68 {approx = true} : vector<4x8x1xf32> -> vector<4x8x1xf32>
    %70 = vector.broadcast %69 : vector<4x8x1xf32> to vector<4x8x8xf32>
    %71 = arith.mulf %64, %70 : vector<4x8x8xf32>
    %72 = arith.truncf %71 : vector<4x8x8xf32> to vector<4x8x8xbf16>
    "tpu.trace_start"() <{level = 10 : i32, message = "hqk,hkd->hqd"}> : () -> ()
    %cst_23 = arith.constant dense<0.000000e+00> : vector<4x8x32xf32>
    %73 = tpu.matmul %72, %38, %cst_23 {dimension_numbers = #tpu.dot_dimension_numbers<[2], [1], [1], [2], [0, 0, 0, 1, 1, 2], [0], [0]>} : vector<4x8x8xbf16>, vector<4x8x32xbf16>, vector<4x8x32xf32> -> vector<4x8x32xf32>
    "tpu.trace_stop"() : () -> ()
    %74 = arith.truncf %73 : vector<4x8x32xf32> to vector<4x8x32xbf16>
    %c0_24 = arith.constant 0 : index
    %c0_25 = arith.constant 0 : index
    %c0_26 = arith.constant 0 : index
    %75 = vector.load %arg6[%c0_24, %c0_25, %c0_26] : memref<4x32x128xbf16, #tpu.memory_space<vmem>>, vector<4x32x128xbf16>
    "tpu.trace_start"() <{level = 10 : i32, message = "hqd,hde->hqe"}> : () -> ()
    %cst_27 = arith.constant dense<0.000000e+00> : vector<4x8x128xf32>
    %76 = tpu.matmul %74, %75, %cst_27 {dimension_numbers = #tpu.dot_dimension_numbers<[2], [1], [1], [2], [0, 0, 0, 1, 1, 2], [0], [0]>} : vector<4x8x32xbf16>, vector<4x32x128xbf16>, vector<4x8x128xf32> -> vector<4x8x128xf32>
    "tpu.trace_stop"() : () -> ()
    %cst_28 = arith.constant dense<0.000000e+00> : vector<8x128xf32>
    %77 = vector.multi_reduction <add>, %76, %cst_28 [0] : vector<4x8x128xf32> to vector<8x128xf32>
    %78 = arith.addf %1, %77 : vector<8x128xf32>
    %c0_29 = arith.constant 0 : index
    %c0_30 = arith.constant 0 : index
    %79 = vector.load %arg7[%c0_29, %c0_30] : memref<1x128xf32, #tpu.memory_space<vmem>>, vector<1x128xf32>
    %80 = vector.broadcast %79 : vector<1x128xf32> to vector<8x128xf32>
    %81 = arith.addf %78, %80 : vector<8x128xf32>
    %c0_31 = arith.constant 0 : index
    %c0_32 = arith.constant 0 : index
    %c0_33 = arith.constant 0 : index
    %82 = vector.load %arg9[%c0_31, %c0_32, %c0_33] : memref<1x8x128xf32, #tpu.memory_space<vmem>>, vector<1x8x128xf32>
    %83 = vector.shape_cast %82 : vector<1x8x128xf32> to vector<8x128xf32>
    %84 = vector.shape_cast %81 : vector<8x128xf32> to vector<1x8x128xf32>
    tpu.vector_store %arg9[%c0_31, %c0_32, %c0_33], %84 {strides = array<i32>} : memref<1x8x128xf32, #tpu.memory_space<vmem>>, vector<1x8x128xf32>,
    return
  }
  func.func @transform_0(%arg0: i32, %arg1: i32) -> (i32, i32, i32) {
    %c0_i32 = arith.constant 0 : i32
    %c0_i32_0 = arith.constant 0 : i32
    return %arg0, %arg1, %c0_i32 : i32, i32, i32
  }
  func.func @transform_1(%arg0: i32, %arg1: i32) -> (i32, i32, i32) {
    %c0_i32 = arith.constant 0 : i32
    %c0_i32_0 = arith.constant 0 : i32
    return %arg0, %arg1, %c0_i32 : i32, i32, i32
  }
  func.func @transform_2(%arg0: i32, %arg1: i32) -> (i32, i32, i32) {
    %c0_i32 = arith.constant 0 : i32
    %c0_i32_0 = arith.constant 0 : i32
    %c0_i32_1 = arith.constant 0 : i32
    return %arg0, %c0_i32, %c0_i32_0 : i32, i32, i32
  }
  func.func @transform_3(%arg0: i32, %arg1: i32) -> (i32, i32, i32) {
    %c0_i32 = arith.constant 0 : i32
    %c0_i32_0 = arith.constant 0 : i32
    %c0_i32_1 = arith.constant 0 : i32
    return %arg0, %c0_i32, %c0_i32_0 : i32, i32, i32
  }
  func.func @transform_4(%arg0: i32, %arg1: i32) -> (i32, i32, i32) {
    %c0_i32 = arith.constant 0 : i32
    %c0_i32_0 = arith.constant 0 : i32
    %c0_i32_1 = arith.constant 0 : i32
    %c0_i32_2 = arith.constant 0 : i32
    return %c0_i32, %c0_i32_0, %c0_i32_1 : i32, i32, i32
  }
  func.func @transform_5(%arg0: i32, %arg1: i32) -> (i32, i32) {
    %c0_i32 = arith.constant 0 : i32
    %c0_i32_0 = arith.constant 0 : i32
    %c0_i32_1 = arith.constant 0 : i32
    return %c0_i32, %c0_i32_0 : i32, i32
  }
  func.func @transform_6(%arg0: i32, %arg1: i32) -> (i32, i32) {
    %c0_i32 = arith.constant 0 : i32
    %c0_i32_0 = arith.constant 0 : i32
    return %arg1, %c0_i32 : i32, i32
  }
  func.func @transform_7(%arg0: i32, %arg1: i32) -> (i32, i32, i32) {
    %c0_i32 = arith.constant 0 : i32
    %c0_i32_0 = arith.constant 0 : i32
    return %arg0, %arg1, %c0_i32 : i32, i32, i32
  }
}

module attributes {stable_mosaic.version = 11 : i64} {
  func.func @kernel(%arg0: i32, %arg1: i32, %arg2: memref<8x128xf32, #tpu.memory_space<vmem>>, %arg3: memref<1x128xf32, #tpu.memory_space<vmem>>, %arg4: memref<1x128xf32, #tpu.memory_space<vmem>>, %arg5: memref<128x128xbf16, #tpu.memory_space<vmem>>, %arg6: memref<1x128xf32, #tpu.memory_space<vmem>>, %arg7: memref<8x128xf32, #tpu.memory_space<vmem>>, %arg8: memref<8x128xbf16, #tpu.memory_space<vmem>>) attributes {dimension_semantics = [#tpu.dimension_semantics<parallel>, #tpu.dimension_semantics<arbitrary>], iteration_bounds = array<i64: 2, 1>, scalar_prefetch = 0 : i64, scratch_operands = 1 : i64, tpu.core_type = #tpu.core_type<tc>, window_params = [{transform_indices = @transform_0, window_bounds = array<i64: 8, 128>}, {pipeline_mode = #tpu.pipeline_mode<synchronous>, transform_indices = @transform_1, window_bounds = array<i64: 1, 128>}, {pipeline_mode = #tpu.pipeline_mode<synchronous>, transform_indices = @transform_2, window_bounds = array<i64: 1, 128>}, {transform_indices = @transform_3, window_bounds = array<i64: 128, 128>}, {transform_indices = @transform_4, window_bounds = array<i64: 1, 128>}, {transform_indices = @transform_5, window_bounds = array<i64: 8, 128>}]} {
    %c0_i32 = arith.constant 0 : i32
    %0 = arith.cmpi eq, %arg1, %c0_i32 : i32
    %1 = arith.extui %0 : i1 to i32
    %c0_i32_0 = arith.constant 0 : i32
    %2 = arith.cmpi ne, %1, %c0_i32_0 : i32
    scf.if %2 {
      %c0_8 = arith.constant 0 : index
      %c0_9 = arith.constant 0 : index
      %10 = vector.load %arg2[%c0_8, %c0_9] : memref<8x128xf32, #tpu.memory_space<vmem>>, vector<8x128xf32>
      %c0_10 = arith.constant 0 : index
      %c0_11 = arith.constant 0 : index
      %11 = vector.load %arg3[%c0_10, %c0_11] : memref<1x128xf32, #tpu.memory_space<vmem>>, vector<1x128xf32>
      %c0_12 = arith.constant 0 : index
      %c0_13 = arith.constant 0 : index
      %12 = vector.load %arg4[%c0_12, %c0_13] : memref<1x128xf32, #tpu.memory_space<vmem>>, vector<1x128xf32>
      %cst_14 = arith.constant dense<0.000000e+00> : vector<8xf32>
      %13 = vector.multi_reduction <add>, %10, %cst_14 [1] : vector<8x128xf32> to vector<8xf32>
      %14 = vector.shape_cast %13 : vector<8xf32> to vector<8x1xf32>
      %cst_15 = arith.constant 1.280000e+02 : f32
      %15 = vector.broadcast %cst_15 : f32 to vector<8x1xf32>
      %16 = arith.divf %14, %15 : vector<8x1xf32>
      %17 = vector.broadcast %16 : vector<8x1xf32> to vector<8x128xf32>
      %18 = arith.subf %10, %17 : vector<8x128xf32>
      %19 = arith.mulf %18, %18 : vector<8x128xf32>
      %cst_16 = arith.constant dense<0.000000e+00> : vector<8xf32>
      %20 = vector.multi_reduction <add>, %19, %cst_16 [1] : vector<8x128xf32> to vector<8xf32>
      %21 = vector.shape_cast %20 : vector<8xf32> to vector<8x1xf32>
      %cst_17 = arith.constant 1.270000e+02 : f32
      %22 = vector.broadcast %cst_17 : f32 to vector<8x1xf32>
      %23 = arith.divf %21, %22 : vector<8x1xf32>
      %24 = vector.broadcast %16 : vector<8x1xf32> to vector<8x128xf32>
      %25 = arith.subf %10, %24 : vector<8x128xf32>
      %26 = vector.broadcast %11 : vector<1x128xf32> to vector<8x128xf32>
      %27 = arith.mulf %26, %25 : vector<8x128xf32>
      %28 = math.sqrt %23 : vector<8x1xf32>
      %cst_18 = arith.constant 9.99999997E-7 : f32
      %29 = vector.broadcast %cst_18 : f32 to vector<8x1xf32>
      %30 = arith.addf %28, %29 : vector<8x1xf32>
      %31 = vector.broadcast %30 : vector<8x1xf32> to vector<8x128xf32>
      %32 = arith.divf %27, %31 : vector<8x128xf32>
      %33 = vector.broadcast %12 : vector<1x128xf32> to vector<8x128xf32>
      %34 = arith.addf %32, %33 : vector<8x128xf32>
      %35 = arith.truncf %34 : vector<8x128xf32> to vector<8x128xbf16>
      %c0_19 = arith.constant 0 : index
      %c0_20 = arith.constant 0 : index
      %36 = vector.load %arg8[%c0_19, %c0_20] : memref<8x128xbf16, #tpu.memory_space<vmem>>, vector<8x128xbf16>
      tpu.vector_store %arg8[%c0_19, %c0_20], %35 {strides = array<i32>} : memref<8x128xbf16, #tpu.memory_space<vmem>>, vector<8x128xbf16>,
    } else {
    }
    %c0 = arith.constant 0 : index
    %c0_1 = arith.constant 0 : index
    %3 = vector.load %arg8[%c0, %c0_1] : memref<8x128xbf16, #tpu.memory_space<vmem>>, vector<8x128xbf16>
    %c0_2 = arith.constant 0 : index
    %c0_3 = arith.constant 0 : index
    %4 = vector.load %arg5[%c0_2, %c0_3] : memref<128x128xbf16, #tpu.memory_space<vmem>>, vector<128x128xbf16>
    %cst = arith.constant dense<0.000000e+00> : vector<8x128xf32>
    %5 = tpu.matmul %3, %4, %cst {dimension_numbers = #tpu.dot_dimension_numbers<[1], [0], [0], [1], [0, 0, 1, 1], [], []>} : vector<8x128xbf16>, vector<128x128xbf16>, vector<8x128xf32> -> vector<8x128xf32>
    %c0_4 = arith.constant 0 : index
    %c0_5 = arith.constant 0 : index
    %6 = vector.load %arg6[%c0_4, %c0_5] : memref<1x128xf32, #tpu.memory_space<vmem>>, vector<1x128xf32>
    %7 = vector.broadcast %6 : vector<1x128xf32> to vector<8x128xf32>
    %8 = arith.addf %5, %7 : vector<8x128xf32>
    %c0_6 = arith.constant 0 : index
    %c0_7 = arith.constant 0 : index
    %9 = vector.load %arg7[%c0_6, %c0_7] : memref<8x128xf32, #tpu.memory_space<vmem>>, vector<8x128xf32>
    tpu.vector_store %arg7[%c0_6, %c0_7], %8 {strides = array<i32>} : memref<8x128xf32, #tpu.memory_space<vmem>>, vector<8x128xf32>,
    return
  }
  func.func @transform_0(%arg0: i32, %arg1: i32) -> (i32, i32) {
    %c0_i32 = arith.constant 0 : i32
    %c0_i32_0 = arith.constant 0 : i32
    return %arg0, %c0_i32 : i32, i32
  }
  func.func @transform_1(%arg0: i32, %arg1: i32) -> (i32, i32) {
    %c0_i32 = arith.constant 0 : i32
    %c0_i32_0 = arith.constant 0 : i32
    %c0_i32_1 = arith.constant 0 : i32
    return %c0_i32, %c0_i32_0 : i32, i32
  }
  func.func @transform_2(%arg0: i32, %arg1: i32) -> (i32, i32) {
    %c0_i32 = arith.constant 0 : i32
    %c0_i32_0 = arith.constant 0 : i32
    %c0_i32_1 = arith.constant 0 : i32
    return %c0_i32, %c0_i32_0 : i32, i32
  }
  func.func @transform_3(%arg0: i32, %arg1: i32) -> (i32, i32) {
    %c0_i32 = arith.constant 0 : i32
    %c0_i32_0 = arith.constant 0 : i32
    return %c0_i32, %arg1 : i32, i32
  }
  func.func @transform_4(%arg0: i32, %arg1: i32) -> (i32, i32) {
    %c0_i32 = arith.constant 0 : i32
    %c0_i32_0 = arith.constant 0 : i32
    return %c0_i32, %arg1 : i32, i32
  }
  func.func @transform_5(%arg0: i32, %arg1: i32) -> (i32, i32) {
    %c0_i32 = arith.constant 0 : i32
    return %arg0, %arg1 : i32, i32
  }
}

</mosaic_0001>

<llo_original>
// kernel: _lambda_.8
$region0: #{_lambda_.8}
  #allocation0 [shape = 'u32[]', space=smem, size = 0x4, offset = 0x4, fixed_abs, tag = 'smem constant byte address 0x4 - core index']
  #allocation1 [shape = 'u32[144,128]{1,0:T(1,128)}', space=vmem, size = 0x12000, scoped, tag = 'internal scratch']
  %s0 = inlined_call_operand.vmem [shape: f32[2,8,128], index: 0, kind: input, shape index: {}]
  %s1 = inlined_call_operand.vmem [shape: f32[8,128], index: 1, kind: input, shape index: {}]
  %s2 = inlined_call_operand.vmem [shape: f32[2,8,128], index: 2, kind: output, shape index: {}]
  %s3 = sld [smem:[#allocation0]]
  $region41: #{_lambda_.8} parent=0
    _
  %s5 = ssub.s32 1, %s3
  %s6 = scalar_select 0, %s5, %s3
  loop: start=0, step=1, limit=4
  $region2: #{_lambda_.8} parent=0 // loop_pre_header
    _
  $region3: #{_lambda_.8} parent=0 // loop_header
    %s8 = sphi 0, %s12
    %p9 = scmp.ge.s32.totalorder %s8, 4
    %s18 = sphi 0, %s20
    %s21 = sphi 0, %s18
    %s22 = sphi 0, %s21
    %s38 = sphi 0, %s22
    %s42 = sphi 0, %s42
    %s44 = sphi 0, %s42
    %s45 = sphi 0, %s44
    %s59 = sphi 0, %s45
    %s65 = sphi 0, %s67
    %s68 = sphi 0, %s65
    %s69 = sphi 0, %s68
    %s85 = sphi 0, %s69
  $region4: #{_lambda_.8} parent=0 // loop_header_branch
    %11 = sbr.rel (%p9) target = $region8
  $region5: #{_lambda_.8} parent=0 // loop_body
    %s13 = ssub.s32 %s8, 1
    %s14 = ssub.s32 %s8, 2
    %s15 = sadd.s32 %s8, 1
    %s16 = ssub.s32 %s8, %s15
    %p17 = scmp.eq.s32.totalorder %s16, 0
    %s19 = sadd.s32 %s18, 1
    %s20 = scalar_select %p17, %s18, %s19
    %p23 = pneg %p17
    %p24 = scmp.eq.s32.totalorder %s8, 1
    %p25 = por %p23, %p24
    %p26 = scmp.ne.s32.totalorder %s18, %s21
    %p27 = scmp.eq.s32.totalorder %s8, 0
    %p28 = por %p26, %p27
    %p29 = scmp.ne.s32.totalorder %s18, %s21
    %p30 = scmp.eq.s32.totalorder %s13, 1
    %p31 = por %p29, %p30
    %p32 = scmp.ne.s32.totalorder %s21, %s22
    %p33 = scmp.eq.s32.totalorder %s13, 0
    %p34 = por %p32, %p33
    %p35 = scmp.ne.s32.totalorder %s21, %s22
    %p36 = scmp.eq.s32.totalorder %s14, 1
    %p37 = por %p35, %p36
    %p39 = scmp.ne.s32.totalorder %s22, %s38
    %p40 = scmp.eq.s32.totalorder %s14, 0
    %p41 = por %p39, %p40
    %s43 = sadd.s32 %s42, 1
    %p46 = scmp.eq.s32.totalorder %s8, 1
    %p47 = scmp.ne.s32.totalorder %s42, %s44
    %p48 = scmp.eq.s32.totalorder %s8, 0
    %p49 = por %p47, %p48
    %p50 = scmp.ne.s32.totalorder %s42, %s44
    %p51 = scmp.eq.s32.totalorder %s13, 1
    %p52 = por %p50, %p51
    %p53 = scmp.ne.s32.totalorder %s44, %s45
    %p54 = scmp.eq.s32.totalorder %s13, 0
    %p55 = por %p53, %p54
    %p56 = scmp.ne.s32.totalorder %s44, %s45
    %p57 = scmp.eq.s32.totalorder %s14, 1
    %p58 = por %p56, %p57
    %p60 = scmp.ne.s32.totalorder %s45, %s59
    %p61 = scmp.eq.s32.totalorder %s14, 0
    %p62 = por %p60, %p61
    %s63 = ssub.s32 %s8, %s15
    %p64 = scmp.eq.s32.totalorder %s63, 0
    %s66 = sadd.s32 %s65, 1
    %s67 = scalar_select %p64, %s65, %s66
    %p70 = pneg %p64
    %p71 = scmp.eq.s32.totalorder %s8, 1
    %p72 = por %p70, %p71
    %p73 = scmp.ne.s32.totalorder %s65, %s68
    %p74 = scmp.eq.s32.totalorder %s8, 0
    %p75 = por %p73, %p74
    %p76 = scmp.ne.s32.totalorder %s65, %s68
    %p77 = scmp.eq.s32.totalorder %s13, 1
    %p78 = por %p76, %p77
    %p79 = scmp.ne.s32.totalorder %s68, %s69
    %p80 = scmp.eq.s32.totalorder %s13, 0
    %p81 = por %p79, %p80
    %p82 = scmp.ne.s32.totalorder %s68, %s69
    %p83 = scmp.eq.s32.totalorder %s14, 1
    %p84 = por %p82, %p83
    %p86 = scmp.ne.s32.totalorder %s69, %s85
    %p87 = scmp.eq.s32.totalorder %s14, 0
    %p88 = por %p86, %p87
    %p89 = scmp.le.s32.totalorder 1, %s8
    %p90 = scmp.lt.s32.totalorder %s8, 3
    %p91 = pnand %p89, %p90
    %p92 = pneg %p91
    // Predicated region
    $region9: #{_lambda_.8} parent=5 // pred_check
      _
    $region10: #{_lambda_.8} parent=5 // pred_check_branch
      %94 = sbr.rel (%p91) target = $region12
    $region11: #{_lambda_.8} parent=5 // pred_region
      %s95 = ssub.s32 %s8, 1
      // Predicated region
      $region13: #{_lambda_.8} parent=11 // pred_check
        %p96 = pneg %p55
      $region14: #{_lambda_.8} parent=11 // pred_check_branch
        %98 = sbr.rel (%p96) target = $region16
      $region15: #{_lambda_.8} parent=11 // pred_region
        _
      $region16: #{_lambda_.8} parent=11 // pred_fallthru
        _
    $region12: #{_lambda_.8} parent=5 // pred_fallthru
      _
    %p99 = scmp.lt.s32.totalorder %s8, 2
    // Predicated region
    $region17: #{_lambda_.8} parent=5 // pred_check
      %p100 = pneg %p99
    $region18: #{_lambda_.8} parent=5 // pred_check_branch
      %102 = sbr.rel (%p100) target = $region20
    $region19: #{_lambda_.8} parent=5 // pred_region
      // Predicated region
      $region21: #{_lambda_.8} parent=19 // pred_check
        %p103 = pneg %p28
      $region22: #{_lambda_.8} parent=19 // pred_check_branch
        %105 = sbr.rel (%p103) target = $region24
      $region23: #{_lambda_.8} parent=19 // pred_region
        %p106 = scmp.lt.s32.totalorder %s8, 1
        %s107 = scalar_select %p106, %s8, 1
        %s108 = smul.addr %s107, 8
        %s109 = scalar_lea.vmem %s0, %s108
      $region24: #{_lambda_.8} parent=19 // pred_fallthru
        _
    $region20: #{_lambda_.8} parent=5 // pred_fallthru
      _
    %p110 = scmp.le.s32.totalorder 1, %s8
    %p111 = scmp.lt.s32.totalorder %s8, 3
    %p112 = pnand %p110, %p111
    %p113 = pneg %p112
    // Predicated region
    $region25: #{_lambda_.8} parent=5 // pred_check
      _
    $region26: #{_lambda_.8} parent=5 // pred_check_branch
      %115 = sbr.rel (%p112) target = $region28
    $region27: #{_lambda_.8} parent=5 // pred_region
      %s116 = ssub.s32 %s8, 1
      %p117 = scmp.lt.s32.totalorder %s13, 1
      %s118 = scalar_select %p117, %s13, 1
      %s119 = smul.addr %s118, 8
      %s120 = scalar_lea.vmem %s0, %s119
      %p121 = pneg %p34
      %p122 = pneg %p31
      %p123 = pneg %p55
      %p124 = pneg %p52
      %p125 = pneg %p81
      %p126 = pneg %p78
      %p127 = scmp.lt.s32.totalorder %s13, 1
      %s128 = scalar_select %p127, %s13, 1
      %s129 = smul.addr %s128, 8
      %s130 = scalar_lea.vmem %s2, %s129
      %p131 = scmp.lt.s32.totalorder %s13, 1
      %s132 = scalar_select %p131, %s13, 1
      %s133 = smul.addr %s132, 8
      %s134 = scalar_lea.vmem %s0, %s133
      %p135 = scmp.lt.s32.totalorder %s13, 1
      %s136 = scalar_select %p135, %s13, 1
      %s137 = smul.addr %s136, 8
      %s138 = scalar_lea.vmem %s2, %s137
      %v139 = vld [vmem:[%s134] sm:$0xff]
      %v140 = vmul.f32 %v139, 11.313708
      %v141 = vld [vmem:[%s1] sm:$0xff]
      %v142 = vadd.f32 %v140, %v141
      %143 = vst [vmem:[%s138] sm:$0xff] %v142
      %p144 = scmp.lt.s32.totalorder %s13, 1
      %s145 = scalar_select %p144, %s13, 1
      %s146 = smul.addr %s145, 8
      %s147 = scalar_lea.vmem %s2, %s146
      // Predicated region
      $region29: #{_lambda_.8} parent=27 // pred_check
        %p148 = pneg %p78
      $region30: #{_lambda_.8} parent=27 // pred_check_branch
        %150 = sbr.rel (%p148) target = $region32
      $region31: #{_lambda_.8} parent=27 // pred_region
        _
      $region32: #{_lambda_.8} parent=27 // pred_fallthru
        _
    $region28: #{_lambda_.8} parent=5 // pred_fallthru
      _
    %p151 = scmp.le.s32.totalorder 2, %s8
    // Predicated region
    $region33: #{_lambda_.8} parent=5 // pred_check
      %p152 = pneg %p151
    $region34: #{_lambda_.8} parent=5 // pred_check_branch
      %154 = sbr.rel (%p152) target = $region36
    $region35: #{_lambda_.8} parent=5 // pred_region
      %s155 = ssub.s32 %s8, 2
      // Predicated region
      $region37: #{_lambda_.8} parent=35 // pred_check
        %p156 = pneg %p84
      $region38: #{_lambda_.8} parent=35 // pred_check_branch
        %158 = sbr.rel (%p156) target = $region40
      $region39: #{_lambda_.8} parent=35 // pred_region
        %p159 = scmp.lt.s32.totalorder %s14, 1
        %s160 = scalar_select %p159, %s14, 1
        %s161 = smul.addr %s160, 8
        %s162 = scalar_lea.vmem %s2, %s161
      $region40: #{_lambda_.8} parent=35 // pred_fallthru
        _
    $region36: #{_lambda_.8} parent=5 // pred_fallthru
      _
  $region6: #{_lambda_.8} parent=0 // loop_footer
    %s12 = sadd.s32 1, %s8
  $region7: #{_lambda_.8} parent=0 // loop_footer_branch
    %7 = sbr.rel target = $region3
  $region8: #{_lambda_.8} parent=0 // loop_exit
    _

// kernel: _lambda_.9
$region0: #{_lambda_.9}
  #allocation0 [shape = 'u32[]', space=smem, size = 0x4, offset = 0x4, fixed_abs, tag = 'smem constant byte address 0x4 - core index']
  #allocation1 [shape = 'u32[144,128]{1,0:T(1,128)}', space=vmem, size = 0x12000, scoped, tag = 'internal scratch']
  %s0 = inlined_call_operand.vmem [shape: f32[16,128], index: 0, kind: input, shape index: {}]
  %s1 = inlined_call_operand.vmem [shape: f32[1,128], index: 1, kind: input, shape index: {}]
  %s2 = inlined_call_operand.vmem [shape: f32[1,128], index: 2, kind: input, shape index: {}]
  %s3 = inlined_call_operand.vmem [shape: bf16[128,384], index: 3, kind: input, shape index: {}]
  %s4 = inlined_call_operand.vmem [shape: f32[1,384], index: 4, kind: input, shape index: {}]
  %s5 = inlined_call_operand.vmem [shape: f32[16,128], index: 5, kind: output, shape index: {0}]
  %s6 = inlined_call_operand.vmem [shape: f32[16,128], index: 6, kind: output, shape index: {1}]
  %s7 = inlined_call_operand.vmem [shape: f32[16,128], index: 7, kind: output, shape index: {2}]
  %8 = xla_tuple %s5, %s6, %s7
  %s9 = sld [smem:[#allocation0]]
  $region69: #{_lambda_.9} parent=0
    _
  %s11 = ssub.s32 1, %s9
  %s12 = scalar_select 0, %s11, %s9
  loop: start=0, step=1, limit=4
  $region2: #{_lambda_.9} parent=0 // loop_pre_header
    _
  $region3: #{_lambda_.9} parent=0 // loop_header
    %s14 = sphi 0, %s18
    %p15 = scmp.ge.s32.totalorder %s14, 4
    %s24 = sphi 0, %s26
    %s27 = sphi 0, %s24
    %s28 = sphi 0, %s27
    %s44 = sphi 0, %s28
    %s48 = sphi 0, %s48
    %s50 = sphi 0, %s48
    %s51 = sphi 0, %s50
    %s65 = sphi 0, %s51
    %s69 = sphi 0, %s69
    %s71 = sphi 0, %s69
    %s72 = sphi 0, %s71
    %s86 = sphi 0, %s72
    %s90 = sphi 0, %s90
    %s92 = sphi 0, %s90
    %s93 = sphi 0, %s92
    %s107 = sphi 0, %s93
    %s111 = sphi 0, %s111
    %s113 = sphi 0, %s111
    %s114 = sphi 0, %s113
    %s128 = sphi 0, %s114
    %s134 = sphi 0, %s136
    %s137 = sphi 0, %s134
    %s138 = sphi 0, %s137
    %s154 = sphi 0, %s138
    %s160 = sphi 0, %s162
    %s163 = sphi 0, %s160
    %s164 = sphi 0, %s163
    %s180 = sphi 0, %s164
    %s186 = sphi 0, %s188
    %s189 = sphi 0, %s186
    %s190 = sphi 0, %s189
    %s206 = sphi 0, %s190
  $region4: #{_lambda_.9} parent=0 // loop_header_branch
    %17 = sbr.rel (%p15) target = $region8
  $region5: #{_lambda_.9} parent=0 // loop_body
    %s19 = ssub.s32 %s14, 1
    %s20 = ssub.s32 %s14, 2
    %s21 = sadd.s32 %s14, 1
    %s22 = ssub.s32 %s14, %s21
    %p23 = scmp.eq.s32.totalorder %s22, 0
    %s25 = sadd.s32 %s24, 1
    %s26 = scalar_select %p23, %s24, %s25
    %p29 = pneg %p23
    %p30 = scmp.eq.s32.totalorder %s14, 1
    %p31 = por %p29, %p30
    %p32 = scmp.ne.s32.totalorder %s24, %s27
    %p33 = scmp.eq.s32.totalorder %s14, 0
    %p34 = por %p32, %p33
    %p35 = scmp.ne.s32.totalorder %s24, %s27
    %p36 = scmp.eq.s32.totalorder %s19, 1
    %p37 = por %p35, %p36
    %p38 = scmp.ne.s32.totalorder %s27, %s28
    %p39 = scmp.eq.s32.totalorder %s19, 0
    %p40 = por %p38, %p39
    %p41 = scmp.ne.s32.totalorder %s27, %s28
    %p42 = scmp.eq.s32.totalorder %s20, 1
    %p43 = por %p41, %p42
    %p45 = scmp.ne.s32.totalorder %s28, %s44
    %p46 = scmp.eq.s32.totalorder %s20, 0
    %p47 = por %p45, %p46
    %s49 = sadd.s32 %s48, 1
    %p52 = scmp.eq.s32.totalorder %s14, 1
    %p53 = scmp.ne.s32.totalorder %s48, %s50
    %p54 = scmp.eq.s32.totalorder %s14, 0
    %p55 = por %p53, %p54
    %p56 = scmp.ne.s32.totalorder %s48, %s50
    %p57 = scmp.eq.s32.totalorder %s19, 1
    %p58 = por %p56, %p57
    %p59 = scmp.ne.s32.totalorder %s50, %s51
    %p60 = scmp.eq.s32.totalorder %s19, 0
    %p61 = por %p59, %p60
    %p62 = scmp.ne.s32.totalorder %s50, %s51
    %p63 = scmp.eq.s32.totalorder %s20, 1
    %p64 = por %p62, %p63
    %p66 = scmp.ne.s32.totalorder %s51, %s65
    %p67 = scmp.eq.s32.totalorder %s20, 0
    %p68 = por %p66, %p67
    %s70 = sadd.s32 %s69, 1
    %p73 = scmp.eq.s32.totalorder %s14, 1
    %p74 = scmp.ne.s32.totalorder %s69, %s71
    %p75 = scmp.eq.s32.totalorder %s14, 0
    %p76 = por %p74, %p75
    %p77 = scmp.ne.s32.totalorder %s69, %s71
    %p78 = scmp.eq.s32.totalorder %s19, 1
    %p79 = por %p77, %p78
    %p80 = scmp.ne.s32.totalorder %s71, %s72
    %p81 = scmp.eq.s32.totalorder %s19, 0
    %p82 = por %p80, %p81
    %p83 = scmp.ne.s32.totalorder %s71, %s72
    %p84 = scmp.eq.s32.totalorder %s20, 1
    %p85 = por %p83, %p84
    %p87 = scmp.ne.s32.totalorder %s72, %s86
    %p88 = scmp.eq.s32.totalorder %s20, 0
    %p89 = por %p87, %p88
    %s91 = sadd.s32 %s90, 1
    %p94 = scmp.eq.s32.totalorder %s14, 1
    %p95 = scmp.ne.s32.totalorder %s90, %s92
    %p96 = scmp.eq.s32.totalorder %s14, 0
    %p97 = por %p95, %p96
    %p98 = scmp.ne.s32.totalorder %s90, %s92
    %p99 = scmp.eq.s32.totalorder %s19, 1
    %p100 = por %p98, %p99
    %p101 = scmp.ne.s32.totalorder %s92, %s93
    %p102 = scmp.eq.s32.totalorder %s19, 0
    %p103 = por %p101, %p102
    %p104 = scmp.ne.s32.totalorder %s92, %s93
    %p105 = scmp.eq.s32.totalorder %s20, 1
    %p106 = por %p104, %p105
    %p108 = scmp.ne.s32.totalorder %s93, %s107
    %p109 = scmp.eq.s32.totalorder %s20, 0
    %p110 = por %p108, %p109
    %s112 = sadd.s32 %s111, 1
    %p115 = scmp.eq.s32.totalorder %s14, 1
    %p116 = scmp.ne.s32.totalorder %s111, %s113
    %p117 = scmp.eq.s32.totalorder %s14, 0
    %p118 = por %p116, %p117
    %p119 = scmp.ne.s32.totalorder %s111, %s113
    %p120 = scmp.eq.s32.totalorder %s19, 1
    %p121 = por %p119, %p120
    %p122 = scmp.ne.s32.totalorder %s113, %s114
    %p123 = scmp.eq.s32.totalorder %s19, 0
    %p124 = por %p122, %p123
    %p125 = scmp.ne.s32.totalorder %s113, %s114
    %p126 = scmp.eq.s32.totalorder %s20, 1
    %p127 = por %p125, %p126
    %p129 = scmp.ne.s32.totalorder %s114, %s128
    %p130 = scmp.eq.s32.totalorder %s20, 0
    %p131 = por %p129, %p130
    %s132 = ssub.s32 %s14, %s21
    %p133 = scmp.eq.s32.totalorder %s132, 0
    %s135 = sadd.s32 %s134, 1
    %s136 = scalar_select %p133, %s134, %s135
    %p139 = pneg %p133
    %p140 = scmp.eq.s32.totalorder %s14, 1
    %p141 = por %p139, %p140
    %p142 = scmp.ne.s32.totalorder %s134, %s137
    %p143 = scmp.eq.s32.totalorder %s14, 0
    %p144 = por %p142, %p143
    %p145 = scmp.ne.s32.totalorder %s134, %s137
    %p146 = scmp.eq.s32.totalorder %s19, 1
    %p147 = por %p145, %p146
    %p148 = scmp.ne.s32.totalorder %s137, %s138
    %p149 = scmp.eq.s32.totalorder %s19, 0
    %p150 = por %p148, %p149
    %p151 = scmp.ne.s32.totalorder %s137, %s138
    %p152 = scmp.eq.s32.totalorder %s20, 1
    %p153 = por %p151, %p152
    %p155 = scmp.ne.s32.totalorder %s138, %s154
    %p156 = scmp.eq.s32.totalorder %s20, 0
    %p157 = por %p155, %p156
    %s158 = ssub.s32 %s14, %s21
    %p159 = scmp.eq.s32.totalorder %s158, 0
    %s161 = sadd.s32 %s160, 1
    %s162 = scalar_select %p159, %s160, %s161
    %p165 = pneg %p159
    %p166 = scmp.eq.s32.totalorder %s14, 1
    %p167 = por %p165, %p166
    %p168 = scmp.ne.s32.totalorder %s160, %s163
    %p169 = scmp.eq.s32.totalorder %s14, 0
    %p170 = por %p168, %p169
    %p171 = scmp.ne.s32.totalorder %s160, %s163
    %p172 = scmp.eq.s32.totalorder %s19, 1
    %p173 = por %p171, %p172
    %p174 = scmp.ne.s32.totalorder %s163, %s164
    %p175 = scmp.eq.s32.totalorder %s19, 0
    %p176 = por %p174, %p175
    %p177 = scmp.ne.s32.totalorder %s163, %s164
    %p178 = scmp.eq.s32.totalorder %s20, 1
    %p179 = por %p177, %p178
    %p181 = scmp.ne.s32.totalorder %s164, %s180
    %p182 = scmp.eq.s32.totalorder %s20, 0
    %p183 = por %p181, %p182
    %s184 = ssub.s32 %s14, %s21
    %p185 = scmp.eq.s32.totalorder %s184, 0
    %s187 = sadd.s32 %s186, 1
    %s188 = scalar_select %p185, %s186, %s187
    %p191 = pneg %p185
    %p192 = scmp.eq.s32.totalorder %s14, 1
    %p193 = por %p191, %p192
    %p194 = scmp.ne.s32.totalorder %s186, %s189
    %p195 = scmp.eq.s32.totalorder %s14, 0
    %p196 = por %p194, %p195
    %p197 = scmp.ne.s32.totalorder %s186, %s189
    %p198 = scmp.eq.s32.totalorder %s19, 1
    %p199 = por %p197, %p198
    %p200 = scmp.ne.s32.totalorder %s189, %s190
    %p201 = scmp.eq.s32.totalorder %s19, 0
    %p202 = por %p200, %p201
    %p203 = scmp.ne.s32.totalorder %s189, %s190
    %p204 = scmp.eq.s32.totalorder %s20, 1
    %p205 = por %p203, %p204
    %p207 = scmp.ne.s32.totalorder %s190, %s206
    %p208 = scmp.eq.s32.totalorder %s20, 0
    %p209 = por %p207, %p208
    %p210 = scmp.le.s32.totalorder 1, %s14
    %p211 = scmp.lt.s32.totalorder %s14, 3
    %p212 = pnand %p210, %p211
    %p213 = pneg %p212
    // Predicated region
    $region9: #{_lambda_.9} parent=5 // pred_check
      _
    $region10: #{_lambda_.9} parent=5 // pred_check_branch
      %215 = sbr.rel (%p212) target = $region12
    $region11: #{_lambda_.9} parent=5 // pred_region
      %s216 = ssub.s32 %s14, 1
      // Predicated region
      $region13: #{_lambda_.9} parent=11 // pred_check
        %p217 = pneg %p61
      $region14: #{_lambda_.9} parent=11 // pred_check_branch
        %219 = sbr.rel (%p217) target = $region16
      $region15: #{_lambda_.9} parent=11 // pred_region
        _
      $region16: #{_lambda_.9} parent=11 // pred_fallthru
        _
      // Predicated region
      $region17: #{_lambda_.9} parent=11 // pred_check
        %p220 = pneg %p82
      $region18: #{_lambda_.9} parent=11 // pred_check_branch
        %222 = sbr.rel (%p220) target = $region20
      $region19: #{_lambda_.9} parent=11 // pred_region
        _
      $region20: #{_lambda_.9} parent=11 // pred_fallthru
        _
      // Predicated region
      $region21: #{_lambda_.9} parent=11 // pred_check
        %p223 = pneg %p103
      $region22: #{_lambda_.9} parent=11 // pred_check_branch
        %225 = sbr.rel (%p223) target = $region24
      $region23: #{_lambda_.9} parent=11 // pred_region
        _
      $region24: #{_lambda_.9} parent=11 // pred_fallthru
        _
      // Predicated region
      $region25: #{_lambda_.9} parent=11 // pred_check
        %p226 = pneg %p124
      $region26: #{_lambda_.9} parent=11 // pred_check_branch
        %228 = sbr.rel (%p226) target = $region28
      $region27: #{_lambda_.9} parent=11 // pred_region
        _
      $region28: #{_lambda_.9} parent=11 // pred_fallthru
        _
    $region12: #{_lambda_.9} parent=5 // pred_fallthru
      _
    %p229 = scmp.lt.s32.totalorder %s14, 2
    // Predicated region
    $region29: #{_lambda_.9} parent=5 // pred_check
      %p230 = pneg %p229
    $region30: #{_lambda_.9} parent=5 // pred_check_branch
      %232 = sbr.rel (%p230) target = $region32
    $region31: #{_lambda_.9} parent=5 // pred_region
      // Predicated region
      $region33: #{_lambda_.9} parent=31 // pred_check
        %p233 = pneg %p34
      $region34: #{_lambda_.9} parent=31 // pred_check_branch
        %235 = sbr.rel (%p233) target = $region36
      $region35: #{_lambda_.9} parent=31 // pred_region
        %p236 = scmp.lt.s32.totalorder %s14, 1
        %s237 = scalar_select %p236, %s14, 1
        %s238 = smul.addr %s237, 8
        %s239 = scalar_lea.vmem %s0, %s238
      $region36: #{_lambda_.9} parent=31 // pred_fallthru
        _
    $region32: #{_lambda_.9} parent=5 // pred_fallthru
      _
    %p240 = scmp.le.s32.totalorder 1, %s14
    %p241 = scmp.lt.s32.totalorder %s14, 3
    %p242 = pnand %p240, %p241
    %p243 = pneg %p242
    // Predicated region
    $region37: #{_lambda_.9} parent=5 // pred_check
      _
    $region38: #{_lambda_.9} parent=5 // pred_check_branch
      %245 = sbr.rel (%p242) target = $region40
    $region39: #{_lambda_.9} parent=5 // pred_region
      %s246 = ssub.s32 %s14, 1
      %p247 = scmp.lt.s32.totalorder %s19, 1
      %s248 = scalar_select %p247, %s19, 1
      %s249 = smul.addr %s248, 8
      %s250 = scalar_lea.vmem %s0, %s249
      %p251 = pneg %p40
      %p252 = pneg %p37
      %p253 = pneg %p61
      %p254 = pneg %p58
      %p255 = pneg %p82
      %p256 = pneg %p79
      %p257 = pneg %p103
      %p258 = pneg %p100
      %p259 = pneg %p124
      %p260 = pneg %p121
      %p261 = pneg %p150
      %p262 = pneg %p147
      %p263 = scmp.lt.s32.totalorder %s19, 1
      %s264 = scalar_select %p263, %s19, 1
      %s265 = smul.addr %s264, 8
      %s266 = scalar_lea.vmem %s5, %s265
      %p267 = pneg %p176
      %p268 = pneg %p173
      %p269 = scmp.lt.s32.totalorder %s19, 1
      %s270 = scalar_select %p269, %s19, 1
      %s271 = smul.addr %s270, 8
      %s272 = scalar_lea.vmem %s6, %s271
      %p273 = pneg %p202
      %p274 = pneg %p199
      %p275 = scmp.lt.s32.totalorder %s19, 1
      %s276 = scalar_select %p275, %s19, 1
      %s277 = smul.addr %s276, 8
      %s278 = scalar_lea.vmem %s7, %s277
      %p279 = scmp.lt.s32.totalorder %s19, 1
      %s280 = scalar_select %p279, %s19, 1
      %s281 = smul.addr %s280, 8
      %s282 = scalar_lea.vmem %s0, %s281
      %p283 = scmp.lt.s32.totalorder %s19, 1
      %s284 = scalar_select %p283, %s19, 1
      %s285 = smul.addr %s284, 8
      %s286 = scalar_lea.vmem %s5, %s285
      %p287 = scmp.lt.s32.totalorder %s19, 1
      %s288 = scalar_select %p287, %s19, 1
      %s289 = smul.addr %s288, 8
      %s290 = scalar_lea.vmem %s6, %s289
      %p291 = scmp.lt.s32.totalorder %s19, 1
      %s292 = scalar_select %p291, %s19, 1
      %s293 = smul.addr %s292, 8
      %s294 = scalar_lea.vmem %s7, %s293
      %v296 = vld [vmem:[%s282] sm:$0xff]
      %v297 = vld [vmem:[%s1] sm:$0x1]
      %v298 = vld [vmem:[%s2] sm:$0x1]
      %299 = vadd.xlane.f32.xlu0 %v296
      %v300 = vpop.xlane.xlu0 %299
      %v301 = vrcp.pop 128.0
      %v302 = vmul.f32 %v300, %v301
      %v303 = vsub.f32 %v296, %v302
      %v304 = vmul.f32 %v303, %v303
      %305 = vadd.xlane.f32.xlu0 %v304
      %v306 = vpop.xlane.xlu0 %305
      %v307 = vrcp.pop 127.0
      %v308 = vmul.f32 %v306, %v307
      %v310 = vlaneseq
      %v311 = vshrl.u32 %v310, 7
      %v312 = vsub.s32 0, %v311
      %v313 = vrot.slane %v297, %v312
      %v315 = vmul.f32 %v313, %v303
      %v316 = vrsqrt.pop %v308
      %v317 = vmul.f32 %v308, %v316
      %vm318 = vcmp.eq.f32.partialorder %v308, inf
      %v319 = vsel %vm318, %v308, %v317
      %vm320 = vcmp.eq.f32.partialorder %v308, 0.0
      %v321 = vand.u32 %v308, 2147483648
      %v322 = vsel %vm320, %v321, %v319
      %v323 = vadd.f32 %v322, 1e-06
      %v324 = vrcp.pop %v323
      %v325 = vmul.f32 %v315, %v324
      %v327 = vlaneseq
      %v328 = vshrl.u32 %v327, 7
      %v329 = vsub.s32 0, %v328
      %v330 = vrot.slane %v298, %v329
      %v332 = vadd.f32 %v325, %v330
      %v333 = vpack.c.bf16 %v332, %v332
      %v334 = vld [vmem:[%s3] sm:$0xff]
      %v335 = vld [vmem:[%s3 + $0x8] sm:$0xf]
      %v336 = vld [vmem:[%s3 + $0xc] sm:$0xff]
      %v337 = vld [vmem:[%s3 + $0x14] sm:$0xf]
      %v338 = vld [vmem:[%s3 + $0x18] sm:$0xff]
      %v339 = vld [vmem:[%s3 + $0x20] sm:$0xf]
      %v340 = vld [vmem:[%s3 + $0x24] sm:$0xff]
      %v341 = vld [vmem:[%s3 + $0x2c] sm:$0xf]
      %v342 = vld [vmem:[%s3 + $0x30] sm:$0xff]
      %v343 = vld [vmem:[%s3 + $0x38] sm:$0xf]
      %v344 = vld [vmem:[%s3 + $0x3c] sm:$0xff]
      %v345 = vld [vmem:[%s3 + $0x44] sm:$0xf]
      %v346 = vld [vmem:[%s3 + $0x48] sm:$0xff]
      %v347 = vld [vmem:[%s3 + $0x50] sm:$0xf]
      %v348 = vld [vmem:[%s3 + $0x54] sm:$0xff]
      %v349 = vld [vmem:[%s3 + $0x5c] sm:$0xf]
      %v350 = vld [vmem:[%s3 + $0x60] sm:$0xff]
      %v351 = vld [vmem:[%s3 + $0x68] sm:$0xf]
      %v352 = vld [vmem:[%s3 + $0x6c] sm:$0xff]
      %v353 = vld [vmem:[%s3 + $0x74] sm:$0xf]
      %v354 = vld [vmem:[%s3 + $0x78] sm:$0xff]
      %v355 = vld [vmem:[%s3 + $0x80] sm:$0xf]
      %v356 = vld [vmem:[%s3 + $0x84] sm:$0xff]
      %v357 = vld [vmem:[%s3 + $0x8c] sm:$0xf]
      %v358 = vld [vmem:[%s3 + $0x90] sm:$0xff]
      %v359 = vld [vmem:[%s3 + $0x98] sm:$0xf]
      %v360 = vld [vmem:[%s3 + $0x9c] sm:$0xff]
      %v361 = vld [vmem:[%s3 + $0xa4] sm:$0xf]
      %v362 = vld [vmem:[%s3 + $0xa8] sm:$0xff]
      %v363 = vld [vmem:[%s3 + $0xb0] sm:$0xf]
      %v364 = vld [vmem:[%s3 + $0xb4] sm:$0xff]
      %v365 = vld [vmem:[%s3 + $0xbc] sm:$0xf]
      %v366 = vld [vmem:[%s4] sm:$0x7]
      %v368 = vlaneseq
      %v369 = vshrl.u32 %v368, 7
      %v370 = vsub.s32 0, %v369
      %v371 = vrot.slane %v366, %v370
      %v372 = vlaneseq
      %v373 = vshrl.u32 %v372, 7
      %v374 = vsub.s32 1, %v373
      %v375 = vrot.slane %v366, %v374
      %v376 = vlaneseq
      %v377 = vshrl.u32 %v376, 7
      %v378 = vsub.s32 2, %v377
      %v379 = vrot.slane %v366, %v378
      %v415 = vunpack.c.l.b16 %v334
      %v416 = vunpack.c.h.b16 %v334
      %v417 = vunpack.c.l.b16 %v335
      %v418 = vunpack.c.l.b16 %v336
      %v419 = vunpack.c.h.b16 %v336
      %v420 = vunpack.c.l.b16 %v337
      %v421 = vunpack.c.l.b16 %v338
      %v422 = vunpack.c.h.b16 %v338
      %v423 = vunpack.c.l.b16 %v339
      %v424 = vunpack.c.l.b16 %v340
      %v425 = vunpack.c.h.b16 %v340
      %v426 = vunpack.c.l.b16 %v341
      %v427 = vunpack.c.l.b16 %v342
      %v428 = vunpack.c.h.b16 %v342
      %v429 = vunpack.c.l.b16 %v343
      %v430 = vunpack.c.l.b16 %v344
      %v431 = vunpack.c.h.b16 %v344
      %v432 = vunpack.c.l.b16 %v345
      %v433 = vunpack.c.l.b16 %v346
      %v434 = vunpack.c.h.b16 %v346
      %v435 = vunpack.c.l.b16 %v347
      %v436 = vunpack.c.l.b16 %v348
      %v437 = vunpack.c.h.b16 %v348
      %v438 = vunpack.c.l.b16 %v349
      %v439 = vunpack.c.l.b16 %v350
      %v440 = vunpack.c.h.b16 %v350
      %v441 = vunpack.c.l.b16 %v351
      %v442 = vunpack.c.l.b16 %v352
      %v443 = vunpack.c.h.b16 %v352
      %v444 = vunpack.c.l.b16 %v353
      %v445 = vunpack.c.l.b16 %v354
      %v446 = vunpack.c.h.b16 %v354
      %v447 = vunpack.c.l.b16 %v355
      %v448 = vunpack.c.l.b16 %v356
      %v449 = vunpack.c.h.b16 %v356
      %v450 = vunpack.c.l.b16 %v357
      %v451 = vunpack.c.l.b16 %v358
      %v452 = vunpack.c.h.b16 %v358
      %v453 = vunpack.c.l.b16 %v359
      %v454 = vunpack.c.l.b16 %v360
      %v455 = vunpack.c.h.b16 %v360
      %v456 = vunpack.c.l.b16 %v361
      %v457 = vunpack.c.l.b16 %v362
      %v458 = vunpack.c.h.b16 %v362
      %v459 = vunpack.c.l.b16 %v363
      %v460 = vunpack.c.l.b16 %v364
      %v461 = vunpack.c.h.b16 %v364
      %v462 = vunpack.c.l.b16 %v365
      %v463 = vpack.c.b16 %v418, %v415
      %v464 = vpack.c.b16 %v419, %v416
      %v465 = vpack.c.b16 %v420, %v417
      %v466 = vpack.c.b16 %v424, %v421
      %v467 = vpack.c.b16 %v425, %v422
      %v468 = vpack.c.b16 %v426, %v423
      %v469 = vpack.c.b16 %v430, %v427
      %v470 = vpack.c.b16 %v431, %v428
      %v471 = vpack.c.b16 %v432, %v429
      %v472 = vpack.c.b16 %v436, %v433
      %v473 = vpack.c.b16 %v437, %v434
      %v474 = vpack.c.b16 %v438, %v435
      %v475 = vpack.c.b16 %v442, %v439
      %v476 = vpack.c.b16 %v443, %v440
      %v477 = vpack.c.b16 %v444, %v441
      %v478 = vpack.c.b16 %v448, %v445
      %v479 = vpack.c.b16 %v449, %v446
      %v480 = vpack.c.b16 %v450, %v447
      %v481 = vpack.c.b16 %v454, %v451
      %v482 = vpack.c.b16 %v455, %v452
      %v483 = vpack.c.b16 %v456, %v453
      %v484 = vpack.c.b16 %v460, %v457
      %v485 = vpack.c.b16 %v461, %v458
      %v486 = vpack.c.b16 %v462, %v459
      %511 = vmatprep.subr.bf16.mxu0 %v485
      %512 = vmatpush1.bf16.msra.mxu0 %v484
      %513 = vmatprep.subr.bf16.mxu0 %v482
      %514 = vmatpush1.bf16.msra.mxu0 %v481
      %515 = vmatprep.subr.bf16.mxu0 %v479
      %516 = vmatpush1.bf16.msra.mxu0 %v478
      %517 = vmatprep.subr.bf16.mxu0 %v476
      %518 = vmatpush1.bf16.msra.mxu0 %v475
      %519 = vmatprep.subr.bf16.mxu0 %v473
      %520 = vmatpush1.bf16.msra.mxu0 %v472
      %521 = vmatprep.subr.bf16.mxu0 %v470
      %522 = vmatpush1.bf16.msra.mxu0 %v469
      %523 = vmatprep.subr.bf16.mxu0 %v467
      %524 = vmatpush1.bf16.msra.mxu0 %v466
      %525 = vmatprep.subr.bf16.mxu0 %v464
      %526 = vmatpush1.bf16.msra.mxu0 %v463
      %527 = vmatprep.subr.bf16.mxu0 0
      %528 = vmatpush2.bf16.msra.mxu0 0
      %529 = vmatprep.subr.bf16.mxu0 0
      %530 = vmatpush2.bf16.msra.mxu0 0
      %531 = vmatprep.subr.bf16.mxu0 0
      %532 = vmatpush2.bf16.msra.mxu0 0
      %533 = vmatprep.subr.bf16.mxu0 0
      %534 = vmatpush2.bf16.msra.mxu0 0
      %535 = vmatprep.subr.bf16.mxu0 0
      %536 = vmatpush2.bf16.msra.mxu0 0
      %537 = vmatprep.subr.bf16.mxu0 0
      %538 = vmatpush2.bf16.msra.mxu0 0
      %539 = vmatprep.subr.bf16.mxu0 0
      %540 = vmatpush2.bf16.msra.mxu0 0
      %541 = vmatprep.subr.bf16.mxu0 0
      %542 = vmatpush2.bf16.msra.mxu0 0
      %543 = vmatprep.mubr.bf16.mxu0 0
      %544 = vmatmul.mubr.bf16.gmra.mxu0 %v333
      %v545 = vpop.f32.mrf.mxu0
      %v546 = vadd.f32 %v371, %v545
      %v547 = vpop.f32.mrf.mxu0
      %v548 = vadd.f32 %v375, %v547
      %v549 = vpop.f32.mrf.mxu0
      %v550 = vpop.f32.mrf.mxu0
      %551 = vdwg.mxu0
      %552 = vmatprep.subr.bf16.mxu0 0
      %553 = vmatpush1.bf16.msra.mxu0 %v486
      %554 = vmatprep.subr.bf16.mxu0 0
      %555 = vmatpush1.bf16.msra.mxu0 %v483
      %556 = vmatprep.subr.bf16.mxu0 0
      %557 = vmatpush1.bf16.msra.mxu0 %v480
      %558 = vmatprep.subr.bf16.mxu0 0
      %559 = vmatpush1.bf16.msra.mxu0 %v477
      %560 = vmatprep.subr.bf16.mxu0 0
      %561 = vmatpush1.bf16.msra.mxu0 %v474
      %562 = vmatprep.subr.bf16.mxu0 0
      %563 = vmatpush1.bf16.msra.mxu0 %v471
      %564 = vmatprep.subr.bf16.mxu0 0
      %565 = vmatpush1.bf16.msra.mxu0 %v468
      %566 = vmatprep.subr.bf16.mxu0 0
      %567 = vmatpush1.bf16.msra.mxu0 %v465
      %568 = vmatprep.subr.bf16.mxu0 0
      %569 = vmatpush2.bf16.msra.mxu0 0
      %570 = vmatprep.subr.bf16.mxu0 0
      %571 = vmatpush2.bf16.msra.mxu0 0
      %572 = vmatprep.subr.bf16.mxu0 0
      %573 = vmatpush2.bf16.msra.mxu0 0
      %574 = vmatprep.subr.bf16.mxu0 0
      %575 = vmatpush2.bf16.msra.mxu0 0
      %576 = vmatprep.subr.bf16.mxu0 0
      %577 = vmatpush2.bf16.msra.mxu0 0
      %578 = vmatprep.subr.bf16.mxu0 0
      %579 = vmatpush2.bf16.msra.mxu0 0
      %580 = vmatprep.subr.bf16.mxu0 0
      %581 = vmatpush2.bf16.msra.mxu0 0
      %582 = vmatprep.subr.bf16.mxu0 0
      %583 = vmatpush2.bf16.msra.mxu0 0
      %584 = vmatprep.mubr.bf16.mxu0 0
      %585 = vmatmul.mubr.bf16.gmra.mxu0 %v333
      %v586 = vpop.f32.mrf.mxu0
      %v587 = vadd.f32 %v379, %v586
      %v588 = vpop.f32.mrf.mxu0
      %v589 = vpop.f32.mrf.mxu0
      %v590 = vpop.f32.mrf.mxu0
      %591 = vdwg.mxu0
      %592 = vst [vmem:[%s286] sm:$0xff] %v546
      %593 = vst [vmem:[%s290] sm:$0xff] %v548
      %594 = vst [vmem:[%s294] sm:$0xff] %v587
      %p595 = scmp.lt.s32.totalorder %s19, 1
      %s596 = scalar_select %p595, %s19, 1
      %s597 = smul.addr %s596, 8
      %s598 = scalar_lea.vmem %s5, %s597
      %p599 = scmp.lt.s32.totalorder %s19, 1
      %s600 = scalar_select %p599, %s19, 1
      %s601 = smul.addr %s600, 8
      %s602 = scalar_lea.vmem %s6, %s601
      %p603 = scmp.lt.s32.totalorder %s19, 1
      %s604 = scalar_select %p603, %s19, 1
      %s605 = smul.addr %s604, 8
      %s606 = scalar_lea.vmem %s7, %s605
      // Predicated region
      $region41: #{_lambda_.9} parent=39 // pred_check
        %p607 = pneg %p147
      $region42: #{_lambda_.9} parent=39 // pred_check_branch
        %609 = sbr.rel (%p607) target = $region44
      $region43: #{_lambda_.9} parent=39 // pred_region
        _
      $region44: #{_lambda_.9} parent=39 // pred_fallthru
        _
      // Predicated region
      $region45: #{_lambda_.9} parent=39 // pred_check
        %p610 = pneg %p173
      $region46: #{_lambda_.9} parent=39 // pred_check_branch
        %612 = sbr.rel (%p610) target = $region48
      $region47: #{_lambda_.9} parent=39 // pred_region
        _
      $region48: #{_lambda_.9} parent=39 // pred_fallthru
        _
      // Predicated region
      $region49: #{_lambda_.9} parent=39 // pred_check
        %p613 = pneg %p199
      $region50: #{_lambda_.9} parent=39 // pred_check_branch
        %615 = sbr.rel (%p613) target = $region52
      $region51: #{_lambda_.9} parent=39 // pred_region
        _
      $region52: #{_lambda_.9} parent=39 // pred_fallthru
        _
    $region40: #{_lambda_.9} parent=5 // pred_fallthru
      _
    %p616 = scmp.le.s32.totalorder 2, %s14
    // Predicated region
    $region53: #{_lambda_.9} parent=5 // pred_check
      %p617 = pneg %p616
    $region54: #{_lambda_.9} parent=5 // pred_check_branch
      %619 = sbr.rel (%p617) target = $region56
    $region55: #{_lambda_.9} parent=5 // pred_region
      %s620 = ssub.s32 %s14, 2
      // Predicated region
      $region57: #{_lambda_.9} parent=55 // pred_check
        %p621 = pneg %p153
      $region58: #{_lambda_.9} parent=55 // pred_check_branch
        %623 = sbr.rel (%p621) target = $region60
      $region59: #{_lambda_.9} parent=55 // pred_region
        %p624 = scmp.lt.s32.totalorder %s20, 1
        %s625 = scalar_select %p624, %s20, 1
        %s626 = smul.addr %s625, 8
        %s627 = scalar_lea.vmem %s5, %s626
      $region60: #{_lambda_.9} parent=55 // pred_fallthru
        _
      // Predicated region
      $region61: #{_lambda_.9} parent=55 // pred_check
        %p628 = pneg %p179
      $region62: #{_lambda_.9} parent=55 // pred_check_branch
        %630 = sbr.rel (%p628) target = $region64
      $region63: #{_lambda_.9} parent=55 // pred_region
        %p631 = scmp.lt.s32.totalorder %s20, 1
        %s632 = scalar_select %p631, %s20, 1
        %s633 = smul.addr %s632, 8
        %s634 = scalar_lea.vmem %s6, %s633
      $region64: #{_lambda_.9} parent=55 // pred_fallthru
        _
      // Predicated region
      $region65: #{_lambda_.9} parent=55 // pred_check
        %p635 = pneg %p205
      $region66: #{_lambda_.9} parent=55 // pred_check_branch
        %637 = sbr.rel (%p635) target = $region68
      $region67: #{_lambda_.9} parent=55 // pred_region
        %p638 = scmp.lt.s32.totalorder %s20, 1
        %s639 = scalar_select %p638, %s20, 1
        %s640 = smul.addr %s639, 8
        %s641 = scalar_lea.vmem %s7, %s640
      $region68: #{_lambda_.9} parent=55 // pred_fallthru
        _
    $region56: #{_lambda_.9} parent=5 // pred_fallthru
      _
  $region6: #{_lambda_.9} parent=0 // loop_footer
    %s18 = sadd.s32 1, %s14
  $region7: #{_lambda_.9} parent=0 // loop_footer_branch
    %13 = sbr.rel target = $region3
  $region8: #{_lambda_.9} parent=0 // loop_exit
    _

// kernel: _lambda_.11
$region0: #{_lambda_.11}
  #allocation0 [shape = 'u32[]', space=smem, size = 0x4, offset = 0x4, fixed_abs, tag = 'smem constant byte address 0x4 - core index']
  #allocation1 [shape = 'u32[144,128]{1,0:T(1,128)}', space=vmem, size = 0x12000, scoped, tag = 'internal scratch']
  %s0 = inlined_call_operand.vmem [shape: f32[16,128], index: 0, kind: input, shape index: {}]
  %s1 = inlined_call_operand.vmem [shape: f32[1,128], index: 1, kind: input, shape index: {}]
  %s2 = inlined_call_operand.vmem [shape: f32[1,128], index: 2, kind: input, shape index: {}]
  %s3 = inlined_call_operand.vmem [shape: bf16[128,256], index: 3, kind: input, shape index: {}]
  %s4 = inlined_call_operand.vmem [shape: f32[1,256], index: 4, kind: input, shape index: {}]
  %s5 = inlined_call_operand.vmem [shape: bf16[256,128], index: 5, kind: input, shape index: {}]
  %s6 = inlined_call_operand.vmem [shape: f32[1,128], index: 6, kind: input, shape index: {}]
  %s7 = inlined_call_operand.vmem [shape: f32[16,128], index: 7, kind: output, shape index: {}]
  %s8 = sld [smem:[#allocation0]]
  $region61: #{_lambda_.11} parent=0
    _
  %s10 = ssub.s32 1, %s8
  %s11 = scalar_select 0, %s10, %s8
  loop: start=0, step=1, limit=4
  $region2: #{_lambda_.11} parent=0 // loop_pre_header
    _
  $region3: #{_lambda_.11} parent=0 // loop_header
    %s13 = sphi 0, %s17
    %p14 = scmp.ge.s32.totalorder %s13, 4
    %s23 = sphi 0, %s25
    %s26 = sphi 0, %s23
    %s27 = sphi 0, %s26
    %s43 = sphi 0, %s27
    %s47 = sphi 0, %s47
    %s49 = sphi 0, %s47
    %s50 = sphi 0, %s49
    %s64 = sphi 0, %s50
    %s68 = sphi 0, %s68
    %s70 = sphi 0, %s68
    %s71 = sphi 0, %s70
    %s85 = sphi 0, %s71
    %s89 = sphi 0, %s89
    %s91 = sphi 0, %s89
    %s92 = sphi 0, %s91
    %s106 = sphi 0, %s92
    %s110 = sphi 0, %s110
    %s112 = sphi 0, %s110
    %s113 = sphi 0, %s112
    %s127 = sphi 0, %s113
    %s131 = sphi 0, %s131
    %s133 = sphi 0, %s131
    %s134 = sphi 0, %s133
    %s148 = sphi 0, %s134
    %s152 = sphi 0, %s152
    %s154 = sphi 0, %s152
    %s155 = sphi 0, %s154
    %s169 = sphi 0, %s155
    %s175 = sphi 0, %s177
    %s178 = sphi 0, %s175
    %s179 = sphi 0, %s178
    %s195 = sphi 0, %s179
  $region4: #{_lambda_.11} parent=0 // loop_header_branch
    %16 = sbr.rel (%p14) target = $region8
  $region5: #{_lambda_.11} parent=0 // loop_body
    %s18 = ssub.s32 %s13, 1
    %s19 = ssub.s32 %s13, 2
    %s20 = sadd.s32 %s13, 1
    %s21 = ssub.s32 %s13, %s20
    %p22 = scmp.eq.s32.totalorder %s21, 0
    %s24 = sadd.s32 %s23, 1
    %s25 = scalar_select %p22, %s23, %s24
    %p28 = pneg %p22
    %p29 = scmp.eq.s32.totalorder %s13, 1
    %p30 = por %p28, %p29
    %p31 = scmp.ne.s32.totalorder %s23, %s26
    %p32 = scmp.eq.s32.totalorder %s13, 0
    %p33 = por %p31, %p32
    %p34 = scmp.ne.s32.totalorder %s23, %s26
    %p35 = scmp.eq.s32.totalorder %s18, 1
    %p36 = por %p34, %p35
    %p37 = scmp.ne.s32.totalorder %s26, %s27
    %p38 = scmp.eq.s32.totalorder %s18, 0
    %p39 = por %p37, %p38
    %p40 = scmp.ne.s32.totalorder %s26, %s27
    %p41 = scmp.eq.s32.totalorder %s19, 1
    %p42 = por %p40, %p41
    %p44 = scmp.ne.s32.totalorder %s27, %s43
    %p45 = scmp.eq.s32.totalorder %s19, 0
    %p46 = por %p44, %p45
    %s48 = sadd.s32 %s47, 1
    %p51 = scmp.eq.s32.totalorder %s13, 1
    %p52 = scmp.ne.s32.totalorder %s47, %s49
    %p53 = scmp.eq.s32.totalorder %s13, 0
    %p54 = por %p52, %p53
    %p55 = scmp.ne.s32.totalorder %s47, %s49
    %p56 = scmp.eq.s32.totalorder %s18, 1
    %p57 = por %p55, %p56
    %p58 = scmp.ne.s32.totalorder %s49, %s50
    %p59 = scmp.eq.s32.totalorder %s18, 0
    %p60 = por %p58, %p59
    %p61 = scmp.ne.s32.totalorder %s49, %s50
    %p62 = scmp.eq.s32.totalorder %s19, 1
    %p63 = por %p61, %p62
    %p65 = scmp.ne.s32.totalorder %s50, %s64
    %p66 = scmp.eq.s32.totalorder %s19, 0
    %p67 = por %p65, %p66
    %s69 = sadd.s32 %s68, 1
    %p72 = scmp.eq.s32.totalorder %s13, 1
    %p73 = scmp.ne.s32.totalorder %s68, %s70
    %p74 = scmp.eq.s32.totalorder %s13, 0
    %p75 = por %p73, %p74
    %p76 = scmp.ne.s32.totalorder %s68, %s70
    %p77 = scmp.eq.s32.totalorder %s18, 1
    %p78 = por %p76, %p77
    %p79 = scmp.ne.s32.totalorder %s70, %s71
    %p80 = scmp.eq.s32.totalorder %s18, 0
    %p81 = por %p79, %p80
    %p82 = scmp.ne.s32.totalorder %s70, %s71
    %p83 = scmp.eq.s32.totalorder %s19, 1
    %p84 = por %p82, %p83
    %p86 = scmp.ne.s32.totalorder %s71, %s85
    %p87 = scmp.eq.s32.totalorder %s19, 0
    %p88 = por %p86, %p87
    %s90 = sadd.s32 %s89, 1
    %p93 = scmp.eq.s32.totalorder %s13, 1
    %p94 = scmp.ne.s32.totalorder %s89, %s91
    %p95 = scmp.eq.s32.totalorder %s13, 0
    %p96 = por %p94, %p95
    %p97 = scmp.ne.s32.totalorder %s89, %s91
    %p98 = scmp.eq.s32.totalorder %s18, 1
    %p99 = por %p97, %p98
    %p100 = scmp.ne.s32.totalorder %s91, %s92
    %p101 = scmp.eq.s32.totalorder %s18, 0
    %p102 = por %p100, %p101
    %p103 = scmp.ne.s32.totalorder %s91, %s92
    %p104 = scmp.eq.s32.totalorder %s19, 1
    %p105 = por %p103, %p104
    %p107 = scmp.ne.s32.totalorder %s92, %s106
    %p108 = scmp.eq.s32.totalorder %s19, 0
    %p109 = por %p107, %p108
    %s111 = sadd.s32 %s110, 1
    %p114 = scmp.eq.s32.totalorder %s13, 1
    %p115 = scmp.ne.s32.totalorder %s110, %s112
    %p116 = scmp.eq.s32.totalorder %s13, 0
    %p117 = por %p115, %p116
    %p118 = scmp.ne.s32.totalorder %s110, %s112
    %p119 = scmp.eq.s32.totalorder %s18, 1
    %p120 = por %p118, %p119
    %p121 = scmp.ne.s32.totalorder %s112, %s113
    %p122 = scmp.eq.s32.totalorder %s18, 0
    %p123 = por %p121, %p122
    %p124 = scmp.ne.s32.totalorder %s112, %s113
    %p125 = scmp.eq.s32.totalorder %s19, 1
    %p126 = por %p124, %p125
    %p128 = scmp.ne.s32.totalorder %s113, %s127
    %p129 = scmp.eq.s32.totalorder %s19, 0
    %p130 = por %p128, %p129
    %s132 = sadd.s32 %s131, 1
    %p135 = scmp.eq.s32.totalorder %s13, 1
    %p136 = scmp.ne.s32.totalorder %s131, %s133
    %p137 = scmp.eq.s32.totalorder %s13, 0
    %p138 = por %p136, %p137
    %p139 = scmp.ne.s32.totalorder %s131, %s133
    %p140 = scmp.eq.s32.totalorder %s18, 1
    %p141 = por %p139, %p140
    %p142 = scmp.ne.s32.totalorder %s133, %s134
    %p143 = scmp.eq.s32.totalorder %s18, 0
    %p144 = por %p142, %p143
    %p145 = scmp.ne.s32.totalorder %s133, %s134
    %p146 = scmp.eq.s32.totalorder %s19, 1
    %p147 = por %p145, %p146
    %p149 = scmp.ne.s32.totalorder %s134, %s148
    %p150 = scmp.eq.s32.totalorder %s19, 0
    %p151 = por %p149, %p150
    %s153 = sadd.s32 %s152, 1
    %p156 = scmp.eq.s32.totalorder %s13, 1
    %p157 = scmp.ne.s32.totalorder %s152, %s154
    %p158 = scmp.eq.s32.totalorder %s13, 0
    %p159 = por %p157, %p158
    %p160 = scmp.ne.s32.totalorder %s152, %s154
    %p161 = scmp.eq.s32.totalorder %s18, 1
    %p162 = por %p160, %p161
    %p163 = scmp.ne.s32.totalorder %s154, %s155
    %p164 = scmp.eq.s32.totalorder %s18, 0
    %p165 = por %p163, %p164
    %p166 = scmp.ne.s32.totalorder %s154, %s155
    %p167 = scmp.eq.s32.totalorder %s19, 1
    %p168 = por %p166, %p167
    %p170 = scmp.ne.s32.totalorder %s155, %s169
    %p171 = scmp.eq.s32.totalorder %s19, 0
    %p172 = por %p170, %p171
    %s173 = ssub.s32 %s13, %s20
    %p174 = scmp.eq.s32.totalorder %s173, 0
    %s176 = sadd.s32 %s175, 1
    %s177 = scalar_select %p174, %s175, %s176
    %p180 = pneg %p174
    %p181 = scmp.eq.s32.totalorder %s13, 1
    %p182 = por %p180, %p181
    %p183 = scmp.ne.s32.totalorder %s175, %s178
    %p184 = scmp.eq.s32.totalorder %s13, 0
    %p185 = por %p183, %p184
    %p186 = scmp.ne.s32.totalorder %s175, %s178
    %p187 = scmp.eq.s32.totalorder %s18, 1
    %p188 = por %p186, %p187
    %p189 = scmp.ne.s32.totalorder %s178, %s179
    %p190 = scmp.eq.s32.totalorder %s18, 0
    %p191 = por %p189, %p190
    %p192 = scmp.ne.s32.totalorder %s178, %s179
    %p193 = scmp.eq.s32.totalorder %s19, 1
    %p194 = por %p192, %p193
    %p196 = scmp.ne.s32.totalorder %s179, %s195
    %p197 = scmp.eq.s32.totalorder %s19, 0
    %p198 = por %p196, %p197
    %p199 = scmp.le.s32.totalorder 1, %s13
    %p200 = scmp.lt.s32.totalorder %s13, 3
    %p201 = pnand %p199, %p200
    %p202 = pneg %p201
    // Predicated region
    $region9: #{_lambda_.11} parent=5 // pred_check
      _
    $region10: #{_lambda_.11} parent=5 // pred_check_branch
      %204 = sbr.rel (%p201) target = $region12
    $region11: #{_lambda_.11} parent=5 // pred_region
      %s205 = ssub.s32 %s13, 1
      // Predicated region
      $region13: #{_lambda_.11} parent=11 // pred_check
        %p206 = pneg %p60
      $region14: #{_lambda_.11} parent=11 // pred_check_branch
        %208 = sbr.rel (%p206) target = $region16
      $region15: #{_lambda_.11} parent=11 // pred_region
        _
      $region16: #{_lambda_.11} parent=11 // pred_fallthru
        _
      // Predicated region
      $region17: #{_lambda_.11} parent=11 // pred_check
        %p209 = pneg %p81
      $region18: #{_lambda_.11} parent=11 // pred_check_branch
        %211 = sbr.rel (%p209) target = $region20
      $region19: #{_lambda_.11} parent=11 // pred_region
        _
      $region20: #{_lambda_.11} parent=11 // pred_fallthru
        _
      // Predicated region
      $region21: #{_lambda_.11} parent=11 // pred_check
        %p212 = pneg %p102
      $region22: #{_lambda_.11} parent=11 // pred_check_branch
        %214 = sbr.rel (%p212) target = $region24
      $region23: #{_lambda_.11} parent=11 // pred_region
        _
      $region24: #{_lambda_.11} parent=11 // pred_fallthru
        _
      // Predicated region
      $region25: #{_lambda_.11} parent=11 // pred_check
        %p215 = pneg %p123
      $region26: #{_lambda_.11} parent=11 // pred_check_branch
        %217 = sbr.rel (%p215) target = $region28
      $region27: #{_lambda_.11} parent=11 // pred_region
        _
      $region28: #{_lambda_.11} parent=11 // pred_fallthru
        _
      // Predicated region
      $region29: #{_lambda_.11} parent=11 // pred_check
        %p218 = pneg %p144
      $region30: #{_lambda_.11} parent=11 // pred_check_branch
        %220 = sbr.rel (%p218) target = $region32
      $region31: #{_lambda_.11} parent=11 // pred_region
        _
      $region32: #{_lambda_.11} parent=11 // pred_fallthru
        _
      // Predicated region
      $region33: #{_lambda_.11} parent=11 // pred_check
        %p221 = pneg %p165
      $region34: #{_lambda_.11} parent=11 // pred_check_branch
        %223 = sbr.rel (%p221) target = $region36
      $region35: #{_lambda_.11} parent=11 // pred_region
        _
      $region36: #{_lambda_.11} parent=11 // pred_fallthru
        _
    $region12: #{_lambda_.11} parent=5 // pred_fallthru
      _
    %p224 = scmp.lt.s32.totalorder %s13, 2
    // Predicated region
    $region37: #{_lambda_.11} parent=5 // pred_check
      %p225 = pneg %p224
    $region38: #{_lambda_.11} parent=5 // pred_check_branch
      %227 = sbr.rel (%p225) target = $region40
    $region39: #{_lambda_.11} parent=5 // pred_region
      // Predicated region
      $region41: #{_lambda_.11} parent=39 // pred_check
        %p228 = pneg %p33
      $region42: #{_lambda_.11} parent=39 // pred_check_branch
        %230 = sbr.rel (%p228) target = $region44
      $region43: #{_lambda_.11} parent=39 // pred_region
        %p231 = scmp.lt.s32.totalorder %s13, 1
        %s232 = scalar_select %p231, %s13, 1
        %s233 = smul.addr %s232, 8
        %s234 = scalar_lea.vmem %s0, %s233
      $region44: #{_lambda_.11} parent=39 // pred_fallthru
        _
    $region40: #{_lambda_.11} parent=5 // pred_fallthru
      _
    %p235 = scmp.le.s32.totalorder 1, %s13
    %p236 = scmp.lt.s32.totalorder %s13, 3
    %p237 = pnand %p235, %p236
    %p238 = pneg %p237
    // Predicated region
    $region45: #{_lambda_.11} parent=5 // pred_check
      _
    $region46: #{_lambda_.11} parent=5 // pred_check_branch
      %240 = sbr.rel (%p237) target = $region48
    $region47: #{_lambda_.11} parent=5 // pred_region
      %s241 = ssub.s32 %s13, 1
      %p242 = scmp.lt.s32.totalorder %s18, 1
      %s243 = scalar_select %p242, %s18, 1
      %s244 = smul.addr %s243, 8
      %s245 = scalar_lea.vmem %s0, %s244
      %p246 = pneg %p39
      %p247 = pneg %p36
      %p248 = pneg %p60
      %p249 = pneg %p57
      %p250 = pneg %p81
      %p251 = pneg %p78
      %p252 = pneg %p102
      %p253 = pneg %p99
      %p254 = pneg %p123
      %p255 = pneg %p120
      %p256 = pneg %p144
      %p257 = pneg %p141
      %p258 = pneg %p165
      %p259 = pneg %p162
      %p260 = pneg %p191
      %p261 = pneg %p188
      %p262 = scmp.lt.s32.totalorder %s18, 1
      %s263 = scalar_select %p262, %s18, 1
      %s264 = smul.addr %s263, 8
      %s265 = scalar_lea.vmem %s7, %s264
      %p266 = scmp.lt.s32.totalorder %s18, 1
      %s267 = scalar_select %p266, %s18, 1
      %s268 = smul.addr %s267, 8
      %s269 = scalar_lea.vmem %s0, %s268
      %p270 = scmp.lt.s32.totalorder %s18, 1
      %s271 = scalar_select %p270, %s18, 1
      %s272 = smul.addr %s271, 8
      %s273 = scalar_lea.vmem %s7, %s272
      %v275 = vld [vmem:[%s269] sm:$0xff]
      %v276 = vld [vmem:[%s1] sm:$0x1]
      %v277 = vld [vmem:[%s2] sm:$0x1]
      %278 = vadd.xlane.f32.xlu0 %v275
      %v279 = vpop.xlane.xlu0 %278
      %v280 = vrcp.pop 128.0
      %v281 = vmul.f32 %v279, %v280
      %v282 = vsub.f32 %v275, %v281
      %v283 = vmul.f32 %v282, %v282
      %284 = vadd.xlane.f32.xlu0 %v283
      %v285 = vpop.xlane.xlu0 %284
      %v286 = vrcp.pop 127.0
      %v287 = vmul.f32 %v285, %v286
      %v289 = vlaneseq
      %v290 = vshrl.u32 %v289, 7
      %v291 = vsub.s32 0, %v290
      %v292 = vrot.slane %v276, %v291
      %v294 = vmul.f32 %v292, %v282
      %v295 = vrsqrt.pop %v287
      %v296 = vmul.f32 %v287, %v295
      %vm297 = vcmp.eq.f32.partialorder %v287, inf
      %v298 = vsel %vm297, %v287, %v296
      %vm299 = vcmp.eq.f32.partialorder %v287, 0.0
      %v300 = vand.u32 %v287, 2147483648
      %v301 = vsel %vm299, %v300, %v298
      %v302 = vadd.f32 %v301, 1e-06
      %v303 = vrcp.pop %v302
      %v304 = vmul.f32 %v294, %v303
      %v306 = vlaneseq
      %v307 = vshrl.u32 %v306, 7
      %v308 = vsub.s32 0, %v307
      %v309 = vrot.slane %v277, %v308
      %v311 = vadd.f32 %v304, %v309
      %v312 = vpack.c.bf16 %v311, %v311
      %v313 = vld [vmem:[%s3] sm:$0xff]
      %v314 = vld [vmem:[%s3 + $0x8] sm:$0xff]
      %v315 = vld [vmem:[%s3 + $0x10] sm:$0xff]
      %v316 = vld [vmem:[%s3 + $0x18] sm:$0xff]
      %v317 = vld [vmem:[%s3 + $0x20] sm:$0xff]
      %v318 = vld [vmem:[%s3 + $0x28] sm:$0xff]
      %v319 = vld [vmem:[%s3 + $0x30] sm:$0xff]
      %v320 = vld [vmem:[%s3 + $0x38] sm:$0xff]
      %v321 = vld [vmem:[%s3 + $0x40] sm:$0xff]
      %v322 = vld [vmem:[%s3 + $0x48] sm:$0xff]
      %v323 = vld [vmem:[%s3 + $0x50] sm:$0xff]
      %v324 = vld [vmem:[%s3 + $0x58] sm:$0xff]
      %v325 = vld [vmem:[%s3 + $0x60] sm:$0xff]
      %v326 = vld [vmem:[%s3 + $0x68] sm:$0xff]
      %v327 = vld [vmem:[%s3 + $0x70] sm:$0xff]
      %v328 = vld [vmem:[%s3 + $0x78] sm:$0xff]
      %v329 = vld [vmem:[%s4] sm:$0x3]
      %v331 = vlaneseq
      %v332 = vshrl.u32 %v331, 7
      %v333 = vsub.s32 0, %v332
      %v334 = vrot.slane %v329, %v333
      %v335 = vlaneseq
      %v336 = vshrl.u32 %v335, 7
      %v337 = vsub.s32 1, %v336
      %v338 = vrot.slane %v329, %v337
      %v357 = vunpack.c.l.b16 %v313
      %v358 = vunpack.c.h.b16 %v313
      %v359 = vunpack.c.l.b16 %v314
      %v360 = vunpack.c.h.b16 %v314
      %v361 = vunpack.c.l.b16 %v315
      %v362 = vunpack.c.h.b16 %v315
      %v363 = vunpack.c.l.b16 %v316
      %v364 = vunpack.c.h.b16 %v316
      %v365 = vunpack.c.l.b16 %v317
      %v366 = vunpack.c.h.b16 %v317
      %v367 = vunpack.c.l.b16 %v318
      %v368 = vunpack.c.h.b16 %v318
      %v369 = vunpack.c.l.b16 %v319
      %v370 = vunpack.c.h.b16 %v319
      %v371 = vunpack.c.l.b16 %v320
      %v372 = vunpack.c.h.b16 %v320
      %v373 = vunpack.c.l.b16 %v321
      %v374 = vunpack.c.h.b16 %v321
      %v375 = vunpack.c.l.b16 %v322
      %v376 = vunpack.c.h.b16 %v322
      %v377 = vunpack.c.l.b16 %v323
      %v378 = vunpack.c.h.b16 %v323
      %v379 = vunpack.c.l.b16 %v324
      %v380 = vunpack.c.h.b16 %v324
      %v381 = vunpack.c.l.b16 %v325
      %v382 = vunpack.c.h.b16 %v325
      %v383 = vunpack.c.l.b16 %v326
      %v384 = vunpack.c.h.b16 %v326
      %v385 = vunpack.c.l.b16 %v327
      %v386 = vunpack.c.h.b16 %v327
      %v387 = vunpack.c.l.b16 %v328
      %v388 = vunpack.c.h.b16 %v328
      %v389 = vpack.c.b16 %v359, %v357
      %v390 = vpack.c.b16 %v360, %v358
      %v391 = vpack.c.b16 %v363, %v361
      %v392 = vpack.c.b16 %v364, %v362
      %v393 = vpack.c.b16 %v367, %v365
      %v394 = vpack.c.b16 %v368, %v366
      %v395 = vpack.c.b16 %v371, %v369
      %v396 = vpack.c.b16 %v372, %v370
      %v397 = vpack.c.b16 %v375, %v373
      %v398 = vpack.c.b16 %v376, %v374
      %v399 = vpack.c.b16 %v379, %v377
      %v400 = vpack.c.b16 %v380, %v378
      %v401 = vpack.c.b16 %v383, %v381
      %v402 = vpack.c.b16 %v384, %v382
      %v403 = vpack.c.b16 %v387, %v385
      %v404 = vpack.c.b16 %v388, %v386
      %421 = vmatprep.subr.bf16.mxu0 %v404
      %422 = vmatpush1.bf16.msra.mxu0 %v403
      %423 = vmatprep.subr.bf16.mxu0 %v402
      %424 = vmatpush1.bf16.msra.mxu0 %v401
      %425 = vmatprep.subr.bf16.mxu0 %v400
      %426 = vmatpush1.bf16.msra.mxu0 %v399
      %427 = vmatprep.subr.bf16.mxu0 %v398
      %428 = vmatpush1.bf16.msra.mxu0 %v397
      %429 = vmatprep.subr.bf16.mxu0 %v396
      %430 = vmatpush1.bf16.msra.mxu0 %v395
      %431 = vmatprep.subr.bf16.mxu0 %v394
      %432 = vmatpush1.bf16.msra.mxu0 %v393
      %433 = vmatprep.subr.bf16.mxu0 %v392
      %434 = vmatpush1.bf16.msra.mxu0 %v391
      %435 = vmatprep.subr.bf16.mxu0 %v390
      %436 = vmatpush1.bf16.msra.mxu0 %v389
      %437 = vmatprep.subr.bf16.mxu0 0
      %438 = vmatpush2.bf16.msra.mxu0 0
      %439 = vmatprep.subr.bf16.mxu0 0
      %440 = vmatpush2.bf16.msra.mxu0 0
      %441 = vmatprep.subr.bf16.mxu0 0
      %442 = vmatpush2.bf16.msra.mxu0 0
      %443 = vmatprep.subr.bf16.mxu0 0
      %444 = vmatpush2.bf16.msra.mxu0 0
      %445 = vmatprep.subr.bf16.mxu0 0
      %446 = vmatpush2.bf16.msra.mxu0 0
      %447 = vmatprep.subr.bf16.mxu0 0
      %448 = vmatpush2.bf16.msra.mxu0 0
      %449 = vmatprep.subr.bf16.mxu0 0
      %450 = vmatpush2.bf16.msra.mxu0 0
      %451 = vmatprep.subr.bf16.mxu0 0
      %452 = vmatpush2.bf16.msra.mxu0 0
      %453 = vmatprep.mubr.bf16.mxu0 0
      %454 = vmatmul.mubr.bf16.gmra.mxu0 %v312
      %v455 = vpop.f32.mrf.mxu0
      %v456 = vadd.f32 %v334, %v455
      %v457 = vpop.f32.mrf.mxu0
      %v458 = vadd.f32 %v338, %v457
      %v459 = vpop.f32.mrf.mxu0
      %v460 = vpop.f32.mrf.mxu0
      %461 = vdwg.mxu0
      %v462 = vmax.f32 %v456, 0.0
      %v463 = vmax.f32 %v458, 0.0
      %v464 = vpack.c.bf16 %v462, %v462
      %v465 = vpack.c.bf16 %v463, %v463
      %v466 = vld [vmem:[%s5] sm:$0xf]
      %v467 = vld [vmem:[%s5 + $0x4] sm:$0xf]
      %v468 = vld [vmem:[%s5 + $0x8] sm:$0xf]
      %v469 = vld [vmem:[%s5 + $0xc] sm:$0xf]
      %v470 = vld [vmem:[%s5 + $0x10] sm:$0xf]
      %v471 = vld [vmem:[%s5 + $0x14] sm:$0xf]
      %v472 = vld [vmem:[%s5 + $0x18] sm:$0xf]
      %v473 = vld [vmem:[%s5 + $0x1c] sm:$0xf]
      %v474 = vld [vmem:[%s5 + $0x20] sm:$0xf]
      %v475 = vld [vmem:[%s5 + $0x24] sm:$0xf]
      %v476 = vld [vmem:[%s5 + $0x28] sm:$0xf]
      %v477 = vld [vmem:[%s5 + $0x2c] sm:$0xf]
      %v478 = vld [vmem:[%s5 + $0x30] sm:$0xf]
      %v479 = vld [vmem:[%s5 + $0x34] sm:$0xf]
      %v480 = vld [vmem:[%s5 + $0x38] sm:$0xf]
      %v481 = vld [vmem:[%s5 + $0x3c] sm:$0xf]
      %v482 = vld [vmem:[%s5 + $0x40] sm:$0xf]
      %v483 = vld [vmem:[%s5 + $0x44] sm:$0xf]
      %v484 = vld [vmem:[%s5 + $0x48] sm:$0xf]
      %v485 = vld [vmem:[%s5 + $0x4c] sm:$0xf]
      %v486 = vld [vmem:[%s5 + $0x50] sm:$0xf]
      %v487 = vld [vmem:[%s5 + $0x54] sm:$0xf]
      %v488 = vld [vmem:[%s5 + $0x58] sm:$0xf]
      %v489 = vld [vmem:[%s5 + $0x5c] sm:$0xf]
      %v490 = vld [vmem:[%s5 + $0x60] sm:$0xf]
      %v491 = vld [vmem:[%s5 + $0x64] sm:$0xf]
      %v492 = vld [vmem:[%s5 + $0x68] sm:$0xf]
      %v493 = vld [vmem:[%s5 + $0x6c] sm:$0xf]
      %v494 = vld [vmem:[%s5 + $0x70] sm:$0xf]
      %v495 = vld [vmem:[%s5 + $0x74] sm:$0xf]
      %v496 = vld [vmem:[%s5 + $0x78] sm:$0xf]
      %v497 = vld [vmem:[%s5 + $0x7c] sm:$0xf]
      %v498 = vld [vmem:[%s6] sm:$0x1]
      %v500 = vlaneseq
      %v501 = vshrl.u32 %v500, 7
      %v502 = vsub.s32 0, %v501
      %v503 = vrot.slane %v498, %v502
      %v537 = vunpack.c.l.b16 %v466
      %v538 = vunpack.c.l.b16 %v467
      %v539 = vunpack.c.l.b16 %v468
      %v540 = vunpack.c.l.b16 %v469
      %v541 = vunpack.c.l.b16 %v470
      %v542 = vunpack.c.l.b16 %v471
      %v543 = vunpack.c.l.b16 %v472
      %v544 = vunpack.c.l.b16 %v473
      %v545 = vunpack.c.l.b16 %v474
      %v546 = vunpack.c.l.b16 %v475
      %v547 = vunpack.c.l.b16 %v476
      %v548 = vunpack.c.l.b16 %v477
      %v549 = vunpack.c.l.b16 %v478
      %v550 = vunpack.c.l.b16 %v479
      %v551 = vunpack.c.l.b16 %v480
      %v552 = vunpack.c.l.b16 %v481
      %v553 = vunpack.c.l.b16 %v482
      %v554 = vunpack.c.l.b16 %v483
      %v555 = vunpack.c.l.b16 %v484
      %v556 = vunpack.c.l.b16 %v485
      %v557 = vunpack.c.l.b16 %v486
      %v558 = vunpack.c.l.b16 %v487
      %v559 = vunpack.c.l.b16 %v488
      %v560 = vunpack.c.l.b16 %v489
      %v561 = vunpack.c.l.b16 %v490
      %v562 = vunpack.c.l.b16 %v491
      %v563 = vunpack.c.l.b16 %v492
      %v564 = vunpack.c.l.b16 %v493
      %v565 = vunpack.c.l.b16 %v494
      %v566 = vunpack.c.l.b16 %v495
      %v567 = vunpack.c.l.b16 %v496
      %v568 = vunpack.c.l.b16 %v497
      %v569 = vpack.c.b16 %v538, %v537
      %v570 = vpack.c.b16 %v540, %v539
      %v571 = vpack.c.b16 %v542, %v541
      %v572 = vpack.c.b16 %v544, %v543
      %v573 = vpack.c.b16 %v546, %v545
      %v574 = vpack.c.b16 %v548, %v547
      %v575 = vpack.c.b16 %v550, %v549
      %v576 = vpack.c.b16 %v552, %v551
      %v577 = vpack.c.b16 %v554, %v553
      %v578 = vpack.c.b16 %v556, %v555
      %v579 = vpack.c.b16 %v558, %v557
      %v580 = vpack.c.b16 %v560, %v559
      %v581 = vpack.c.b16 %v562, %v561
      %v582 = vpack.c.b16 %v564, %v563
      %v583 = vpack.c.b16 %v566, %v565
      %v584 = vpack.c.b16 %v568, %v567
      %601 = vmatprep.subr.bf16.mxu0 0
      %602 = vmatpush1.bf16.msra.mxu0 %v576
      %603 = vmatprep.subr.bf16.mxu0 0
      %604 = vmatpush1.bf16.msra.mxu0 %v575
      %605 = vmatprep.subr.bf16.mxu0 0
      %606 = vmatpush1.bf16.msra.mxu0 %v574
      %607 = vmatprep.subr.bf16.mxu0 0
      %608 = vmatpush1.bf16.msra.mxu0 %v573
      %609 = vmatprep.subr.bf16.mxu0 0
      %610 = vmatpush1.bf16.msra.mxu0 %v572
      %611 = vmatprep.subr.bf16.mxu0 0
      %612 = vmatpush1.bf16.msra.mxu0 %v571
      %613 = vmatprep.subr.bf16.mxu0 0
      %614 = vmatpush1.bf16.msra.mxu0 %v570
      %615 = vmatprep.subr.bf16.mxu0 0
      %616 = vmatpush1.bf16.msra.mxu0 %v569
      %617 = vmatprep.subr.bf16.mxu0 0
      %618 = vmatpush2.bf16.msra.mxu0 %v584
      %619 = vmatprep.subr.bf16.mxu0 0
      %620 = vmatpush2.bf16.msra.mxu0 %v583
      %621 = vmatprep.subr.bf16.mxu0 0
      %622 = vmatpush2.bf16.msra.mxu0 %v582
      %623 = vmatprep.subr.bf16.mxu0 0
      %624 = vmatpush2.bf16.msra.mxu0 %v581
      %625 = vmatprep.subr.bf16.mxu0 0
      %626 = vmatpush2.bf16.msra.mxu0 %v580
      %627 = vmatprep.subr.bf16.mxu0 0
      %628 = vmatpush2.bf16.msra.mxu0 %v579
      %629 = vmatprep.subr.bf16.mxu0 0
      %630 = vmatpush2.bf16.msra.mxu0 %v578
      %631 = vmatprep.subr.bf16.mxu0 0
      %632 = vmatpush2.bf16.msra.mxu0 %v577
      %633 = vmatprep.mubr.bf16.mxu0 %v465
      %634 = vmatmul.mubr.bf16.gmra.mxu0 %v464
      %v635 = vpop.f32.mrf.mxu0
      %v636 = vadd.f32 %v503, %v635
      %v637 = vpop.f32.mrf.mxu0
      %v638 = vpop.f32.mrf.mxu0
      %v639 = vpop.f32.mrf.mxu0
      %640 = vdwg.mxu0
      %v641 = vadd.f32 %v275, %v636
      %642 = vst [vmem:[%s273] sm:$0xff] %v641
      %p643 = scmp.lt.s32.totalorder %s18, 1
      %s644 = scalar_select %p643, %s18, 1
      %s645 = smul.addr %s644, 8
      %s646 = scalar_lea.vmem %s7, %s645
      // Predicated region
      $region49: #{_lambda_.11} parent=47 // pred_check
        %p647 = pneg %p188
      $region50: #{_lambda_.11} parent=47 // pred_check_branch
        %649 = sbr.rel (%p647) target = $region52
      $region51: #{_lambda_.11} parent=47 // pred_region
        _
      $region52: #{_lambda_.11} parent=47 // pred_fallthru
        _
    $region48: #{_lambda_.11} parent=5 // pred_fallthru
      _
    %p650 = scmp.le.s32.totalorder 2, %s13
    // Predicated region
    $region53: #{_lambda_.11} parent=5 // pred_check
      %p651 = pneg %p650
    $region54: #{_lambda_.11} parent=5 // pred_check_branch
      %653 = sbr.rel (%p651) target = $region56
    $region55: #{_lambda_.11} parent=5 // pred_region
      %s654 = ssub.s32 %s13, 2
      // Predicated region
      $region57: #{_lambda_.11} parent=55 // pred_check
        %p655 = pneg %p194
      $region58: #{_lambda_.11} parent=55 // pred_check_branch
        %657 = sbr.rel (%p655) target = $region60
      $region59: #{_lambda_.11} parent=55 // pred_region
        %p658 = scmp.lt.s32.totalorder %s19, 1
        %s659 = scalar_select %p658, %s19, 1
        %s660 = smul.addr %s659, 8
        %s661 = scalar_lea.vmem %s7, %s660
      $region60: #{_lambda_.11} parent=55 // pred_fallthru
        _
    $region56: #{_lambda_.11} parent=5 // pred_fallthru
      _
  $region6: #{_lambda_.11} parent=0 // loop_footer
    %s17 = sadd.s32 1, %s13
  $region7: #{_lambda_.11} parent=0 // loop_footer_branch
    %12 = sbr.rel target = $region3
  $region8: #{_lambda_.11} parent=0 // loop_exit
    _

// kernel: _lambda_.15
$region0: #{_lambda_.15}
  #allocation0 [shape = 'u32[]', space=smem, size = 0x4, offset = 0x4, fixed_abs, tag = 'smem constant byte address 0x4 - core index']
  #allocation1 [shape = 'u32[144,128]{1,0:T(1,128)}', space=vmem, size = 0x12000, scoped, tag = 'internal scratch']
  #allocation2 [shape = 'bf16[8,128]{1,0:T(8,128)(2,1)}', space=vmem, size = 0x800, scoped, tag = 'scratch operand']
  %s0 = inlined_call_operand.vmem [shape: f32[16,128], index: 0, kind: input, shape index: {}]
  %s1 = inlined_call_operand.vmem [shape: f32[1,128], index: 1, kind: input, shape index: {}]
  %s2 = inlined_call_operand.vmem [shape: f32[1,128], index: 2, kind: input, shape index: {}]
  %s3 = inlined_call_operand.vmem [shape: bf16[128,128], index: 3, kind: input, shape index: {}]
  %s4 = inlined_call_operand.vmem [shape: f32[1,128], index: 4, kind: input, shape index: {}]
  %s5 = inlined_call_operand.vmem [shape: f32[16,128], index: 5, kind: output, shape index: {}]
  %s6 = sld [smem:[#allocation0]]
  $region57: #{_lambda_.15} parent=0
    _
  %s8 = ssub.s32 1, %s6
  %s9 = scalar_select 0, %s8, %s6
  loop: start=0, step=1, limit=4
  $region2: #{_lambda_.15} parent=0 // loop_pre_header
    _
  $region3: #{_lambda_.15} parent=0 // loop_header
    %s11 = sphi 0, %s15
    %p12 = scmp.ge.s32.totalorder %s11, 4
    %s18 = sphi 0, %s30
    %s19 = sphi 0, %s26
    %s20 = sphi 0, %s18
    %s21 = sphi 0, %s19
    %s22 = sphi 0, %s20
    %s23 = sphi 0, %s21
    %s33 = sphi 0, %s35
    %s36 = sphi 0, %s33
    %s37 = sphi 0, %s36
    %s53 = sphi 0, %s37
    %s57 = sphi 0, %s57
    %s59 = sphi 0, %s57
    %s60 = sphi 0, %s59
    %s74 = sphi 0, %s60
    %s78 = sphi 0, %s78
    %s80 = sphi 0, %s78
    %s81 = sphi 0, %s80
    %s95 = sphi 0, %s81
    %s101 = sphi 0, %s103
    %s104 = sphi 0, %s101
    %s105 = sphi 0, %s104
    %s121 = sphi 0, %s105
    %s127 = sphi 0, %s129
    %s130 = sphi 0, %s127
    %s131 = sphi 0, %s130
    %s147 = sphi 0, %s131
    %s155 = sphi 0, %s157
    %s158 = sphi 0, %s155
    %s159 = sphi 0, %s158
    %s175 = sphi 0, %s159
  $region4: #{_lambda_.15} parent=0 // loop_header_branch
    %14 = sbr.rel (%p12) target = $region8
  $region5: #{_lambda_.15} parent=0 // loop_body
    %s16 = ssub.s32 %s11, 1
    %s17 = ssub.s32 %s11, 2
    %s24 = sadd.s32 1, %s19
    %p25 = scmp.ge.s32.totalorder %s24, 1
    %s26 = scalar_select %p25, 0, %s24
    %s27 = sadd.s32 1, %s18
    %s28 = scalar_select %p25, %s27, %s18
    %p29 = scmp.ge.s32.totalorder %s28, 2
    %s30 = scalar_select %p29, 0, %s28
    %s31 = ssub.s32 %s18, %s30
    %p32 = scmp.eq.s32.totalorder %s31, 0
    %s34 = sadd.s32 %s33, 1
    %s35 = scalar_select %p32, %s33, %s34
    %p38 = pneg %p32
    %p39 = scmp.eq.s32.totalorder %s11, 1
    %p40 = por %p38, %p39
    %p41 = scmp.ne.s32.totalorder %s33, %s36
    %p42 = scmp.eq.s32.totalorder %s11, 0
    %p43 = por %p41, %p42
    %p44 = scmp.ne.s32.totalorder %s33, %s36
    %p45 = scmp.eq.s32.totalorder %s16, 1
    %p46 = por %p44, %p45
    %p47 = scmp.ne.s32.totalorder %s36, %s37
    %p48 = scmp.eq.s32.totalorder %s16, 0
    %p49 = por %p47, %p48
    %p50 = scmp.ne.s32.totalorder %s36, %s37
    %p51 = scmp.eq.s32.totalorder %s17, 1
    %p52 = por %p50, %p51
    %p54 = scmp.ne.s32.totalorder %s37, %s53
    %p55 = scmp.eq.s32.totalorder %s17, 0
    %p56 = por %p54, %p55
    %s58 = sadd.s32 %s57, 1
    %p61 = scmp.eq.s32.totalorder %s11, 1
    %p62 = scmp.ne.s32.totalorder %s57, %s59
    %p63 = scmp.eq.s32.totalorder %s11, 0
    %p64 = por %p62, %p63
    %p65 = scmp.ne.s32.totalorder %s57, %s59
    %p66 = scmp.eq.s32.totalorder %s16, 1
    %p67 = por %p65, %p66
    %p68 = scmp.ne.s32.totalorder %s59, %s60
    %p69 = scmp.eq.s32.totalorder %s16, 0
    %p70 = por %p68, %p69
    %p71 = scmp.ne.s32.totalorder %s59, %s60
    %p72 = scmp.eq.s32.totalorder %s17, 1
    %p73 = por %p71, %p72
    %p75 = scmp.ne.s32.totalorder %s60, %s74
    %p76 = scmp.eq.s32.totalorder %s17, 0
    %p77 = por %p75, %p76
    %s79 = sadd.s32 %s78, 1
    %p82 = scmp.eq.s32.totalorder %s11, 1
    %p83 = scmp.ne.s32.totalorder %s78, %s80
    %p84 = scmp.eq.s32.totalorder %s11, 0
    %p85 = por %p83, %p84
    %p86 = scmp.ne.s32.totalorder %s78, %s80
    %p87 = scmp.eq.s32.totalorder %s16, 1
    %p88 = por %p86, %p87
    %p89 = scmp.ne.s32.totalorder %s80, %s81
    %p90 = scmp.eq.s32.totalorder %s16, 0
    %p91 = por %p89, %p90
    %p92 = scmp.ne.s32.totalorder %s80, %s81
    %p93 = scmp.eq.s32.totalorder %s17, 1
    %p94 = por %p92, %p93
    %p96 = scmp.ne.s32.totalorder %s81, %s95
    %p97 = scmp.eq.s32.totalorder %s17, 0
    %p98 = por %p96, %p97
    %s99 = ssub.s32 %s19, %s26
    %p100 = scmp.eq.s32.totalorder %s99, 0
    %s102 = sadd.s32 %s101, 1
    %s103 = scalar_select %p100, %s101, %s102
    %p106 = pneg %p100
    %p107 = scmp.eq.s32.totalorder %s11, 1
    %p108 = por %p106, %p107
    %p109 = scmp.ne.s32.totalorder %s101, %s104
    %p110 = scmp.eq.s32.totalorder %s11, 0
    %p111 = por %p109, %p110
    %p112 = scmp.ne.s32.totalorder %s101, %s104
    %p113 = scmp.eq.s32.totalorder %s16, 1
    %p114 = por %p112, %p113
    %p115 = scmp.ne.s32.totalorder %s104, %s105
    %p116 = scmp.eq.s32.totalorder %s16, 0
    %p117 = por %p115, %p116
    %p118 = scmp.ne.s32.totalorder %s104, %s105
    %p119 = scmp.eq.s32.totalorder %s17, 1
    %p120 = por %p118, %p119
    %p122 = scmp.ne.s32.totalorder %s105, %s121
    %p123 = scmp.eq.s32.totalorder %s17, 0
    %p124 = por %p122, %p123
    %s125 = ssub.s32 %s19, %s26
    %p126 = scmp.eq.s32.totalorder %s125, 0
    %s128 = sadd.s32 %s127, 1
    %s129 = scalar_select %p126, %s127, %s128
    %p132 = pneg %p126
    %p133 = scmp.eq.s32.totalorder %s11, 1
    %p134 = por %p132, %p133
    %p135 = scmp.ne.s32.totalorder %s127, %s130
    %p136 = scmp.eq.s32.totalorder %s11, 0
    %p137 = por %p135, %p136
    %p138 = scmp.ne.s32.totalorder %s127, %s130
    %p139 = scmp.eq.s32.totalorder %s16, 1
    %p140 = por %p138, %p139
    %p141 = scmp.ne.s32.totalorder %s130, %s131
    %p142 = scmp.eq.s32.totalorder %s16, 0
    %p143 = por %p141, %p142
    %p144 = scmp.ne.s32.totalorder %s130, %s131
    %p145 = scmp.eq.s32.totalorder %s17, 1
    %p146 = por %p144, %p145
    %p148 = scmp.ne.s32.totalorder %s131, %s147
    %p149 = scmp.eq.s32.totalorder %s17, 0
    %p150 = por %p148, %p149
    %s151 = ssub.s32 %s18, %s30
    %s152 = ssub.s32 %s19, %s26
    %s153 = sor.u32 %s151, %s152
    %p154 = scmp.eq.s32.totalorder %s153, 0
    %s156 = sadd.s32 %s155, 1
    %s157 = scalar_select %p154, %s155, %s156
    %p160 = pneg %p154
    %p161 = scmp.eq.s32.totalorder %s11, 1
    %p162 = por %p160, %p161
    %p163 = scmp.ne.s32.totalorder %s155, %s158
    %p164 = scmp.eq.s32.totalorder %s11, 0
    %p165 = por %p163, %p164
    %p166 = scmp.ne.s32.totalorder %s155, %s158
    %p167 = scmp.eq.s32.totalorder %s16, 1
    %p168 = por %p166, %p167
    %p169 = scmp.ne.s32.totalorder %s158, %s159
    %p170 = scmp.eq.s32.totalorder %s16, 0
    %p171 = por %p169, %p170
    %p172 = scmp.ne.s32.totalorder %s158, %s159
    %p173 = scmp.eq.s32.totalorder %s17, 1
    %p174 = por %p172, %p173
    %p176 = scmp.ne.s32.totalorder %s159, %s175
    %p177 = scmp.eq.s32.totalorder %s17, 0
    %p178 = por %p176, %p177
    %p179 = scmp.le.s32.totalorder 1, %s11
    %p180 = scmp.lt.s32.totalorder %s11, 3
    %p181 = pnand %p179, %p180
    %p182 = pneg %p181
    // Predicated region
    $region9: #{_lambda_.15} parent=5 // pred_check
      _
    $region10: #{_lambda_.15} parent=5 // pred_check_branch
      %184 = sbr.rel (%p181) target = $region12
    $region11: #{_lambda_.15} parent=5 // pred_region
      %s185 = ssub.s32 %s11, 1
      // Predicated region
      $region13: #{_lambda_.15} parent=11 // pred_check
        %p186 = pneg %p70
      $region14: #{_lambda_.15} parent=11 // pred_check_branch
        %188 = sbr.rel (%p186) target = $region16
      $region15: #{_lambda_.15} parent=11 // pred_region
        _
      $region16: #{_lambda_.15} parent=11 // pred_fallthru
        _
      // Predicated region
      $region17: #{_lambda_.15} parent=11 // pred_check
        %p189 = pneg %p91
      $region18: #{_lambda_.15} parent=11 // pred_check_branch
        %191 = sbr.rel (%p189) target = $region20
      $region19: #{_lambda_.15} parent=11 // pred_region
        _
      $region20: #{_lambda_.15} parent=11 // pred_fallthru
        _
      // Predicated region
      $region21: #{_lambda_.15} parent=11 // pred_check
        %p192 = pneg %p117
      $region22: #{_lambda_.15} parent=11 // pred_check_branch
        %194 = sbr.rel (%p192) target = $region24
      $region23: #{_lambda_.15} parent=11 // pred_region
        %p195 = scmp.lt.s32.totalorder %s21, 0
        %s196 = scalar_select %p195, %s21, 0
        %s197 = smul.addr %s196, 4
        %s198 = scalar_lea.vmem %s3, %s197
      $region24: #{_lambda_.15} parent=11 // pred_fallthru
        _
      // Predicated region
      $region25: #{_lambda_.15} parent=11 // pred_check
        %p199 = pneg %p143
      $region26: #{_lambda_.15} parent=11 // pred_check_branch
        %201 = sbr.rel (%p199) target = $region28
      $region27: #{_lambda_.15} parent=11 // pred_region
        %p202 = scmp.lt.s32.totalorder %s21, 0
        %s203 = scalar_select %p202, %s21, 0
        %s204 = scalar_lea.vmem %s4, %s203
      $region28: #{_lambda_.15} parent=11 // pred_fallthru
        _
    $region12: #{_lambda_.15} parent=5 // pred_fallthru
      _
    %p205 = scmp.lt.s32.totalorder %s11, 2
    // Predicated region
    $region29: #{_lambda_.15} parent=5 // pred_check
      %p206 = pneg %p205
    $region30: #{_lambda_.15} parent=5 // pred_check_branch
      %208 = sbr.rel (%p206) target = $region32
    $region31: #{_lambda_.15} parent=5 // pred_region
      // Predicated region
      $region33: #{_lambda_.15} parent=31 // pred_check
        %p209 = pneg %p43
      $region34: #{_lambda_.15} parent=31 // pred_check_branch
        %211 = sbr.rel (%p209) target = $region36
      $region35: #{_lambda_.15} parent=31 // pred_region
        %p212 = scmp.lt.s32.totalorder %s18, 1
        %s213 = scalar_select %p212, %s18, 1
        %s214 = smul.addr %s213, 8
        %s215 = scalar_lea.vmem %s0, %s214
      $region36: #{_lambda_.15} parent=31 // pred_fallthru
        _
    $region32: #{_lambda_.15} parent=5 // pred_fallthru
      _
    %p216 = scmp.le.s32.totalorder 1, %s11
    %p217 = scmp.lt.s32.totalorder %s11, 3
    %p218 = pnand %p216, %p217
    %p219 = pneg %p218
    // Predicated region
    $region37: #{_lambda_.15} parent=5 // pred_check
      _
    $region38: #{_lambda_.15} parent=5 // pred_check_branch
      %221 = sbr.rel (%p218) target = $region40
    $region39: #{_lambda_.15} parent=5 // pred_region
      %s222 = ssub.s32 %s11, 1
      %p223 = scmp.lt.s32.totalorder %s20, 1
      %s224 = scalar_select %p223, %s20, 1
      %s225 = smul.addr %s224, 8
      %s226 = scalar_lea.vmem %s0, %s225
      %p227 = pneg %p49
      %p228 = pneg %p46
      %p229 = pneg %p70
      %p230 = pneg %p67
      %p231 = pneg %p91
      %p232 = pneg %p88
      %p233 = scmp.lt.s32.totalorder %s21, 0
      %s234 = scalar_select %p233, %s21, 0
      %s235 = smul.addr %s234, 4
      %s236 = scalar_lea.vmem %s3, %s235
      %p237 = pneg %p117
      %p238 = pneg %p114
      %p239 = scmp.lt.s32.totalorder %s21, 0
      %s240 = scalar_select %p239, %s21, 0
      %s241 = scalar_lea.vmem %s4, %s240
      %p242 = pneg %p143
      %p243 = pneg %p140
      %p244 = pneg %p171
      %p245 = pneg %p168
      %p246 = scmp.lt.s32.totalorder %s20, 1
      %s247 = scalar_select %p246, %s20, 1
      %p248 = scmp.lt.s32.totalorder %s21, 0
      %s249 = scalar_select %p248, %s21, 0
      %s250 = sadd.s32 %s249, %s247
      %s251 = smul.addr %s250, 8
      %s252 = scalar_lea.vmem %s5, %s251
      %p253 = scmp.lt.s32.totalorder %s20, 1
      %s254 = scalar_select %p253, %s20, 1
      %s255 = smul.addr %s254, 8
      %s256 = scalar_lea.vmem %s0, %s255
      %p257 = scmp.lt.s32.totalorder %s21, 0
      %s258 = scalar_select %p257, %s21, 0
      %s259 = smul.addr %s258, 4
      %s260 = scalar_lea.vmem %s3, %s259
      %p261 = scmp.lt.s32.totalorder %s21, 0
      %s262 = scalar_select %p261, %s21, 0
      %s263 = scalar_lea.vmem %s4, %s262
      %p264 = scmp.lt.s32.totalorder %s20, 1
      %s265 = scalar_select %p264, %s20, 1
      %p266 = scmp.lt.s32.totalorder %s21, 0
      %s267 = scalar_select %p266, %s21, 0
      %s268 = sadd.s32 %s267, %s265
      %s269 = smul.addr %s268, 8
      %s270 = scalar_lea.vmem %s5, %s269
      %p272 = scmp.eq.s32.totalorder %s21, 0
      // Predicated region
      $region41: #{_lambda_.15} parent=39 // pred_check
        %p273 = pneg %p272
      $region42: #{_lambda_.15} parent=39 // pred_check_branch
        %275 = sbr.rel (%p273) target = $region44
      $region43: #{_lambda_.15} parent=39 // pred_region
        %v276 = vld [vmem:[%s256] sm:$0xff]
        %v277 = vld [vmem:[%s1] sm:$0x1]
        %v278 = vld [vmem:[%s2] sm:$0x1]
        %279 = vadd.xlane.f32.xlu0 %v276
        %v280 = vpop.xlane.xlu0 %279
        %v281 = vrcp.pop 128.0
        %v282 = vmul.f32 %v280, %v281
        %v283 = vsub.f32 %v276, %v282
        %v284 = vmul.f32 %v283, %v283
        %285 = vadd.xlane.f32.xlu0 %v284
        %v286 = vpop.xlane.xlu0 %285
        %v287 = vrcp.pop 127.0
        %v288 = vmul.f32 %v286, %v287
        %v290 = vlaneseq
        %v291 = vshrl.u32 %v290, 7
        %v292 = vsub.s32 0, %v291
        %v293 = vrot.slane %v277, %v292
        %v295 = vmul.f32 %v293, %v283
        %v296 = vrsqrt.pop %v288
        %v297 = vmul.f32 %v288, %v296
        %vm298 = vcmp.eq.f32.partialorder %v288, inf
        %v299 = vsel %vm298, %v288, %v297
        %vm300 = vcmp.eq.f32.partialorder %v288, 0.0
        %v301 = vand.u32 %v288, 2147483648
        %v302 = vsel %vm300, %v301, %v299
        %v303 = vadd.f32 %v302, 1e-06
        %v304 = vrcp.pop %v303
        %v305 = vmul.f32 %v295, %v304
        %v307 = vlaneseq
        %v308 = vshrl.u32 %v307, 7
        %v309 = vsub.s32 0, %v308
        %v310 = vrot.slane %v278, %v309
        %v312 = vadd.f32 %v305, %v310
        %v313 = vpack.c.bf16 %v312, %v312
        %314 = vst [vmem:[#allocation2] sm:$0xf] %v313
      $region44: #{_lambda_.15} parent=39 // pred_fallthru
        _
      %v315 = vld [vmem:[#allocation2] sm:$0xf]
      %v316 = vld [vmem:[%s260] sm:$0xf]
      %v317 = vld [vmem:[%s260 + $0x4] sm:$0xf]
      %v318 = vld [vmem:[%s260 + $0x8] sm:$0xf]
      %v319 = vld [vmem:[%s260 + $0xc] sm:$0xf]
      %v320 = vld [vmem:[%s260 + $0x10] sm:$0xf]
      %v321 = vld [vmem:[%s260 + $0x14] sm:$0xf]
      %v322 = vld [vmem:[%s260 + $0x18] sm:$0xf]
      %v323 = vld [vmem:[%s260 + $0x1c] sm:$0xf]
      %v324 = vld [vmem:[%s260 + $0x20] sm:$0xf]
      %v325 = vld [vmem:[%s260 + $0x24] sm:$0xf]
      %v326 = vld [vmem:[%s260 + $0x28] sm:$0xf]
      %v327 = vld [vmem:[%s260 + $0x2c] sm:$0xf]
      %v328 = vld [vmem:[%s260 + $0x30] sm:$0xf]
      %v329 = vld [vmem:[%s260 + $0x34] sm:$0xf]
      %v330 = vld [vmem:[%s260 + $0x38] sm:$0xf]
      %v331 = vld [vmem:[%s260 + $0x3c] sm:$0xf]
      %v332 = vld [vmem:[%s263] sm:$0x1]
      %v334 = vlaneseq
      %v335 = vshrl.u32 %v334, 7
      %v336 = vsub.s32 0, %v335
      %v337 = vrot.slane %v332, %v336
      %v355 = vunpack.c.l.b16 %v316
      %v356 = vunpack.c.l.b16 %v317
      %v357 = vunpack.c.l.b16 %v318
      %v358 = vunpack.c.l.b16 %v319
      %v359 = vunpack.c.l.b16 %v320
      %v360 = vunpack.c.l.b16 %v321
      %v361 = vunpack.c.l.b16 %v322
      %v362 = vunpack.c.l.b16 %v323
      %v363 = vunpack.c.l.b16 %v324
      %v364 = vunpack.c.l.b16 %v325
      %v365 = vunpack.c.l.b16 %v326
      %v366 = vunpack.c.l.b16 %v327
      %v367 = vunpack.c.l.b16 %v328
      %v368 = vunpack.c.l.b16 %v329
      %v369 = vunpack.c.l.b16 %v330
      %v370 = vunpack.c.l.b16 %v331
      %v371 = vpack.c.b16 %v356, %v355
      %v372 = vpack.c.b16 %v358, %v357
      %v373 = vpack.c.b16 %v360, %v359
      %v374 = vpack.c.b16 %v362, %v361
      %v375 = vpack.c.b16 %v364, %v363
      %v376 = vpack.c.b16 %v366, %v365
      %v377 = vpack.c.b16 %v368, %v367
      %v378 = vpack.c.b16 %v370, %v369
      %387 = vmatprep.subr.bf16.mxu0 0
      %388 = vmatpush1.bf16.msra.mxu0 %v378
      %389 = vmatprep.subr.bf16.mxu0 0
      %390 = vmatpush1.bf16.msra.mxu0 %v377
      %391 = vmatprep.subr.bf16.mxu0 0
      %392 = vmatpush1.bf16.msra.mxu0 %v376
      %393 = vmatprep.subr.bf16.mxu0 0
      %394 = vmatpush1.bf16.msra.mxu0 %v375
      %395 = vmatprep.subr.bf16.mxu0 0
      %396 = vmatpush1.bf16.msra.mxu0 %v374
      %397 = vmatprep.subr.bf16.mxu0 0
      %398 = vmatpush1.bf16.msra.mxu0 %v373
      %399 = vmatprep.subr.bf16.mxu0 0
      %400 = vmatpush1.bf16.msra.mxu0 %v372
      %401 = vmatprep.subr.bf16.mxu0 0
      %402 = vmatpush1.bf16.msra.mxu0 %v371
      %403 = vmatprep.subr.bf16.mxu0 0
      %404 = vmatpush2.bf16.msra.mxu0 0
      %405 = vmatprep.subr.bf16.mxu0 0
      %406 = vmatpush2.bf16.msra.mxu0 0
      %407 = vmatprep.subr.bf16.mxu0 0
      %408 = vmatpush2.bf16.msra.mxu0 0
      %409 = vmatprep.subr.bf16.mxu0 0
      %410 = vmatpush2.bf16.msra.mxu0 0
      %411 = vmatprep.subr.bf16.mxu0 0
      %412 = vmatpush2.bf16.msra.mxu0 0
      %413 = vmatprep.subr.bf16.mxu0 0
      %414 = vmatpush2.bf16.msra.mxu0 0
      %415 = vmatprep.subr.bf16.mxu0 0
      %416 = vmatpush2.bf16.msra.mxu0 0
      %417 = vmatprep.subr.bf16.mxu0 0
      %418 = vmatpush2.bf16.msra.mxu0 0
      %419 = vmatprep.mubr.bf16.mxu0 0
      %420 = vmatmul.mubr.bf16.gmra.mxu0 %v315
      %v421 = vpop.f32.mrf.mxu0
      %v422 = vadd.f32 %v337, %v421
      %v423 = vpop.f32.mrf.mxu0
      %v424 = vpop.f32.mrf.mxu0
      %v425 = vpop.f32.mrf.mxu0
      %426 = vdwg.mxu0
      %427 = vst [vmem:[%s270] sm:$0xff] %v422
      %p428 = scmp.lt.s32.totalorder %s20, 1
      %s429 = scalar_select %p428, %s20, 1
      %p430 = scmp.lt.s32.totalorder %s21, 0
      %s431 = scalar_select %p430, %s21, 0
      %s432 = sadd.s32 %s431, %s429
      %s433 = smul.addr %s432, 8
      %s434 = scalar_lea.vmem %s5, %s433
      // Predicated region
      $region45: #{_lambda_.15} parent=39 // pred_check
        %p435 = pneg %p168
      $region46: #{_lambda_.15} parent=39 // pred_check_branch
        %437 = sbr.rel (%p435) target = $region48
      $region47: #{_lambda_.15} parent=39 // pred_region
        _
      $region48: #{_lambda_.15} parent=39 // pred_fallthru
        _
    $region40: #{_lambda_.15} parent=5 // pred_fallthru
      _
    %p438 = scmp.le.s32.totalorder 2, %s11
    // Predicated region
    $region49: #{_lambda_.15} parent=5 // pred_check
      %p439 = pneg %p438
    $region50: #{_lambda_.15} parent=5 // pred_check_branch
      %441 = sbr.rel (%p439) target = $region52
    $region51: #{_lambda_.15} parent=5 // pred_region
      %s442 = ssub.s32 %s11, 2
      // Predicated region
      $region53: #{_lambda_.15} parent=51 // pred_check
        %p443 = pneg %p174
      $region54: #{_lambda_.15} parent=51 // pred_check_branch
        %445 = sbr.rel (%p443) target = $region56
      $region55: #{_lambda_.15} parent=51 // pred_region
        %p446 = scmp.lt.s32.totalorder %s22, 1
        %s447 = scalar_select %p446, %s22, 1
        %p448 = scmp.lt.s32.totalorder %s23, 0
        %s449 = scalar_select %p448, %s23, 0
        %s450 = sadd.s32 %s449, %s447
        %s451 = smul.addr %s450, 8
        %s452 = scalar_lea.vmem %s5, %s451
      $region56: #{_lambda_.15} parent=51 // pred_fallthru
        _
    $region52: #{_lambda_.15} parent=5 // pred_fallthru
      _
  $region6: #{_lambda_.15} parent=0 // loop_footer
    %s15 = sadd.s32 1, %s11
  $region7: #{_lambda_.15} parent=0 // loop_footer_branch
    %10 = sbr.rel target = $region3
  $region8: #{_lambda_.15} parent=0 // loop_exit
    _

// kernel: _lambda_.10
$region0: #{_lambda_.10}
  #allocation0 [shape = 'u32[]', space=smem, size = 0x4, offset = 0x4, fixed_abs, tag = 'smem constant byte address 0x4 - core index']
  #allocation1 [shape = 'u32[144,128]{1,0:T(1,128)}', space=vmem, size = 0x12000, scoped, tag = 'internal scratch']
  %s0 = inlined_call_operand.vmem [shape: f32[2,8,128], index: 0, kind: input, shape index: {}]
  %s1 = inlined_call_operand.vmem [shape: f32[2,8,128], index: 1, kind: input, shape index: {}]
  %s2 = inlined_call_operand.vmem [shape: f32[2,8,128], index: 2, kind: input, shape index: {}]
  %s3 = inlined_call_operand.vmem [shape: f32[2,8,128], index: 3, kind: input, shape index: {}]
  %s4 = inlined_call_operand.vmem [shape: bf16[4,32,128], index: 4, kind: input, shape index: {}]
  %s5 = inlined_call_operand.vmem [shape: f32[1,128], index: 5, kind: input, shape index: {}]
  %s6 = inlined_call_operand.vmem [shape: f32[8,8], index: 6, kind: input, shape index: {}]
  %s7 = inlined_call_operand.vmem [shape: f32[2,8,128], index: 7, kind: output, shape index: {}]
  %s8 = sld [smem:[#allocation0]]
  $region61: #{_lambda_.10} parent=0
    _
  %s10 = ssub.s32 1, %s8
  %s11 = scalar_select 0, %s10, %s8
  loop: start=0, step=1, limit=4
  $region2: #{_lambda_.10} parent=0 // loop_pre_header
    _
  $region3: #{_lambda_.10} parent=0 // loop_header
    %s13 = sphi 0, %s17
    %p14 = scmp.ge.s32.totalorder %s13, 4
    %s20 = sphi 0, %s32
    %s21 = sphi 0, %s28
    %s22 = sphi 0, %s20
    %s23 = sphi 0, %s21
    %s24 = sphi 0, %s22
    %s25 = sphi 0, %s23
    %s37 = sphi 0, %s39
    %s40 = sphi 0, %s37
    %s41 = sphi 0, %s40
    %s57 = sphi 0, %s41
    %s65 = sphi 0, %s67
    %s68 = sphi 0, %s65
    %s69 = sphi 0, %s68
    %s85 = sphi 0, %s69
    %s91 = sphi 0, %s93
    %s94 = sphi 0, %s91
    %s95 = sphi 0, %s94
    %s111 = sphi 0, %s95
    %s117 = sphi 0, %s119
    %s120 = sphi 0, %s117
    %s121 = sphi 0, %s120
    %s137 = sphi 0, %s121
    %s141 = sphi 0, %s141
    %s143 = sphi 0, %s141
    %s144 = sphi 0, %s143
    %s158 = sphi 0, %s144
    %s162 = sphi 0, %s162
    %s164 = sphi 0, %s162
    %s165 = sphi 0, %s164
    %s179 = sphi 0, %s165
    %s185 = sphi 0, %s187
    %s188 = sphi 0, %s185
    %s189 = sphi 0, %s188
    %s205 = sphi 0, %s189
    %s213 = sphi 0, %s215
    %s216 = sphi 0, %s213
    %s217 = sphi 0, %s216
    %s233 = sphi 0, %s217
  $region4: #{_lambda_.10} parent=0 // loop_header_branch
    %16 = sbr.rel (%p14) target = $region8
  $region5: #{_lambda_.10} parent=0 // loop_body
    %s18 = ssub.s32 %s13, 1
    %s19 = ssub.s32 %s13, 2
    %s26 = sadd.s32 1, %s21
    %p27 = scmp.ge.s32.totalorder %s26, 1
    %s28 = scalar_select %p27, 0, %s26
    %s29 = sadd.s32 1, %s20
    %s30 = scalar_select %p27, %s29, %s20
    %p31 = scmp.ge.s32.totalorder %s30, 2
    %s32 = scalar_select %p31, 0, %s30
    %s33 = ssub.s32 %s20, %s32
    %s34 = ssub.s32 %s21, %s28
    %s35 = sor.u32 %s33, %s34
    %p36 = scmp.eq.s32.totalorder %s35, 0
    %s38 = sadd.s32 %s37, 1
    %s39 = scalar_select %p36, %s37, %s38
    %p42 = pneg %p36
    %p43 = scmp.eq.s32.totalorder %s13, 1
    %p44 = por %p42, %p43
    %p45 = scmp.ne.s32.totalorder %s37, %s40
    %p46 = scmp.eq.s32.totalorder %s13, 0
    %p47 = por %p45, %p46
    %p48 = scmp.ne.s32.totalorder %s37, %s40
    %p49 = scmp.eq.s32.totalorder %s18, 1
    %p50 = por %p48, %p49
    %p51 = scmp.ne.s32.totalorder %s40, %s41
    %p52 = scmp.eq.s32.totalorder %s18, 0
    %p53 = por %p51, %p52
    %p54 = scmp.ne.s32.totalorder %s40, %s41
    %p55 = scmp.eq.s32.totalorder %s19, 1
    %p56 = por %p54, %p55
    %p58 = scmp.ne.s32.totalorder %s41, %s57
    %p59 = scmp.eq.s32.totalorder %s19, 0
    %p60 = por %p58, %p59
    %s61 = ssub.s32 %s20, %s32
    %s62 = ssub.s32 %s21, %s28
    %s63 = sor.u32 %s61, %s62
    %p64 = scmp.eq.s32.totalorder %s63, 0
    %s66 = sadd.s32 %s65, 1
    %s67 = scalar_select %p64, %s65, %s66
    %p70 = pneg %p64
    %p71 = scmp.eq.s32.totalorder %s13, 1
    %p72 = por %p70, %p71
    %p73 = scmp.ne.s32.totalorder %s65, %s68
    %p74 = scmp.eq.s32.totalorder %s13, 0
    %p75 = por %p73, %p74
    %p76 = scmp.ne.s32.totalorder %s65, %s68
    %p77 = scmp.eq.s32.totalorder %s18, 1
    %p78 = por %p76, %p77
    %p79 = scmp.ne.s32.totalorder %s68, %s69
    %p80 = scmp.eq.s32.totalorder %s18, 0
    %p81 = por %p79, %p80
    %p82 = scmp.ne.s32.totalorder %s68, %s69
    %p83 = scmp.eq.s32.totalorder %s19, 1
    %p84 = por %p82, %p83
    %p86 = scmp.ne.s32.totalorder %s69, %s85
    %p87 = scmp.eq.s32.totalorder %s19, 0
    %p88 = por %p86, %p87
    %s89 = ssub.s32 %s20, %s32
    %p90 = scmp.eq.s32.totalorder %s89, 0
    %s92 = sadd.s32 %s91, 1
    %s93 = scalar_select %p90, %s91, %s92
    %p96 = pneg %p90
    %p97 = scmp.eq.s32.totalorder %s13, 1
    %p98 = por %p96, %p97
    %p99 = scmp.ne.s32.totalorder %s91, %s94
    %p100 = scmp.eq.s32.totalorder %s13, 0
    %p101 = por %p99, %p100
    %p102 = scmp.ne.s32.totalorder %s91, %s94
    %p103 = scmp.eq.s32.totalorder %s18, 1
    %p104 = por %p102, %p103
    %p105 = scmp.ne.s32.totalorder %s94, %s95
    %p106 = scmp.eq.s32.totalorder %s18, 0
    %p107 = por %p105, %p106
    %p108 = scmp.ne.s32.totalorder %s94, %s95
    %p109 = scmp.eq.s32.totalorder %s19, 1
    %p110 = por %p108, %p109
    %p112 = scmp.ne.s32.totalorder %s95, %s111
    %p113 = scmp.eq.s32.totalorder %s19, 0
    %p114 = por %p112, %p113
    %s115 = ssub.s32 %s20, %s32
    %p116 = scmp.eq.s32.totalorder %s115, 0
    %s118 = sadd.s32 %s117, 1
    %s119 = scalar_select %p116, %s117, %s118
    %p122 = pneg %p116
    %p123 = scmp.eq.s32.totalorder %s13, 1
    %p124 = por %p122, %p123
    %p125 = scmp.ne.s32.totalorder %s117, %s120
    %p126 = scmp.eq.s32.totalorder %s13, 0
    %p127 = por %p125, %p126
    %p128 = scmp.ne.s32.totalorder %s117, %s120
    %p129 = scmp.eq.s32.totalorder %s18, 1
    %p130 = por %p128, %p129
    %p131 = scmp.ne.s32.totalorder %s120, %s121
    %p132 = scmp.eq.s32.totalorder %s18, 0
    %p133 = por %p131, %p132
    %p134 = scmp.ne.s32.totalorder %s120, %s121
    %p135 = scmp.eq.s32.totalorder %s19, 1
    %p136 = por %p134, %p135
    %p138 = scmp.ne.s32.totalorder %s121, %s137
    %p139 = scmp.eq.s32.totalorder %s19, 0
    %p140 = por %p138, %p139
    %s142 = sadd.s32 %s141, 1
    %p145 = scmp.eq.s32.totalorder %s13, 1
    %p146 = scmp.ne.s32.totalorder %s141, %s143
    %p147 = scmp.eq.s32.totalorder %s13, 0
    %p148 = por %p146, %p147
    %p149 = scmp.ne.s32.totalorder %s141, %s143
    %p150 = scmp.eq.s32.totalorder %s18, 1
    %p151 = por %p149, %p150
    %p152 = scmp.ne.s32.totalorder %s143, %s144
    %p153 = scmp.eq.s32.totalorder %s18, 0
    %p154 = por %p152, %p153
    %p155 = scmp.ne.s32.totalorder %s143, %s144
    %p156 = scmp.eq.s32.totalorder %s19, 1
    %p157 = por %p155, %p156
    %p159 = scmp.ne.s32.totalorder %s144, %s158
    %p160 = scmp.eq.s32.totalorder %s19, 0
    %p161 = por %p159, %p160
    %s163 = sadd.s32 %s162, 1
    %p166 = scmp.eq.s32.totalorder %s13, 1
    %p167 = scmp.ne.s32.totalorder %s162, %s164
    %p168 = scmp.eq.s32.totalorder %s13, 0
    %p169 = por %p167, %p168
    %p170 = scmp.ne.s32.totalorder %s162, %s164
    %p171 = scmp.eq.s32.totalorder %s18, 1
    %p172 = por %p170, %p171
    %p173 = scmp.ne.s32.totalorder %s164, %s165
    %p174 = scmp.eq.s32.totalorder %s18, 0
    %p175 = por %p173, %p174
    %p176 = scmp.ne.s32.totalorder %s164, %s165
    %p177 = scmp.eq.s32.totalorder %s19, 1
    %p178 = por %p176, %p177
    %p180 = scmp.ne.s32.totalorder %s165, %s179
    %p181 = scmp.eq.s32.totalorder %s19, 0
    %p182 = por %p180, %p181
    %s183 = ssub.s32 %s21, %s28
    %p184 = scmp.eq.s32.totalorder %s183, 0
    %s186 = sadd.s32 %s185, 1
    %s187 = scalar_select %p184, %s185, %s186
    %p190 = pneg %p184
    %p191 = scmp.eq.s32.totalorder %s13, 1
    %p192 = por %p190, %p191
    %p193 = scmp.ne.s32.totalorder %s185, %s188
    %p194 = scmp.eq.s32.totalorder %s13, 0
    %p195 = por %p193, %p194
    %p196 = scmp.ne.s32.totalorder %s185, %s188
    %p197 = scmp.eq.s32.totalorder %s18, 1
    %p198 = por %p196, %p197
    %p199 = scmp.ne.s32.totalorder %s188, %s189
    %p200 = scmp.eq.s32.totalorder %s18, 0
    %p201 = por %p199, %p200
    %p202 = scmp.ne.s32.totalorder %s188, %s189
    %p203 = scmp.eq.s32.totalorder %s19, 1
    %p204 = por %p202, %p203
    %p206 = scmp.ne.s32.totalorder %s189, %s205
    %p207 = scmp.eq.s32.totalorder %s19, 0
    %p208 = por %p206, %p207
    %s209 = ssub.s32 %s20, %s32
    %s210 = ssub.s32 %s21, %s28
    %s211 = sor.u32 %s209, %s210
    %p212 = scmp.eq.s32.totalorder %s211, 0
    %s214 = sadd.s32 %s213, 1
    %s215 = scalar_select %p212, %s213, %s214
    %p218 = pneg %p212
    %p219 = scmp.eq.s32.totalorder %s13, 1
    %p220 = por %p218, %p219
    %p221 = scmp.ne.s32.totalorder %s213, %s216
    %p222 = scmp.eq.s32.totalorder %s13, 0
    %p223 = por %p221, %p222
    %p224 = scmp.ne.s32.totalorder %s213, %s216
    %p225 = scmp.eq.s32.totalorder %s18, 1
    %p226 = por %p224, %p225
    %p227 = scmp.ne.s32.totalorder %s216, %s217
    %p228 = scmp.eq.s32.totalorder %s18, 0
    %p229 = por %p227, %p228
    %p230 = scmp.ne.s32.totalorder %s216, %s217
    %p231 = scmp.eq.s32.totalorder %s19, 1
    %p232 = por %p230, %p231
    %p234 = scmp.ne.s32.totalorder %s217, %s233
    %p235 = scmp.eq.s32.totalorder %s19, 0
    %p236 = por %p234, %p235
    %p237 = scmp.le.s32.totalorder 1, %s13
    %p238 = scmp.lt.s32.totalorder %s13, 3
    %p239 = pnand %p237, %p238
    %p240 = pneg %p239
    // Predicated region
    $region9: #{_lambda_.10} parent=5 // pred_check
      _
    $region10: #{_lambda_.10} parent=5 // pred_check_branch
      %242 = sbr.rel (%p239) target = $region12
    $region11: #{_lambda_.10} parent=5 // pred_region
      %s243 = ssub.s32 %s13, 1
      // Predicated region
      $region13: #{_lambda_.10} parent=11 // pred_check
        %p244 = pneg %p154
      $region14: #{_lambda_.10} parent=11 // pred_check_branch
        %246 = sbr.rel (%p244) target = $region16
      $region15: #{_lambda_.10} parent=11 // pred_region
        _
      $region16: #{_lambda_.10} parent=11 // pred_fallthru
        _
      // Predicated region
      $region17: #{_lambda_.10} parent=11 // pred_check
        %p247 = pneg %p175
      $region18: #{_lambda_.10} parent=11 // pred_check_branch
        %249 = sbr.rel (%p247) target = $region20
      $region19: #{_lambda_.10} parent=11 // pred_region
        _
      $region20: #{_lambda_.10} parent=11 // pred_fallthru
        _
      // Predicated region
      $region21: #{_lambda_.10} parent=11 // pred_check
        %p250 = pneg %p201
      $region22: #{_lambda_.10} parent=11 // pred_check_branch
        %252 = sbr.rel (%p250) target = $region24
      $region23: #{_lambda_.10} parent=11 // pred_region
        %p253 = scmp.lt.s32.totalorder %s23, 0
        %s254 = scalar_select %p253, %s23, 0
        %s255 = smul.addr %s254, 8
        %s256 = scalar_lea.vmem %s6, %s255
      $region24: #{_lambda_.10} parent=11 // pred_fallthru
        _
    $region12: #{_lambda_.10} parent=5 // pred_fallthru
      _
    %p257 = scmp.lt.s32.totalorder %s13, 2
    // Predicated region
    $region25: #{_lambda_.10} parent=5 // pred_check
      %p258 = pneg %p257
    $region26: #{_lambda_.10} parent=5 // pred_check_branch
      %260 = sbr.rel (%p258) target = $region28
    $region27: #{_lambda_.10} parent=5 // pred_region
      // Predicated region
      $region29: #{_lambda_.10} parent=27 // pred_check
        %p261 = pneg %p47
      $region30: #{_lambda_.10} parent=27 // pred_check_branch
        %263 = sbr.rel (%p261) target = $region32
      $region31: #{_lambda_.10} parent=27 // pred_region
        %p264 = scmp.lt.s32.totalorder %s20, 1
        %s265 = scalar_select %p264, %s20, 1
        %p266 = scmp.lt.s32.totalorder %s21, 0
        %s267 = scalar_select %p266, %s21, 0
        %s268 = sadd.s32 %s267, %s265
        %s269 = smul.addr %s268, 8
        %s270 = scalar_lea.vmem %s0, %s269
      $region32: #{_lambda_.10} parent=27 // pred_fallthru
        _
      // Predicated region
      $region33: #{_lambda_.10} parent=27 // pred_check
        %p271 = pneg %p75
      $region34: #{_lambda_.10} parent=27 // pred_check_branch
        %273 = sbr.rel (%p271) target = $region36
      $region35: #{_lambda_.10} parent=27 // pred_region
        %p274 = scmp.lt.s32.totalorder %s20, 1
        %s275 = scalar_select %p274, %s20, 1
        %p276 = scmp.lt.s32.totalorder %s21, 0
        %s277 = scalar_select %p276, %s21, 0
        %s278 = sadd.s32 %s277, %s275
        %s279 = smul.addr %s278, 8
        %s280 = scalar_lea.vmem %s1, %s279
      $region36: #{_lambda_.10} parent=27 // pred_fallthru
        _
      // Predicated region
      $region37: #{_lambda_.10} parent=27 // pred_check
        %p281 = pneg %p101
      $region38: #{_lambda_.10} parent=27 // pred_check_branch
        %283 = sbr.rel (%p281) target = $region40
      $region39: #{_lambda_.10} parent=27 // pred_region
        %p284 = scmp.lt.s32.totalorder %s20, 1
        %s285 = scalar_select %p284, %s20, 1
        %s286 = smul.addr %s285, 8
        %s287 = scalar_lea.vmem %s2, %s286
      $region40: #{_lambda_.10} parent=27 // pred_fallthru
        _
      // Predicated region
      $region41: #{_lambda_.10} parent=27 // pred_check
        %p288 = pneg %p127
      $region42: #{_lambda_.10} parent=27 // pred_check_branch
        %290 = sbr.rel (%p288) target = $region44
      $region43: #{_lambda_.10} parent=27 // pred_region
        %p291 = scmp.lt.s32.totalorder %s20, 1
        %s292 = scalar_select %p291, %s20, 1
        %s293 = smul.addr %s292, 8
        %s294 = scalar_lea.vmem %s3, %s293
      $region44: #{_lambda_.10} parent=27 // pred_fallthru
        _
    $region28: #{_lambda_.10} parent=5 // pred_fallthru
      _
    %p295 = scmp.le.s32.totalorder 1, %s13
    %p296 = scmp.lt.s32.totalorder %s13, 3
    %p297 = pnand %p295, %p296
    %p298 = pneg %p297
    // Predicated region
    $region45: #{_lambda_.10} parent=5 // pred_check
      _
    $region46: #{_lambda_.10} parent=5 // pred_check_branch
      %300 = sbr.rel (%p297) target = $region48
    $region47: #{_lambda_.10} parent=5 // pred_region
      %s301 = ssub.s32 %s13, 1
      %p302 = scmp.lt.s32.totalorder %s22, 1
      %s303 = scalar_select %p302, %s22, 1
      %p304 = scmp.lt.s32.totalorder %s23, 0
      %s305 = scalar_select %p304, %s23, 0
      %s306 = sadd.s32 %s305, %s303
      %s307 = smul.addr %s306, 8
      %s308 = scalar_lea.vmem %s0, %s307
      %p309 = pneg %p53
      %p310 = pneg %p50
      %p311 = scmp.lt.s32.totalorder %s22, 1
      %s312 = scalar_select %p311, %s22, 1
      %p313 = scmp.lt.s32.totalorder %s23, 0
      %s314 = scalar_select %p313, %s23, 0
      %s315 = sadd.s32 %s314, %s312
      %s316 = smul.addr %s315, 8
      %s317 = scalar_lea.vmem %s1, %s316
      %p318 = pneg %p81
      %p319 = pneg %p78
      %p320 = scmp.lt.s32.totalorder %s22, 1
      %s321 = scalar_select %p320, %s22, 1
      %s322 = smul.addr %s321, 8
      %s323 = scalar_lea.vmem %s2, %s322
      %p324 = pneg %p107
      %p325 = pneg %p104
      %p326 = scmp.lt.s32.totalorder %s22, 1
      %s327 = scalar_select %p326, %s22, 1
      %s328 = smul.addr %s327, 8
      %s329 = scalar_lea.vmem %s3, %s328
      %p330 = pneg %p133
      %p331 = pneg %p130
      %p332 = pneg %p154
      %p333 = pneg %p151
      %p334 = pneg %p175
      %p335 = pneg %p172
      %p336 = scmp.lt.s32.totalorder %s23, 0
      %s337 = scalar_select %p336, %s23, 0
      %s338 = smul.addr %s337, 8
      %s339 = scalar_lea.vmem %s6, %s338
      %p340 = pneg %p201
      %p341 = pneg %p198
      %p342 = pneg %p229
      %p343 = pneg %p226
      %p344 = scmp.lt.s32.totalorder %s22, 1
      %s345 = scalar_select %p344, %s22, 1
      %p346 = scmp.lt.s32.totalorder %s23, 0
      %s347 = scalar_select %p346, %s23, 0
      %s348 = sadd.s32 %s347, %s345
      %s349 = smul.addr %s348, 8
      %s350 = scalar_lea.vmem %s7, %s349
      %p351 = scmp.lt.s32.totalorder %s22, 1
      %s352 = scalar_select %p351, %s22, 1
      %p353 = scmp.lt.s32.totalorder %s23, 0
      %s354 = scalar_select %p353, %s23, 0
      %s355 = sadd.s32 %s354, %s352
      %s356 = smul.addr %s355, 8
      %s357 = scalar_lea.vmem %s0, %s356
      %p358 = scmp.lt.s32.totalorder %s22, 1
      %s359 = scalar_select %p358, %s22, 1
      %p360 = scmp.lt.s32.totalorder %s23, 0
      %s361 = scalar_select %p360, %s23, 0
      %s362 = sadd.s32 %s361, %s359
      %s363 = smul.addr %s362, 8
      %s364 = scalar_lea.vmem %s1, %s363
      %p365 = scmp.lt.s32.totalorder %s22, 1
      %s366 = scalar_select %p365, %s22, 1
      %s367 = smul.addr %s366, 8
      %s368 = scalar_lea.vmem %s2, %s367
      %p369 = scmp.lt.s32.totalorder %s22, 1
      %s370 = scalar_select %p369, %s22, 1
      %s371 = smul.addr %s370, 8
      %s372 = scalar_lea.vmem %s3, %s371
      %p373 = scmp.lt.s32.totalorder %s23, 0
      %s374 = scalar_select %p373, %s23, 0
      %s375 = smul.addr %s374, 8
      %s376 = scalar_lea.vmem %s6, %s375
      %p377 = scmp.lt.s32.totalorder %s22, 1
      %s378 = scalar_select %p377, %s22, 1
      %p379 = scmp.lt.s32.totalorder %s23, 0
      %s380 = scalar_select %p379, %s23, 0
      %s381 = sadd.s32 %s380, %s378
      %s382 = smul.addr %s381, 8
      %s383 = scalar_lea.vmem %s7, %s382
      %v385 = vld [vmem:[%s357] sm:$0xff]
      %v386 = vld [vmem:[%s364] sm:$0xff]
      %v387 = vld [vmem:[%s368] sm:$0xff]
      %v388 = vld [vmem:[%s372] sm:$0xff]
      %v389 = vld [vmem:[%s376] sm:$0xff]
      %vm390 = vcmp.ge.f32.partialorder %v389, 0.5
      %392 = vrot.lane.b32.xlu0 %v386, 96
      %v393 = vpop.permute.xlu0 %392
      %395 = vrot.lane.b32.xlu0 %v386, 64
      %v396 = vpop.permute.xlu0 %395
      %398 = vrot.lane.b32.xlu0 %v386, 32
      %v399 = vpop.permute.xlu0 %398
      %402 = vrot.lane.b32.xlu0 %v387, 96
      %v403 = vpop.permute.xlu0 %402
      %405 = vrot.lane.b32.xlu0 %v387, 64
      %v406 = vpop.permute.xlu0 %405
      %408 = vrot.lane.b32.xlu0 %v387, 32
      %v409 = vpop.permute.xlu0 %408
      %412 = vrot.lane.b32.xlu0 %v388, 96
      %v413 = vpop.permute.xlu0 %412
      %415 = vrot.lane.b32.xlu0 %v388, 64
      %v416 = vpop.permute.xlu0 %415
      %418 = vrot.lane.b32.xlu0 %v388, 32
      %v419 = vpop.permute.xlu0 %418
      %v421 = vpack.c.bf16 %v388, %v388
      %v422 = vpack.c.bf16 %v413, %v413
      %v423 = vpack.c.bf16 %v416, %v416
      %v424 = vpack.c.bf16 %v419, %v419
      %v425 = vmul.f32 %v386, %v386
      %v426 = vmul.f32 %v393, %v393
      %v427 = vmul.f32 %v396, %v396
      %v428 = vmul.f32 %v399, %v399
      %vm429 = vcmask 261120
      %v430 = vsel %vm429, %v425, 0.0
      %431 = vadd.xlane.f32.xlu0 %v430
      %v432 = vpop.xlane.xlu0 %431
      %v433 = vsel %vm429, %v426, 0.0
      %434 = vadd.xlane.f32.xlu0 %v433
      %v435 = vpop.xlane.xlu0 %434
      %v436 = vsel %vm429, %v427, 0.0
      %437 = vadd.xlane.f32.xlu0 %v436
      %v438 = vpop.xlane.xlu0 %437
      %v439 = vsel %vm429, %v428, 0.0
      %440 = vadd.xlane.f32.xlu0 %v439
      %v441 = vpop.xlane.xlu0 %440
      %v442 = vmul.f32 %v387, %v387
      %v443 = vmul.f32 %v403, %v403
      %v444 = vmul.f32 %v406, %v406
      %v445 = vmul.f32 %v409, %v409
      %v447 = vsel %vm429, 1.0, 0
      %v450 = vsel %vm429, %v442, 0
      %452 = vmatprep.subr.mxu0 0.0
      %453 = vmatpush1.xpose.msra.mxu0 0.0
      %454 = vmatprep.subr.mxu0 0.0
      %455 = vmatpush1.xpose.msra.mxu0 0.0
      %456 = vmatprep.subr.mxu0 0.0
      %457 = vmatpush1.xpose.msra.mxu0 0.0
      %458 = vmatprep.subr.mxu0 0.0
      %459 = vmatpush1.xpose.msra.mxu0 0.0
      %460 = vmatprep.subr.mxu0 0.0
      %461 = vmatpush1.xpose.msra.mxu0 0.0
      %462 = vmatprep.subr.mxu0 0.0
      %463 = vmatpush1.xpose.msra.mxu0 0.0
      %464 = vmatprep.subr.mxu0 0.0
      %465 = vmatpush1.xpose.msra.mxu0 0.0
      %466 = vmatprep.subr.mxu0 0.0
      %467 = vmatpush1.xpose.msra.mxu0 0.0
      %468 = vmatprep.subr.mxu0 0.0
      %469 = vmatpush1.xpose.msra.mxu0 0.0
      %470 = vmatprep.subr.mxu0 0.0
      %471 = vmatpush1.xpose.msra.mxu0 0.0
      %472 = vmatprep.subr.mxu0 0.0
      %473 = vmatpush1.xpose.msra.mxu0 0.0
      %474 = vmatprep.subr.mxu0 0.0
      %475 = vmatpush1.xpose.msra.mxu0 0.0
      %476 = vmatprep.subr.mxu0 0.0
      %477 = vmatpush1.xpose.msra.mxu0 0.0
      %478 = vmatprep.subr.mxu0 0.0
      %479 = vmatpush1.xpose.msra.mxu0 0.0
      %480 = vmatprep.subr.mxu0 0.0
      %481 = vmatpush1.xpose.msra.mxu0 0.0
      %482 = vmatprep.subr.mxu0 0.0
      %483 = vmatpush1.xpose.msra.mxu0 %v450
      %484 = vmatprep.subr.mxu0 0.0
      %485 = vmatpush2.xpose.msra.mxu0 0.0
      %486 = vmatprep.subr.mxu0 0.0
      %487 = vmatpush2.xpose.msra.mxu0 0.0
      %488 = vmatprep.subr.mxu0 0.0
      %489 = vmatpush2.xpose.msra.mxu0 0.0
      %490 = vmatprep.subr.mxu0 0.0
      %491 = vmatpush2.xpose.msra.mxu0 0.0
      %492 = vmatprep.subr.mxu0 0.0
      %493 = vmatpush2.xpose.msra.mxu0 0.0
      %494 = vmatprep.subr.mxu0 0.0
      %495 = vmatpush2.xpose.msra.mxu0 0.0
      %496 = vmatprep.subr.mxu0 0.0
      %497 = vmatpush2.xpose.msra.mxu0 0.0
      %498 = vmatprep.subr.mxu0 0.0
      %499 = vmatpush2.xpose.msra.mxu0 0.0
      %500 = vmatprep.subr.mxu0 0.0
      %501 = vmatpush2.xpose.msra.mxu0 0.0
      %502 = vmatprep.subr.mxu0 0.0
      %503 = vmatpush2.xpose.msra.mxu0 0.0
      %504 = vmatprep.subr.mxu0 0.0
      %505 = vmatpush2.xpose.msra.mxu0 0.0
      %506 = vmatprep.subr.mxu0 0.0
      %507 = vmatpush2.xpose.msra.mxu0 0.0
      %508 = vmatprep.subr.mxu0 0.0
      %509 = vmatpush2.xpose.msra.mxu0 0.0
      %510 = vmatprep.subr.mxu0 0.0
      %511 = vmatpush2.xpose.msra.mxu0 0.0
      %512 = vmatprep.subr.mxu0 0.0
      %513 = vmatpush2.xpose.msra.mxu0 0.0
      %514 = vmatprep.subr.mxu0 0.0
      %515 = vmatpush2.xpose.msra.mxu0 0.0
      %516 = vmatprep.mubr.f32.mxu0 0.0
      %517 = vmatmul.mubr.f32.gmra.mxu0 %v447
      %v518 = vpop.f32.mrf.mxu0
      %v519 = vadd.f32 0.0, %v518
      %v520 = vpop.f32.mrf.mxu0
      %521 = vdwg.mxu0
      %v523 = vsel %vm429, %v443, 0
      %525 = vmatprep.subr.mxu0 0.0
      %526 = vmatpush1.xpose.msra.mxu0 0.0
      %527 = vmatprep.subr.mxu0 0.0
      %528 = vmatpush1.xpose.msra.mxu0 0.0
      %529 = vmatprep.subr.mxu0 0.0
      %530 = vmatpush1.xpose.msra.mxu0 0.0
      %531 = vmatprep.subr.mxu0 0.0
      %532 = vmatpush1.xpose.msra.mxu0 0.0
      %533 = vmatprep.subr.mxu0 0.0
      %534 = vmatpush1.xpose.msra.mxu0 0.0
      %535 = vmatprep.subr.mxu0 0.0
      %536 = vmatpush1.xpose.msra.mxu0 0.0
      %537 = vmatprep.subr.mxu0 0.0
      %538 = vmatpush1.xpose.msra.mxu0 0.0
      %539 = vmatprep.subr.mxu0 0.0
      %540 = vmatpush1.xpose.msra.mxu0 0.0
      %541 = vmatprep.subr.mxu0 0.0
      %542 = vmatpush1.xpose.msra.mxu0 0.0
      %543 = vmatprep.subr.mxu0 0.0
      %544 = vmatpush1.xpose.msra.mxu0 0.0
      %545 = vmatprep.subr.mxu0 0.0
      %546 = vmatpush1.xpose.msra.mxu0 0.0
      %547 = vmatprep.subr.mxu0 0.0
      %548 = vmatpush1.xpose.msra.mxu0 0.0
      %549 = vmatprep.subr.mxu0 0.0
      %550 = vmatpush1.xpose.msra.mxu0 0.0
      %551 = vmatprep.subr.mxu0 0.0
      %552 = vmatpush1.xpose.msra.mxu0 0.0
      %553 = vmatprep.subr.mxu0 0.0
      %554 = vmatpush1.xpose.msra.mxu0 0.0
      %555 = vmatprep.subr.mxu0 0.0
      %556 = vmatpush1.xpose.msra.mxu0 %v523
      %557 = vmatprep.subr.mxu0 0.0
      %558 = vmatpush2.xpose.msra.mxu0 0.0
      %559 = vmatprep.subr.mxu0 0.0
      %560 = vmatpush2.xpose.msra.mxu0 0.0
      %561 = vmatprep.subr.mxu0 0.0
      %562 = vmatpush2.xpose.msra.mxu0 0.0
      %563 = vmatprep.subr.mxu0 0.0
      %564 = vmatpush2.xpose.msra.mxu0 0.0
      %565 = vmatprep.subr.mxu0 0.0
      %566 = vmatpush2.xpose.msra.mxu0 0.0
      %567 = vmatprep.subr.mxu0 0.0
      %568 = vmatpush2.xpose.msra.mxu0 0.0
      %569 = vmatprep.subr.mxu0 0.0
      %570 = vmatpush2.xpose.msra.mxu0 0.0
      %571 = vmatprep.subr.mxu0 0.0
      %572 = vmatpush2.xpose.msra.mxu0 0.0
      %573 = vmatprep.subr.mxu0 0.0
      %574 = vmatpush2.xpose.msra.mxu0 0.0
      %575 = vmatprep.subr.mxu0 0.0
      %576 = vmatpush2.xpose.msra.mxu0 0.0
      %577 = vmatprep.subr.mxu0 0.0
      %578 = vmatpush2.xpose.msra.mxu0 0.0
      %579 = vmatprep.subr.mxu0 0.0
      %580 = vmatpush2.xpose.msra.mxu0 0.0
      %581 = vmatprep.subr.mxu0 0.0
      %582 = vmatpush2.xpose.msra.mxu0 0.0
      %583 = vmatprep.subr.mxu0 0.0
      %584 = vmatpush2.xpose.msra.mxu0 0.0
      %585 = vmatprep.subr.mxu0 0.0
      %586 = vmatpush2.xpose.msra.mxu0 0.0
      %587 = vmatprep.subr.mxu0 0.0
      %588 = vmatpush2.xpose.msra.mxu0 0.0
      %589 = vmatprep.mubr.f32.mxu0 0.0
      %590 = vmatmul.mubr.f32.gmra.mxu0 %v447
      %v591 = vpop.f32.mrf.mxu0
      %v592 = vadd.f32 0.0, %v591
      %v593 = vpop.f32.mrf.mxu0
      %594 = vdwg.mxu0
      %v596 = vsel %vm429, %v444, 0
      %598 = vmatprep.subr.mxu0 0.0
      %599 = vmatpush1.xpose.msra.mxu0 0.0
      %600 = vmatprep.subr.mxu0 0.0
      %601 = vmatpush1.xpose.msra.mxu0 0.0
      %602 = vmatprep.subr.mxu0 0.0
      %603 = vmatpush1.xpose.msra.mxu0 0.0
      %604 = vmatprep.subr.mxu0 0.0
      %605 = vmatpush1.xpose.msra.mxu0 0.0
      %606 = vmatprep.subr.mxu0 0.0
      %607 = vmatpush1.xpose.msra.mxu0 0.0
      %608 = vmatprep.subr.mxu0 0.0
      %609 = vmatpush1.xpose.msra.mxu0 0.0
      %610 = vmatprep.subr.mxu0 0.0
      %611 = vmatpush1.xpose.msra.mxu0 0.0
      %612 = vmatprep.subr.mxu0 0.0
      %613 = vmatpush1.xpose.msra.mxu0 0.0
      %614 = vmatprep.subr.mxu0 0.0
      %615 = vmatpush1.xpose.msra.mxu0 0.0
      %616 = vmatprep.subr.mxu0 0.0
      %617 = vmatpush1.xpose.msra.mxu0 0.0
      %618 = vmatprep.subr.mxu0 0.0
      %619 = vmatpush1.xpose.msra.mxu0 0.0
      %620 = vmatprep.subr.mxu0 0.0
      %621 = vmatpush1.xpose.msra.mxu0 0.0
      %622 = vmatprep.subr.mxu0 0.0
      %623 = vmatpush1.xpose.msra.mxu0 0.0
      %624 = vmatprep.subr.mxu0 0.0
      %625 = vmatpush1.xpose.msra.mxu0 0.0
      %626 = vmatprep.subr.mxu0 0.0
      %627 = vmatpush1.xpose.msra.mxu0 0.0
      %628 = vmatprep.subr.mxu0 0.0
      %629 = vmatpush1.xpose.msra.mxu0 %v596
      %630 = vmatprep.subr.mxu0 0.0
      %631 = vmatpush2.xpose.msra.mxu0 0.0
      %632 = vmatprep.subr.mxu0 0.0
      %633 = vmatpush2.xpose.msra.mxu0 0.0
      %634 = vmatprep.subr.mxu0 0.0
      %635 = vmatpush2.xpose.msra.mxu0 0.0
      %636 = vmatprep.subr.mxu0 0.0
      %637 = vmatpush2.xpose.msra.mxu0 0.0
      %638 = vmatprep.subr.mxu0 0.0
      %639 = vmatpush2.xpose.msra.mxu0 0.0
      %640 = vmatprep.subr.mxu0 0.0
      %641 = vmatpush2.xpose.msra.mxu0 0.0
      %642 = vmatprep.subr.mxu0 0.0
      %643 = vmatpush2.xpose.msra.mxu0 0.0
      %644 = vmatprep.subr.mxu0 0.0
      %645 = vmatpush2.xpose.msra.mxu0 0.0
      %646 = vmatprep.subr.mxu0 0.0
      %647 = vmatpush2.xpose.msra.mxu0 0.0
      %648 = vmatprep.subr.mxu0 0.0
      %649 = vmatpush2.xpose.msra.mxu0 0.0
      %650 = vmatprep.subr.mxu0 0.0
      %651 = vmatpush2.xpose.msra.mxu0 0.0
      %652 = vmatprep.subr.mxu0 0.0
      %653 = vmatpush2.xpose.msra.mxu0 0.0
      %654 = vmatprep.subr.mxu0 0.0
      %655 = vmatpush2.xpose.msra.mxu0 0.0
      %656 = vmatprep.subr.mxu0 0.0
      %657 = vmatpush2.xpose.msra.mxu0 0.0
      %658 = vmatprep.subr.mxu0 0.0
      %659 = vmatpush2.xpose.msra.mxu0 0.0
      %660 = vmatprep.subr.mxu0 0.0
      %661 = vmatpush2.xpose.msra.mxu0 0.0
      %662 = vmatprep.mubr.f32.mxu0 0.0
      %663 = vmatmul.mubr.f32.gmra.mxu0 %v447
      %v664 = vpop.f32.mrf.mxu0
      %v665 = vadd.f32 0.0, %v664
      %v666 = vpop.f32.mrf.mxu0
      %667 = vdwg.mxu0
      %v669 = vsel %vm429, %v445, 0
      %671 = vmatprep.subr.mxu0 0.0
      %672 = vmatpush1.xpose.msra.mxu0 0.0
      %673 = vmatprep.subr.mxu0 0.0
      %674 = vmatpush1.xpose.msra.mxu0 0.0
      %675 = vmatprep.subr.mxu0 0.0
      %676 = vmatpush1.xpose.msra.mxu0 0.0
      %677 = vmatprep.subr.mxu0 0.0
      %678 = vmatpush1.xpose.msra.mxu0 0.0
      %679 = vmatprep.subr.mxu0 0.0
      %680 = vmatpush1.xpose.msra.mxu0 0.0
      %681 = vmatprep.subr.mxu0 0.0
      %682 = vmatpush1.xpose.msra.mxu0 0.0
      %683 = vmatprep.subr.mxu0 0.0
      %684 = vmatpush1.xpose.msra.mxu0 0.0
      %685 = vmatprep.subr.mxu0 0.0
      %686 = vmatpush1.xpose.msra.mxu0 0.0
      %687 = vmatprep.subr.mxu0 0.0
      %688 = vmatpush1.xpose.msra.mxu0 0.0
      %689 = vmatprep.subr.mxu0 0.0
      %690 = vmatpush1.xpose.msra.mxu0 0.0
      %691 = vmatprep.subr.mxu0 0.0
      %692 = vmatpush1.xpose.msra.mxu0 0.0
      %693 = vmatprep.subr.mxu0 0.0
      %694 = vmatpush1.xpose.msra.mxu0 0.0
      %695 = vmatprep.subr.mxu0 0.0
      %696 = vmatpush1.xpose.msra.mxu0 0.0
      %697 = vmatprep.subr.mxu0 0.0
      %698 = vmatpush1.xpose.msra.mxu0 0.0
      %699 = vmatprep.subr.mxu0 0.0
      %700 = vmatpush1.xpose.msra.mxu0 0.0
      %701 = vmatprep.subr.mxu0 0.0
      %702 = vmatpush1.xpose.msra.mxu0 %v669
      %703 = vmatprep.subr.mxu0 0.0
      %704 = vmatpush2.xpose.msra.mxu0 0.0
      %705 = vmatprep.subr.mxu0 0.0
      %706 = vmatpush2.xpose.msra.mxu0 0.0
      %707 = vmatprep.subr.mxu0 0.0
      %708 = vmatpush2.xpose.msra.mxu0 0.0
      %709 = vmatprep.subr.mxu0 0.0
      %710 = vmatpush2.xpose.msra.mxu0 0.0
      %711 = vmatprep.subr.mxu0 0.0
      %712 = vmatpush2.xpose.msra.mxu0 0.0
      %713 = vmatprep.subr.mxu0 0.0
      %714 = vmatpush2.xpose.msra.mxu0 0.0
      %715 = vmatprep.subr.mxu0 0.0
      %716 = vmatpush2.xpose.msra.mxu0 0.0
      %717 = vmatprep.subr.mxu0 0.0
      %718 = vmatpush2.xpose.msra.mxu0 0.0
      %719 = vmatprep.subr.mxu0 0.0
      %720 = vmatpush2.xpose.msra.mxu0 0.0
      %721 = vmatprep.subr.mxu0 0.0
      %722 = vmatpush2.xpose.msra.mxu0 0.0
      %723 = vmatprep.subr.mxu0 0.0
      %724 = vmatpush2.xpose.msra.mxu0 0.0
      %725 = vmatprep.subr.mxu0 0.0
      %726 = vmatpush2.xpose.msra.mxu0 0.0
      %727 = vmatprep.subr.mxu0 0.0
      %728 = vmatpush2.xpose.msra.mxu0 0.0
      %729 = vmatprep.subr.mxu0 0.0
      %730 = vmatpush2.xpose.msra.mxu0 0.0
      %731 = vmatprep.subr.mxu0 0.0
      %732 = vmatpush2.xpose.msra.mxu0 0.0
      %733 = vmatprep.subr.mxu0 0.0
      %734 = vmatpush2.xpose.msra.mxu0 0.0
      %735 = vmatprep.mubr.f32.mxu0 0.0
      %736 = vmatmul.mubr.f32.gmra.mxu0 %v447
      %v737 = vpop.f32.mrf.mxu0
      %v738 = vadd.f32 0.0, %v737
      %v739 = vpop.f32.mrf.mxu0
      %740 = vdwg.mxu0
      %v741 = vpack.c.bf16 %v386, %v386
      %v742 = vpack.c.bf16 %v393, %v393
      %v743 = vpack.c.bf16 %v396, %v396
      %v744 = vpack.c.bf16 %v399, %v399
      %v745 = vpack.c.bf16 %v387, %v387
      %v746 = vpack.c.bf16 %v403, %v403
      %v747 = vpack.c.bf16 %v406, %v406
      %v748 = vpack.c.bf16 %v409, %v409
      %v750 = vsel %vm429, %v741, 0
      %v753 = vsel %vm429, %v745, 0
      %755 = vmatprep.subr.bf16.mxu0 0
      %756 = vmatpush1.bf16.xpose.msra.mxu0 0
      %757 = vmatprep.subr.bf16.mxu0 0
      %758 = vmatpush1.bf16.xpose.msra.mxu0 0
      %759 = vmatprep.subr.bf16.mxu0 0
      %760 = vmatpush1.bf16.xpose.msra.mxu0 0
      %761 = vmatprep.subr.bf16.mxu0 0
      %762 = vmatpush1.bf16.xpose.msra.mxu0 0
      %763 = vmatprep.subr.bf16.mxu0 0
      %764 = vmatpush1.bf16.xpose.msra.mxu0 0
      %765 = vmatprep.subr.bf16.mxu0 0
      %766 = vmatpush1.bf16.xpose.msra.mxu0 0
      %767 = vmatprep.subr.bf16.mxu0 0
      %768 = vmatpush1.bf16.xpose.msra.mxu0 0
      %769 = vmatprep.subr.bf16.mxu0 0
      %770 = vmatpush1.bf16.xpose.msra.mxu0 %v753
      %771 = vmatprep.subr.bf16.mxu0 0
      %772 = vmatpush2.bf16.xpose.msra.mxu0 0
      %773 = vmatprep.subr.bf16.mxu0 0
      %774 = vmatpush2.bf16.xpose.msra.mxu0 0
      %775 = vmatprep.subr.bf16.mxu0 0
      %776 = vmatpush2.bf16.xpose.msra.mxu0 0
      %777 = vmatprep.subr.bf16.mxu0 0
      %778 = vmatpush2.bf16.xpose.msra.mxu0 0
      %779 = vmatprep.subr.bf16.mxu0 0
      %780 = vmatpush2.bf16.xpose.msra.mxu0 0
      %781 = vmatprep.subr.bf16.mxu0 0
      %782 = vmatpush2.bf16.xpose.msra.mxu0 0
      %783 = vmatprep.subr.bf16.mxu0 0
      %784 = vmatpush2.bf16.xpose.msra.mxu0 0
      %785 = vmatprep.subr.bf16.mxu0 0
      %786 = vmatpush2.bf16.xpose.msra.mxu0 0
      %787 = vmatprep.mubr.bf16.mxu0 0
      %788 = vmatmul.mubr.bf16.gmra.mxu0 %v750
      %v789 = vpop.f32.mrf.mxu0
      %v790 = vadd.f32 0.0, %v789
      %v791 = vpop.f32.mrf.mxu0
      %v792 = vpop.f32.mrf.mxu0
      %v793 = vpop.f32.mrf.mxu0
      %794 = vdwg.mxu0
      %v796 = vsel %vm429, %v742, 0
      %v799 = vsel %vm429, %v746, 0
      %801 = vmatprep.subr.bf16.mxu0 0
      %802 = vmatpush1.bf16.xpose.msra.mxu0 0
      %803 = vmatprep.subr.bf16.mxu0 0
      %804 = vmatpush1.bf16.xpose.msra.mxu0 0
      %805 = vmatprep.subr.bf16.mxu0 0
      %806 = vmatpush1.bf16.xpose.msra.mxu0 0
      %807 = vmatprep.subr.bf16.mxu0 0
      %808 = vmatpush1.bf16.xpose.msra.mxu0 0
      %809 = vmatprep.subr.bf16.mxu0 0
      %810 = vmatpush1.bf16.xpose.msra.mxu0 0
      %811 = vmatprep.subr.bf16.mxu0 0
      %812 = vmatpush1.bf16.xpose.msra.mxu0 0
      %813 = vmatprep.subr.bf16.mxu0 0
      %814 = vmatpush1.bf16.xpose.msra.mxu0 0
      %815 = vmatprep.subr.bf16.mxu0 0
      %816 = vmatpush1.bf16.xpose.msra.mxu0 %v799
      %817 = vmatprep.subr.bf16.mxu0 0
      %818 = vmatpush2.bf16.xpose.msra.mxu0 0
      %819 = vmatprep.subr.bf16.mxu0 0
      %820 = vmatpush2.bf16.xpose.msra.mxu0 0
      %821 = vmatprep.subr.bf16.mxu0 0
      %822 = vmatpush2.bf16.xpose.msra.mxu0 0
      %823 = vmatprep.subr.bf16.mxu0 0
      %824 = vmatpush2.bf16.xpose.msra.mxu0 0
      %825 = vmatprep.subr.bf16.mxu0 0
      %826 = vmatpush2.bf16.xpose.msra.mxu0 0
      %827 = vmatprep.subr.bf16.mxu0 0
      %828 = vmatpush2.bf16.xpose.msra.mxu0 0
      %829 = vmatprep.subr.bf16.mxu0 0
      %830 = vmatpush2.bf16.xpose.msra.mxu0 0
      %831 = vmatprep.subr.bf16.mxu0 0
      %832 = vmatpush2.bf16.xpose.msra.mxu0 0
      %833 = vmatprep.mubr.bf16.mxu0 0
      %834 = vmatmul.mubr.bf16.gmra.mxu0 %v796
      %v835 = vpop.f32.mrf.mxu0
      %v836 = vadd.f32 0.0, %v835
      %v837 = vpop.f32.mrf.mxu0
      %v838 = vpop.f32.mrf.mxu0
      %v839 = vpop.f32.mrf.mxu0
      %840 = vdwg.mxu0
      %v842 = vsel %vm429, %v743, 0
      %v845 = vsel %vm429, %v747, 0
      %847 = vmatprep.subr.bf16.mxu0 0
      %848 = vmatpush1.bf16.xpose.msra.mxu0 0
      %849 = vmatprep.subr.bf16.mxu0 0
      %850 = vmatpush1.bf16.xpose.msra.mxu0 0
      %851 = vmatprep.subr.bf16.mxu0 0
      %852 = vmatpush1.bf16.xpose.msra.mxu0 0
      %853 = vmatprep.subr.bf16.mxu0 0
      %854 = vmatpush1.bf16.xpose.msra.mxu0 0
      %855 = vmatprep.subr.bf16.mxu0 0
      %856 = vmatpush1.bf16.xpose.msra.mxu0 0
      %857 = vmatprep.subr.bf16.mxu0 0
      %858 = vmatpush1.bf16.xpose.msra.mxu0 0
      %859 = vmatprep.subr.bf16.mxu0 0
      %860 = vmatpush1.bf16.xpose.msra.mxu0 0
      %861 = vmatprep.subr.bf16.mxu0 0
      %862 = vmatpush1.bf16.xpose.msra.mxu0 %v845
      %863 = vmatprep.subr.bf16.mxu0 0
      %864 = vmatpush2.bf16.xpose.msra.mxu0 0
      %865 = vmatprep.subr.bf16.mxu0 0
      %866 = vmatpush2.bf16.xpose.msra.mxu0 0
      %867 = vmatprep.subr.bf16.mxu0 0
      %868 = vmatpush2.bf16.xpose.msra.mxu0 0
      %869 = vmatprep.subr.bf16.mxu0 0
      %870 = vmatpush2.bf16.xpose.msra.mxu0 0
      %871 = vmatprep.subr.bf16.mxu0 0
      %872 = vmatpush2.bf16.xpose.msra.mxu0 0
      %873 = vmatprep.subr.bf16.mxu0 0
      %874 = vmatpush2.bf16.xpose.msra.mxu0 0
      %875 = vmatprep.subr.bf16.mxu0 0
      %876 = vmatpush2.bf16.xpose.msra.mxu0 0
      %877 = vmatprep.subr.bf16.mxu0 0
      %878 = vmatpush2.bf16.xpose.msra.mxu0 0
      %879 = vmatprep.mubr.bf16.mxu0 0
      %880 = vmatmul.mubr.bf16.gmra.mxu0 %v842
      %v881 = vpop.f32.mrf.mxu0
      %v882 = vadd.f32 0.0, %v881
      %v883 = vpop.f32.mrf.mxu0
      %v884 = vpop.f32.mrf.mxu0
      %v885 = vpop.f32.mrf.mxu0
      %886 = vdwg.mxu0
      %v888 = vsel %vm429, %v744, 0
      %v891 = vsel %vm429, %v748, 0
      %893 = vmatprep.subr.bf16.mxu0 0
      %894 = vmatpush1.bf16.xpose.msra.mxu0 0
      %895 = vmatprep.subr.bf16.mxu0 0
      %896 = vmatpush1.bf16.xpose.msra.mxu0 0
      %897 = vmatprep.subr.bf16.mxu0 0
      %898 = vmatpush1.bf16.xpose.msra.mxu0 0
      %899 = vmatprep.subr.bf16.mxu0 0
      %900 = vmatpush1.bf16.xpose.msra.mxu0 0
      %901 = vmatprep.subr.bf16.mxu0 0
      %902 = vmatpush1.bf16.xpose.msra.mxu0 0
      %903 = vmatprep.subr.bf16.mxu0 0
      %904 = vmatpush1.bf16.xpose.msra.mxu0 0
      %905 = vmatprep.subr.bf16.mxu0 0
      %906 = vmatpush1.bf16.xpose.msra.mxu0 0
      %907 = vmatprep.subr.bf16.mxu0 0
      %908 = vmatpush1.bf16.xpose.msra.mxu0 %v891
      %909 = vmatprep.subr.bf16.mxu0 0
      %910 = vmatpush2.bf16.xpose.msra.mxu0 0
      %911 = vmatprep.subr.bf16.mxu0 0
      %912 = vmatpush2.bf16.xpose.msra.mxu0 0
      %913 = vmatprep.subr.bf16.mxu0 0
      %914 = vmatpush2.bf16.xpose.msra.mxu0 0
      %915 = vmatprep.subr.bf16.mxu0 0
      %916 = vmatpush2.bf16.xpose.msra.mxu0 0
      %917 = vmatprep.subr.bf16.mxu0 0
      %918 = vmatpush2.bf16.xpose.msra.mxu0 0
      %919 = vmatprep.subr.bf16.mxu0 0
      %920 = vmatpush2.bf16.xpose.msra.mxu0 0
      %921 = vmatprep.subr.bf16.mxu0 0
      %922 = vmatpush2.bf16.xpose.msra.mxu0 0
      %923 = vmatprep.subr.bf16.mxu0 0
      %924 = vmatpush2.bf16.xpose.msra.mxu0 0
      %925 = vmatprep.mubr.bf16.mxu0 0
      %926 = vmatmul.mubr.bf16.gmra.mxu0 %v888
      %v927 = vpop.f32.mrf.mxu0
      %v928 = vadd.f32 0.0, %v927
      %v929 = vpop.f32.mrf.mxu0
      %v930 = vpop.f32.mrf.mxu0
      %v931 = vpop.f32.mrf.mxu0
      %932 = vdwg.mxu0
      %v933 = vlaneseq
      %v934 = vshrl.u32 %v933, 7
      %v935 = vsub.s32 0, %v934
      %v936 = vrot.slane %v519, %v935
      %v937 = vlaneseq
      %v938 = vshrl.u32 %v937, 7
      %v939 = vsub.s32 0, %v938
      %v940 = vrot.slane %v592, %v939
      %v941 = vlaneseq
      %v942 = vshrl.u32 %v941, 7
      %v943 = vsub.s32 0, %v942
      %v944 = vrot.slane %v665, %v943
      %v945 = vlaneseq
      %v946 = vshrl.u32 %v945, 7
      %v947 = vsub.s32 0, %v946
      %v948 = vrot.slane %v738, %v947
      %v949 = vadd.f32 %v432, %v936
      %v950 = vadd.f32 %v435, %v940
      %v951 = vadd.f32 %v438, %v944
      %v952 = vadd.f32 %v441, %v948
      %v953 = vmul.f32 %v790, 2.0
      %v954 = vmul.f32 %v836, 2.0
      %v955 = vmul.f32 %v882, 2.0
      %v956 = vmul.f32 %v928, 2.0
      %v957 = vsub.f32 %v949, %v953
      %v958 = vsub.f32 %v950, %v954
      %v959 = vsub.f32 %v951, %v955
      %v960 = vsub.f32 %v952, %v956
      %v961 = vmax.f32 %v957, 0.0
      %v962 = vmax.f32 %v958, 0.0
      %v963 = vmax.f32 %v959, 0.0
      %v964 = vmax.f32 %v960, 0.0
      %v965 = vrsqrt.pop %v961
      %v966 = vmul.f32 %v961, %v965
      %vm967 = vcmp.eq.f32.partialorder %v961, inf
      %v968 = vsel %vm967, %v961, %v966
      %vm969 = vcmp.eq.f32.partialorder %v961, 0.0
      %v970 = vand.u32 %v961, 2147483648
      %v971 = vsel %vm969, %v970, %v968
      %v972 = vrsqrt.pop %v962
      %v973 = vmul.f32 %v962, %v972
      %vm974 = vcmp.eq.f32.partialorder %v962, inf
      %v975 = vsel %vm974, %v962, %v973
      %vm976 = vcmp.eq.f32.partialorder %v962, 0.0
      %v977 = vand.u32 %v962, 2147483648
      %v978 = vsel %vm976, %v977, %v975
      %v979 = vrsqrt.pop %v963
      %v980 = vmul.f32 %v963, %v979
      %vm981 = vcmp.eq.f32.partialorder %v963, inf
      %v982 = vsel %vm981, %v963, %v980
      %vm983 = vcmp.eq.f32.partialorder %v963, 0.0
      %v984 = vand.u32 %v963, 2147483648
      %v985 = vsel %vm983, %v984, %v982
      %v986 = vrsqrt.pop %v964
      %v987 = vmul.f32 %v964, %v986
      %vm988 = vcmp.eq.f32.partialorder %v964, inf
      %v989 = vsel %vm988, %v964, %v987
      %vm990 = vcmp.eq.f32.partialorder %v964, 0.0
      %v991 = vand.u32 %v964, 2147483648
      %v992 = vsel %vm990, %v991, %v989
      %v993 = vsub.f32 0.0, %v971
      %v994 = vsub.f32 0.0, %v978
      %v995 = vsub.f32 0.0, %v985
      %v996 = vsub.f32 0.0, %v992
      %v997 = vsel %vm390, 1, 0
      %vm998 = vcmp.eq.s32.totalorder %v997, 1
      %v999 = vsel %vm998, %v993, -1e+09
      %v1000 = vsel %vm998, %v994, -1e+09
      %v1001 = vsel %vm998, %v995, -1e+09
      %v1002 = vsel %vm998, %v996, -1e+09
      %v1003 = vmul.f32 %v999, 1.442695
      %v1004 = vpow.pop %v1003
      %v1005 = vmul.f32 %v1000, 1.442695
      %v1006 = vpow.pop %v1005
      %v1007 = vmul.f32 %v1001, 1.442695
      %v1008 = vpow.pop %v1007
      %v1009 = vmul.f32 %v1002, 1.442695
      %v1010 = vpow.pop %v1009
      %vm1011 = vcmask 64512
      %v1012 = vsel %vm1011, %v1004, 0.0
      %1013 = vadd.xlane.f32.xlu0 %v1012
      %v1014 = vpop.xlane.xlu0 %1013
      %v1015 = vsel %vm1011, %v1006, 0.0
      %1016 = vadd.xlane.f32.xlu0 %v1015
      %v1017 = vpop.xlane.xlu0 %1016
      %v1018 = vsel %vm1011, %v1008, 0.0
      %1019 = vadd.xlane.f32.xlu0 %v1018
      %v1020 = vpop.xlane.xlu0 %1019
      %v1021 = vsel %vm1011, %v1010, 0.0
      %1022 = vadd.xlane.f32.xlu0 %v1021
      %v1023 = vpop.xlane.xlu0 %1022
      %v1024 = vmax.f32 %v1014, 1e-30
      %v1025 = vmax.f32 %v1017, 1e-30
      %v1026 = vmax.f32 %v1020, 1e-30
      %v1027 = vmax.f32 %v1023, 1e-30
      %v1028 = vrcp.pop %v1024
      %v1029 = vrcp.pop %v1025
      %v1030 = vrcp.pop %v1026
      %v1031 = vrcp.pop %v1027
      %v1032 = vmul.f32 %v1004, %v1028
      %v1033 = vmul.f32 %v1006, %v1029
      %v1034 = vmul.f32 %v1008, %v1030
      %v1035 = vmul.f32 %v1010, %v1031
      %v1036 = vpack.c.bf16 %v1032, %v1032
      %v1037 = vpack.c.bf16 %v1033, %v1033
      %v1038 = vpack.c.bf16 %v1034, %v1034
      %v1039 = vpack.c.bf16 %v1035, %v1035
      %v1041 = vsel %vm1011, %v1036, 0
      %vm1043 = vcmask 1043456
      %v1045 = vsel %vm1043, %v421, 0
      %1047 = vmatprep.subr.bf16.mxu0 0
      %1048 = vmatpush1.bf16.msra.mxu0 0
      %1049 = vmatprep.subr.bf16.mxu0 0
      %1050 = vmatpush1.bf16.msra.mxu0 0
      %1051 = vmatprep.subr.bf16.mxu0 0
      %1052 = vmatpush1.bf16.msra.mxu0 0
      %1053 = vmatprep.subr.bf16.mxu0 0
      %1054 = vmatpush1.bf16.msra.mxu0 0
      %1055 = vmatprep.subr.bf16.mxu0 0
      %1056 = vmatpush1.bf16.msra.mxu0 0
      %1057 = vmatprep.subr.bf16.mxu0 0
      %1058 = vmatpush1.bf16.msra.mxu0 0
      %1059 = vmatprep.subr.bf16.mxu0 0
      %1060 = vmatpush1.bf16.msra.mxu0 0
      %1061 = vmatprep.subr.bf16.mxu0 0
      %1062 = vmatpush1.bf16.msra.mxu0 %v1045
      %1063 = vmatprep.subr.bf16.mxu0 0
      %1064 = vmatpush2.bf16.msra.mxu0 0
      %1065 = vmatprep.subr.bf16.mxu0 0
      %1066 = vmatpush2.bf16.msra.mxu0 0
      %1067 = vmatprep.subr.bf16.mxu0 0
      %1068 = vmatpush2.bf16.msra.mxu0 0
      %1069 = vmatprep.subr.bf16.mxu0 0
      %1070 = vmatpush2.bf16.msra.mxu0 0
      %1071 = vmatprep.subr.bf16.mxu0 0
      %1072 = vmatpush2.bf16.msra.mxu0 0
      %1073 = vmatprep.subr.bf16.mxu0 0
      %1074 = vmatpush2.bf16.msra.mxu0 0
      %1075 = vmatprep.subr.bf16.mxu0 0
      %1076 = vmatpush2.bf16.msra.mxu0 0
      %1077 = vmatprep.subr.bf16.mxu0 0
      %1078 = vmatpush2.bf16.msra.mxu0 0
      %1079 = vmatprep.mubr.bf16.mxu0 0
      %1080 = vmatmul.mubr.bf16.gmra.mxu0 %v1041
      %v1081 = vpop.f32.mrf.mxu0
      %v1082 = vadd.f32 0.0, %v1081
      %v1083 = vpop.f32.mrf.mxu0
      %v1084 = vpop.f32.mrf.mxu0
      %v1085 = vpop.f32.mrf.mxu0
      %1086 = vdwg.mxu0
      %v1088 = vsel %vm1011, %v1037, 0
      %v1091 = vsel %vm1043, %v422, 0
      %1093 = vmatprep.subr.bf16.mxu0 0
      %1094 = vmatpush1.bf16.msra.mxu0 0
      %1095 = vmatprep.subr.bf16.mxu0 0
      %1096 = vmatpush1.bf16.msra.mxu0 0
      %1097 = vmatprep.subr.bf16.mxu0 0
      %1098 = vmatpush1.bf16.msra.mxu0 0
      %1099 = vmatprep.subr.bf16.mxu0 0
      %1100 = vmatpush1.bf16.msra.mxu0 0
      %1101 = vmatprep.subr.bf16.mxu0 0
      %1102 = vmatpush1.bf16.msra.mxu0 0
      %1103 = vmatprep.subr.bf16.mxu0 0
      %1104 = vmatpush1.bf16.msra.mxu0 0
      %1105 = vmatprep.subr.bf16.mxu0 0
      %1106 = vmatpush1.bf16.msra.mxu0 0
      %1107 = vmatprep.subr.bf16.mxu0 0
      %1108 = vmatpush1.bf16.msra.mxu0 %v1091
      %1109 = vmatprep.subr.bf16.mxu0 0
      %1110 = vmatpush2.bf16.msra.mxu0 0
      %1111 = vmatprep.subr.bf16.mxu0 0
      %1112 = vmatpush2.bf16.msra.mxu0 0
      %1113 = vmatprep.subr.bf16.mxu0 0
      %1114 = vmatpush2.bf16.msra.mxu0 0
      %1115 = vmatprep.subr.bf16.mxu0 0
      %1116 = vmatpush2.bf16.msra.mxu0 0
      %1117 = vmatprep.subr.bf16.mxu0 0
      %1118 = vmatpush2.bf16.msra.mxu0 0
      %1119 = vmatprep.subr.bf16.mxu0 0
      %1120 = vmatpush2.bf16.msra.mxu0 0
      %1121 = vmatprep.subr.bf16.mxu0 0
      %1122 = vmatpush2.bf16.msra.mxu0 0
      %1123 = vmatprep.subr.bf16.mxu0 0
      %1124 = vmatpush2.bf16.msra.mxu0 0
      %1125 = vmatprep.mubr.bf16.mxu0 0
      %1126 = vmatmul.mubr.bf16.gmra.mxu0 %v1088
      %v1127 = vpop.f32.mrf.mxu0
      %v1128 = vadd.f32 0.0, %v1127
      %v1129 = vpop.f32.mrf.mxu0
      %v1130 = vpop.f32.mrf.mxu0
      %v1131 = vpop.f32.mrf.mxu0
      %1132 = vdwg.mxu0
      %v1134 = vsel %vm1011, %v1038, 0
      %v1137 = vsel %vm1043, %v423, 0
      %1139 = vmatprep.subr.bf16.mxu0 0
      %1140 = vmatpush1.bf16.msra.mxu0 0
      %1141 = vmatprep.subr.bf16.mxu0 0
      %1142 = vmatpush1.bf16.msra.mxu0 0
      %1143 = vmatprep.subr.bf16.mxu0 0
      %1144 = vmatpush1.bf16.msra.mxu0 0
      %1145 = vmatprep.subr.bf16.mxu0 0
      %1146 = vmatpush1.bf16.msra.mxu0 0
      %1147 = vmatprep.subr.bf16.mxu0 0
      %1148 = vmatpush1.bf16.msra.mxu0 0
      %1149 = vmatprep.subr.bf16.mxu0 0
      %1150 = vmatpush1.bf16.msra.mxu0 0
      %1151 = vmatprep.subr.bf16.mxu0 0
      %1152 = vmatpush1.bf16.msra.mxu0 0
      %1153 = vmatprep.subr.bf16.mxu0 0
      %1154 = vmatpush1.bf16.msra.mxu0 %v1137
      %1155 = vmatprep.subr.bf16.mxu0 0
      %1156 = vmatpush2.bf16.msra.mxu0 0
      %1157 = vmatprep.subr.bf16.mxu0 0
      %1158 = vmatpush2.bf16.msra.mxu0 0
      %1159 = vmatprep.subr.bf16.mxu0 0
      %1160 = vmatpush2.bf16.msra.mxu0 0
      %1161 = vmatprep.subr.bf16.mxu0 0
      %1162 = vmatpush2.bf16.msra.mxu0 0
      %1163 = vmatprep.subr.bf16.mxu0 0
      %1164 = vmatpush2.bf16.msra.mxu0 0
      %1165 = vmatprep.subr.bf16.mxu0 0
      %1166 = vmatpush2.bf16.msra.mxu0 0
      %1167 = vmatprep.subr.bf16.mxu0 0
      %1168 = vmatpush2.bf16.msra.mxu0 0
      %1169 = vmatprep.subr.bf16.mxu0 0
      %1170 = vmatpush2.bf16.msra.mxu0 0
      %1171 = vmatprep.mubr.bf16.mxu0 0
      %1172 = vmatmul.mubr.bf16.gmra.mxu0 %v1134
      %v1173 = vpop.f32.mrf.mxu0
      %v1174 = vadd.f32 0.0, %v1173
      %v1175 = vpop.f32.mrf.mxu0
      %v1176 = vpop.f32.mrf.mxu0
      %v1177 = vpop.f32.mrf.mxu0
      %1178 = vdwg.mxu0
      %v1180 = vsel %vm1011, %v1039, 0
      %v1183 = vsel %vm1043, %v424, 0
      %1185 = vmatprep.subr.bf16.mxu0 0
      %1186 = vmatpush1.bf16.msra.mxu0 0
      %1187 = vmatprep.subr.bf16.mxu0 0
      %1188 = vmatpush1.bf16.msra.mxu0 0
      %1189 = vmatprep.subr.bf16.mxu0 0
      %1190 = vmatpush1.bf16.msra.mxu0 0
      %1191 = vmatprep.subr.bf16.mxu0 0
      %1192 = vmatpush1.bf16.msra.mxu0 0
      %1193 = vmatprep.subr.bf16.mxu0 0
      %1194 = vmatpush1.bf16.msra.mxu0 0
      %1195 = vmatprep.subr.bf16.mxu0 0
      %1196 = vmatpush1.bf16.msra.mxu0 0
      %1197 = vmatprep.subr.bf16.mxu0 0
      %1198 = vmatpush1.bf16.msra.mxu0 0
      %1199 = vmatprep.subr.bf16.mxu0 0
      %1200 = vmatpush1.bf16.msra.mxu0 %v1183
      %1201 = vmatprep.subr.bf16.mxu0 0
      %1202 = vmatpush2.bf16.msra.mxu0 0
      %1203 = vmatprep.subr.bf16.mxu0 0
      %1204 = vmatpush2.bf16.msra.mxu0 0
      %1205 = vmatprep.subr.bf16.mxu0 0
      %1206 = vmatpush2.bf16.msra.mxu0 0
      %1207 = vmatprep.subr.bf16.mxu0 0
      %1208 = vmatpush2.bf16.msra.mxu0 0
      %1209 = vmatprep.subr.bf16.mxu0 0
      %1210 = vmatpush2.bf16.msra.mxu0 0
      %1211 = vmatprep.subr.bf16.mxu0 0
      %1212 = vmatpush2.bf16.msra.mxu0 0
      %1213 = vmatprep.subr.bf16.mxu0 0
      %1214 = vmatpush2.bf16.msra.mxu0 0
      %1215 = vmatprep.subr.bf16.mxu0 0
      %1216 = vmatpush2.bf16.msra.mxu0 0
      %1217 = vmatprep.mubr.bf16.mxu0 0
      %1218 = vmatmul.mubr.bf16.gmra.mxu0 %v1180
      %v1219 = vpop.f32.mrf.mxu0
      %v1220 = vadd.f32 0.0, %v1219
      %v1221 = vpop.f32.mrf.mxu0
      %v1222 = vpop.f32.mrf.mxu0
      %v1223 = vpop.f32.mrf.mxu0
      %1224 = vdwg.mxu0
      %v1225 = vpack.c.bf16 %v1082, %v1082
      %v1226 = vpack.c.bf16 %v1128, %v1128
      %v1227 = vpack.c.bf16 %v1174, %v1174
      %v1228 = vpack.c.bf16 %v1220, %v1220
      %v1229 = vld [vmem:[%s4] sm:$0xf]
      %v1230 = vld [vmem:[%s4 + $0x4] sm:$0xf]
      %v1231 = vld [vmem:[%s4 + $0x8] sm:$0xf]
      %v1232 = vld [vmem:[%s4 + $0xc] sm:$0xf]
      %v1233 = vld [vmem:[%s4 + $0x10] sm:$0xf]
      %v1234 = vld [vmem:[%s4 + $0x14] sm:$0xf]
      %v1235 = vld [vmem:[%s4 + $0x18] sm:$0xf]
      %v1236 = vld [vmem:[%s4 + $0x1c] sm:$0xf]
      %v1237 = vld [vmem:[%s4 + $0x20] sm:$0xf]
      %v1238 = vld [vmem:[%s4 + $0x24] sm:$0xf]
      %v1239 = vld [vmem:[%s4 + $0x28] sm:$0xf]
      %v1240 = vld [vmem:[%s4 + $0x2c] sm:$0xf]
      %v1241 = vld [vmem:[%s4 + $0x30] sm:$0xf]
      %v1242 = vld [vmem:[%s4 + $0x34] sm:$0xf]
      %v1243 = vld [vmem:[%s4 + $0x38] sm:$0xf]
      %v1244 = vld [vmem:[%s4 + $0x3c] sm:$0xf]
      %v1249 = vunpack.c.l.b16 %v1229
      %v1250 = vunpack.c.l.b16 %v1230
      %v1251 = vunpack.c.l.b16 %v1231
      %v1252 = vunpack.c.l.b16 %v1232
      %v1253 = vpack.c.b16 %v1250, %v1249
      %v1254 = vpack.c.b16 %v1252, %v1251
      %v1258 = vsel %vm429, %v1225, 0
      %1260 = vmatprep.subr.bf16.mxu0 0
      %1261 = vmatpush1.bf16.msra.mxu0 0
      %1262 = vmatprep.subr.bf16.mxu0 0
      %1263 = vmatpush1.bf16.msra.mxu0 0
      %1264 = vmatprep.subr.bf16.mxu0 0
      %1265 = vmatpush1.bf16.msra.mxu0 0
      %1266 = vmatprep.subr.bf16.mxu0 0
      %1267 = vmatpush1.bf16.msra.mxu0 0
      %1268 = vmatprep.subr.bf16.mxu0 0
      %1269 = vmatpush1.bf16.msra.mxu0 0
      %1270 = vmatprep.subr.bf16.mxu0 0
      %1271 = vmatpush1.bf16.msra.mxu0 0
      %1272 = vmatprep.subr.bf16.mxu0 0
      %1273 = vmatpush1.bf16.msra.mxu0 %v1254
      %1274 = vmatprep.subr.bf16.mxu0 0
      %1275 = vmatpush1.bf16.msra.mxu0 %v1253
      %1276 = vmatprep.subr.bf16.mxu0 0
      %1277 = vmatpush2.bf16.msra.mxu0 0
      %1278 = vmatprep.subr.bf16.mxu0 0
      %1279 = vmatpush2.bf16.msra.mxu0 0
      %1280 = vmatprep.subr.bf16.mxu0 0
      %1281 = vmatpush2.bf16.msra.mxu0 0
      %1282 = vmatprep.subr.bf16.mxu0 0
      %1283 = vmatpush2.bf16.msra.mxu0 0
      %1284 = vmatprep.subr.bf16.mxu0 0
      %1285 = vmatpush2.bf16.msra.mxu0 0
      %1286 = vmatprep.subr.bf16.mxu0 0
      %1287 = vmatpush2.bf16.msra.mxu0 0
      %1288 = vmatprep.subr.bf16.mxu0 0
      %1289 = vmatpush2.bf16.msra.mxu0 0
      %1290 = vmatprep.subr.bf16.mxu0 0
      %1291 = vmatpush2.bf16.msra.mxu0 0
      %1292 = vmatprep.mubr.bf16.mxu0 0
      %1293 = vmatmul.mubr.bf16.gmra.mxu0 %v1258
      %v1294 = vpop.f32.mrf.mxu0
      %v1295 = vadd.f32 0.0, %v1294
      %v1296 = vpop.f32.mrf.mxu0
      %v1297 = vpop.f32.mrf.mxu0
      %v1298 = vpop.f32.mrf.mxu0
      %1299 = vdwg.mxu0
      %v1304 = vunpack.c.l.b16 %v1233
      %v1305 = vunpack.c.l.b16 %v1234
      %v1306 = vunpack.c.l.b16 %v1235
      %v1307 = vunpack.c.l.b16 %v1236
      %v1308 = vpack.c.b16 %v1305, %v1304
      %v1309 = vpack.c.b16 %v1307, %v1306
      %v1313 = vsel %vm429, %v1226, 0
      %1315 = vmatprep.subr.bf16.mxu0 0
      %1316 = vmatpush1.bf16.msra.mxu0 0
      %1317 = vmatprep.subr.bf16.mxu0 0
      %1318 = vmatpush1.bf16.msra.mxu0 0
      %1319 = vmatprep.subr.bf16.mxu0 0
      %1320 = vmatpush1.bf16.msra.mxu0 0
      %1321 = vmatprep.subr.bf16.mxu0 0
      %1322 = vmatpush1.bf16.msra.mxu0 0
      %1323 = vmatprep.subr.bf16.mxu0 0
      %1324 = vmatpush1.bf16.msra.mxu0 0
      %1325 = vmatprep.subr.bf16.mxu0 0
      %1326 = vmatpush1.bf16.msra.mxu0 0
      %1327 = vmatprep.subr.bf16.mxu0 0
      %1328 = vmatpush1.bf16.msra.mxu0 %v1309
      %1329 = vmatprep.subr.bf16.mxu0 0
      %1330 = vmatpush1.bf16.msra.mxu0 %v1308
      %1331 = vmatprep.subr.bf16.mxu0 0
      %1332 = vmatpush2.bf16.msra.mxu0 0
      %1333 = vmatprep.subr.bf16.mxu0 0
      %1334 = vmatpush2.bf16.msra.mxu0 0
      %1335 = vmatprep.subr.bf16.mxu0 0
      %1336 = vmatpush2.bf16.msra.mxu0 0
      %1337 = vmatprep.subr.bf16.mxu0 0
      %1338 = vmatpush2.bf16.msra.mxu0 0
      %1339 = vmatprep.subr.bf16.mxu0 0
      %1340 = vmatpush2.bf16.msra.mxu0 0
      %1341 = vmatprep.subr.bf16.mxu0 0
      %1342 = vmatpush2.bf16.msra.mxu0 0
      %1343 = vmatprep.subr.bf16.mxu0 0
      %1344 = vmatpush2.bf16.msra.mxu0 0
      %1345 = vmatprep.subr.bf16.mxu0 0
      %1346 = vmatpush2.bf16.msra.mxu0 0
      %1347 = vmatprep.mubr.bf16.mxu0 0
      %1348 = vmatmul.mubr.bf16.gmra.mxu0 %v1313
      %v1349 = vpop.f32.mrf.mxu0
      %v1350 = vadd.f32 0.0, %v1349
      %v1351 = vpop.f32.mrf.mxu0
      %v1352 = vpop.f32.mrf.mxu0
      %v1353 = vpop.f32.mrf.mxu0
      %1354 = vdwg.mxu0
      %v1359 = vunpack.c.l.b16 %v1237
      %v1360 = vunpack.c.l.b16 %v1238
      %v1361 = vunpack.c.l.b16 %v1239
      %v1362 = vunpack.c.l.b16 %v1240
      %v1363 = vpack.c.b16 %v1360, %v1359
      %v1364 = vpack.c.b16 %v1362, %v1361
      %v1368 = vsel %vm429, %v1227, 0
      %1370 = vmatprep.subr.bf16.mxu0 0
      %1371 = vmatpush1.bf16.msra.mxu0 0
      %1372 = vmatprep.subr.bf16.mxu0 0
      %1373 = vmatpush1.bf16.msra.mxu0 0
      %1374 = vmatprep.subr.bf16.mxu0 0
      %1375 = vmatpush1.bf16.msra.mxu0 0
      %1376 = vmatprep.subr.bf16.mxu0 0
      %1377 = vmatpush1.bf16.msra.mxu0 0
      %1378 = vmatprep.subr.bf16.mxu0 0
      %1379 = vmatpush1.bf16.msra.mxu0 0
      %1380 = vmatprep.subr.bf16.mxu0 0
      %1381 = vmatpush1.bf16.msra.mxu0 0
      %1382 = vmatprep.subr.bf16.mxu0 0
      %1383 = vmatpush1.bf16.msra.mxu0 %v1364
      %1384 = vmatprep.subr.bf16.mxu0 0
      %1385 = vmatpush1.bf16.msra.mxu0 %v1363
      %1386 = vmatprep.subr.bf16.mxu0 0
      %1387 = vmatpush2.bf16.msra.mxu0 0
      %1388 = vmatprep.subr.bf16.mxu0 0
      %1389 = vmatpush2.bf16.msra.mxu0 0
      %1390 = vmatprep.subr.bf16.mxu0 0
      %1391 = vmatpush2.bf16.msra.mxu0 0
      %1392 = vmatprep.subr.bf16.mxu0 0
      %1393 = vmatpush2.bf16.msra.mxu0 0
      %1394 = vmatprep.subr.bf16.mxu0 0
      %1395 = vmatpush2.bf16.msra.mxu0 0
      %1396 = vmatprep.subr.bf16.mxu0 0
      %1397 = vmatpush2.bf16.msra.mxu0 0
      %1398 = vmatprep.subr.bf16.mxu0 0
      %1399 = vmatpush2.bf16.msra.mxu0 0
      %1400 = vmatprep.subr.bf16.mxu0 0
      %1401 = vmatpush2.bf16.msra.mxu0 0
      %1402 = vmatprep.mubr.bf16.mxu0 0
      %1403 = vmatmul.mubr.bf16.gmra.mxu0 %v1368
      %v1404 = vpop.f32.mrf.mxu0
      %v1405 = vadd.f32 0.0, %v1404
      %v1406 = vpop.f32.mrf.mxu0
      %v1407 = vpop.f32.mrf.mxu0
      %v1408 = vpop.f32.mrf.mxu0
      %1409 = vdwg.mxu0
      %v1414 = vunpack.c.l.b16 %v1241
      %v1415 = vunpack.c.l.b16 %v1242
      %v1416 = vunpack.c.l.b16 %v1243
      %v1417 = vunpack.c.l.b16 %v1244
      %v1418 = vpack.c.b16 %v1415, %v1414
      %v1419 = vpack.c.b16 %v1417, %v1416
      %v1423 = vsel %vm429, %v1228, 0
      %1425 = vmatprep.subr.bf16.mxu0 0
      %1426 = vmatpush1.bf16.msra.mxu0 0
      %1427 = vmatprep.subr.bf16.mxu0 0
      %1428 = vmatpush1.bf16.msra.mxu0 0
      %1429 = vmatprep.subr.bf16.mxu0 0
      %1430 = vmatpush1.bf16.msra.mxu0 0
      %1431 = vmatprep.subr.bf16.mxu0 0
      %1432 = vmatpush1.bf16.msra.mxu0 0
      %1433 = vmatprep.subr.bf16.mxu0 0
      %1434 = vmatpush1.bf16.msra.mxu0 0
      %1435 = vmatprep.subr.bf16.mxu0 0
      %1436 = vmatpush1.bf16.msra.mxu0 0
      %1437 = vmatprep.subr.bf16.mxu0 0
      %1438 = vmatpush1.bf16.msra.mxu0 %v1419
      %1439 = vmatprep.subr.bf16.mxu0 0
      %1440 = vmatpush1.bf16.msra.mxu0 %v1418
      %1441 = vmatprep.subr.bf16.mxu0 0
      %1442 = vmatpush2.bf16.msra.mxu0 0
      %1443 = vmatprep.subr.bf16.mxu0 0
      %1444 = vmatpush2.bf16.msra.mxu0 0
      %1445 = vmatprep.subr.bf16.mxu0 0
      %1446 = vmatpush2.bf16.msra.mxu0 0
      %1447 = vmatprep.subr.bf16.mxu0 0
      %1448 = vmatpush2.bf16.msra.mxu0 0
      %1449 = vmatprep.subr.bf16.mxu0 0
      %1450 = vmatpush2.bf16.msra.mxu0 0
      %1451 = vmatprep.subr.bf16.mxu0 0
      %1452 = vmatpush2.bf16.msra.mxu0 0
      %1453 = vmatprep.subr.bf16.mxu0 0
      %1454 = vmatpush2.bf16.msra.mxu0 0
      %1455 = vmatprep.subr.bf16.mxu0 0
      %1456 = vmatpush2.bf16.msra.mxu0 0
      %1457 = vmatprep.mubr.bf16.mxu0 0
      %1458 = vmatmul.mubr.bf16.gmra.mxu0 %v1423
      %v1459 = vpop.f32.mrf.mxu0
      %v1460 = vadd.f32 0.0, %v1459
      %v1461 = vpop.f32.mrf.mxu0
      %v1462 = vpop.f32.mrf.mxu0
      %v1463 = vpop.f32.mrf.mxu0
      %1464 = vdwg.mxu0
      %v1465 = vadd.f32 %v1295, %v1350
      %v1466 = vadd.f32 %v1465, %v1405
      %v1467 = vadd.f32 %v1466, %v1460
      %v1468 = vadd.f32 %v385, %v1467
      %v1469 = vld [vmem:[%s5] sm:$0x1]
      %v1471 = vlaneseq
      %v1472 = vshrl.u32 %v1471, 7
      %v1473 = vsub.s32 0, %v1472
      %v1474 = vrot.slane %v1469, %v1473
      %v1476 = vadd.f32 %v1468, %v1474
      %1477 = vst [vmem:[%s383] sm:$0xff] %v1476
      %p1478 = scmp.lt.s32.totalorder %s22, 1
      %s1479 = scalar_select %p1478, %s22, 1
      %p1480 = scmp.lt.s32.totalorder %s23, 0
      %s1481 = scalar_select %p1480, %s23, 0
      %s1482 = sadd.s32 %s1481, %s1479
      %s1483 = smul.addr %s1482, 8
      %s1484 = scalar_lea.vmem %s7, %s1483
      // Predicated region
      $region49: #{_lambda_.10} parent=47 // pred_check
        %p1485 = pneg %p226
      $region50: #{_lambda_.10} parent=47 // pred_check_branch
        %1487 = sbr.rel (%p1485) target = $region52
      $region51: #{_lambda_.10} parent=47 // pred_region
        _
      $region52: #{_lambda_.10} parent=47 // pred_fallthru
        _
    $region48: #{_lambda_.10} parent=5 // pred_fallthru
      _
    %p1488 = scmp.le.s32.totalorder 2, %s13
    // Predicated region
    $region53: #{_lambda_.10} parent=5 // pred_check
      %p1489 = pneg %p1488
    $region54: #{_lambda_.10} parent=5 // pred_check_branch
      %1491 = sbr.rel (%p1489) target = $region56
    $region55: #{_lambda_.10} parent=5 // pred_region
      %s1492 = ssub.s32 %s13, 2
      // Predicated region
      $region57: #{_lambda_.10} parent=55 // pred_check
        %p1493 = pneg %p232
      $region58: #{_lambda_.10} parent=55 // pred_check_branch
        %1495 = sbr.rel (%p1493) target = $region60
      $region59: #{_lambda_.10} parent=55 // pred_region
        %p1496 = scmp.lt.s32.totalorder %s24, 1
        %s1497 = scalar_select %p1496, %s24, 1
        %p1498 = scmp.lt.s32.totalorder %s25, 0
        %s1499 = scalar_select %p1498, %s25, 0
        %s1500 = sadd.s32 %s1499, %s1497
        %s1501 = smul.addr %s1500, 8
        %s1502 = scalar_lea.vmem %s7, %s1501
      $region60: #{_lambda_.10} parent=55 // pred_fallthru
        _
    $region56: #{_lambda_.10} parent=5 // pred_fallthru
      _
  $region6: #{_lambda_.10} parent=0 // loop_footer
    %s17 = sadd.s32 1, %s13
  $region7: #{_lambda_.10} parent=0 // loop_footer_branch
    %12 = sbr.rel target = $region3
  $region8: #{_lambda_.10} parent=0 // loop_exit
    _

</llo_original>
